<compile_context>
chip_gen: v6e
topology: v6e:2x2x1
jax: 0.10.0
libtpu: 0.0.40
codegen_flags: <defaults>
</compile_context>

<pallas_src>
import math
import jax
import jax.numpy as jnp
from jax.experimental import pallas as pl
from jax.experimental.pallas import tpu as pltpu

# ---- model hyper-parameters (fixed by the module __init__) ------------------
D_MODEL = 128          # d_k
NUM_HEADS = 8
HEAD_DIM = D_MODEL // NUM_HEADS
D_FF = D_MODEL * 4
LN_EPS = 1e-5
INV_SQRT2 = 1.0 / math.sqrt(2.0)
ATTN_SCALE = 1.0 / math.sqrt(HEAD_DIM)

# rows of the packed (9, 128) per-channel parameter table
_BQ, _BK, _BV, _BO, _G1, _BE1, _G2, _BE2, _BF2 = range(9)


def _layer_norm(x, gamma, beta):
    mu = jnp.mean(x, axis=-1, keepdims=True)
    var = jnp.mean((x - mu) ** 2, axis=-1, keepdims=True)
    return (x - mu) * jax.lax.rsqrt(var + LN_EPS) * gamma + beta


def cross_transformer_kernel(
    q_ref, k_ref, v_ref, negmask_ref,
    wq_ref, wk_ref, wv_ref, wo_ref, w1_ref, w2_ref,
    vec_ref, bf1_ref, hmask_ref, seg_ref,
    out_ref,
):
    b_blk, lq, d = q_ref.shape
    _, lk, _ = k_ref.shape
    n_tot = NUM_HEADS * lk

    vec = vec_ref[...]                                     # (9, 128) f32
    bq, bk_b, bv_b, bo = (vec[_BQ:_BQ + 1], vec[_BK:_BK + 1],
                          vec[_BV:_BV + 1], vec[_BO:_BO + 1])
    g1, be1 = vec[_G1:_G1 + 1], vec[_BE1:_BE1 + 1]
    g2, be2 = vec[_G2:_G2 + 1], vec[_BE2:_BE2 + 1]
    bf2 = vec[_BF2:_BF2 + 1]

    # --- in-projections over the whole batch block (bf16 MXU, f32 acc) -------
    xq = q_ref[...].reshape(b_blk * lq, d).astype(jnp.bfloat16)
    xk = k_ref[...].reshape(b_blk * lk, d).astype(jnp.bfloat16)
    xv = v_ref[...].reshape(b_blk * lk, d).astype(jnp.bfloat16)

    q = jnp.dot(xq, wq_ref[...], preferred_element_type=jnp.float32) + bq
    k = jnp.dot(xk, wk_ref[...], preferred_element_type=jnp.float32) + bk_b
    v = jnp.dot(xv, wv_ref[...], preferred_element_type=jnp.float32) + bv_b

    q3 = (q * ATTN_SCALE).reshape(b_blk, lq, d).astype(jnp.bfloat16)
    k3 = k.reshape(b_blk, lk, d)
    v3 = v.reshape(b_blk, lk, d)

    # --- block-diagonal multi-head attention ----------------------------------
    # Row n = h*lk + kpos of kblk/vblk keeps only the 16 lanes of head h, so a
    # single 128-deep contraction gives per-head scores and a single matmul
    # over n gives the full-width context (no per-head slicing / concat).
    hmask = hmask_ref[...]                                 # (H, 128) f32, 0/1
    kblk = (k3[:, None, :, :] * hmask[None, :, None, :]) \
        .reshape(b_blk, n_tot, d).astype(jnp.bfloat16)
    vblk = (v3[:, None, :, :] * hmask[None, :, None, :]) \
        .reshape(b_blk, n_tot, d).astype(jnp.bfloat16)

    s = jnp.einsum("bqd,bnd->bqn", q3, kblk,
                   preferred_element_type=jnp.float32)     # (b, lq, H*lk)
    s = s + negmask_ref[...]                               # additive key mask

    # segmented softmax in the flat H*lk layout (see numerics note above)
    s = s - jnp.max(s, axis=-1, keepdims=True)
    p = jnp.exp(s)
    denom = jnp.dot(p.reshape(b_blk * lq, n_tot), seg_ref[...],
                    preferred_element_type=jnp.float32)
    denom = denom.reshape(b_blk, lq, n_tot)
    p = p * pl.reciprocal(jnp.maximum(denom, 1e-30), approx=True)

    ctx = jnp.einsum("bqn,bnd->bqd", p.astype(jnp.bfloat16), vblk,
                     preferred_element_type=jnp.float32)   # (b, lq, 128)

    # --- output projection -----------------------------------------------------
    ctx2 = ctx.reshape(b_blk * lq, d).astype(jnp.bfloat16)
    attn = jnp.dot(ctx2, wo_ref[...], preferred_element_type=jnp.float32) + bo

    # --- norm_1 (f32) ----------------------------------------------------------
    h1 = _layer_norm(attn, g1, be1)

    # --- FFN: Linear -> GELU(exact, erf) -> Linear (dropouts are identity) ----
    z = jnp.dot(h1.astype(jnp.bfloat16), w1_ref[...],
                preferred_element_type=jnp.float32) + bf1_ref[...]
    z = 0.5 * z * (1.0 + jax.lax.erf(z * INV_SQRT2))
    z = jnp.dot(z.astype(jnp.bfloat16), w2_ref[...],
                preferred_element_type=jnp.float32) + bf2

    # --- residual + norm_2 -----------------------------------------------------
    out = _layer_norm(z + h1, g2, be2)
    out_ref[...] = out.reshape(b_blk, lq, d).astype(out_ref.dtype)


def cross_transformer(query, key, value, params, mask=None, b_blk=32):
    """query: (B, Lq, D); key/value: (B, Lk, D); mask: (B, Lk), True/1 = padded key."""
    B, Lq, D = query.shape
    _, Lk, _ = key.shape
    assert D == D_MODEL
    N = NUM_HEADS * Lk

    (wq, bq, wk, bk, wv, bv, wo, bo,
     g1, be1, g2, be2, w1, bf1, w2, bf2) = params

    # pack the (1,128) per-channel params into one table -> one DMA channel
    vecs = jnp.concatenate([bq, bk, bv, bo, g1, be1, g2, be2, bf2], axis=0)

    # bf16 matmul weights; accumulation stays f32 inside the kernel
    wq_b, wk_b, wv_b, wo_b = (w.astype(jnp.bfloat16) for w in (wq, wk, wv, wo))
    w1_b, w2_b = w1.astype(jnp.bfloat16), w2.astype(jnp.bfloat16)

    # per-head lane mask (H, D): 1 where lane d belongs to head h
    d_idx = jnp.arange(D_MODEL)
    h_idx = jnp.arange(NUM_HEADS)
    hmask = (d_idx[None, :] // HEAD_DIM == h_idx[:, None]).astype(jnp.float32)

    # segment-sum matrix (N, N): 1 where rows/cols belong to the same head
    n_idx = jnp.arange(N)
    seg = (n_idx[:, None] // Lk == n_idx[None, :] // Lk).astype(jnp.float32)

    # additive key_padding_mask pre-tiled to the flat H*Lk layout
    if mask is None:
        negmask = jnp.zeros((B, 1, N), jnp.float32)
    else:
        neg = mask.astype(jnp.float32).reshape(B, 1, Lk) * (-1e9)
        negmask = jnp.tile(neg, (1, 1, NUM_HEADS))

    # Batch blocking: wide M for projections/FFN; keep >=2 grid steps when B
    # allows it (both v7x TensorCores get work) and cap the block so the
    # H-times expanded K/V slabs stay comfortably inside VMEM.
    per_sample = NUM_HEADS * Lk * D_MODEL * 12      # kblk+vblk, f32 build + bf16
    b_cap = max(1, (6 * 1024 * 1024) // per_sample)
    if B >= 2:
        b_blk = max(1, min(b_blk, B // 2, b_cap))
    else:
        b_blk = 1
    n_blocks = (B + b_blk - 1) // b_blk
    Bp = n_blocks * b_blk
    if Bp != B:
        pad = ((0, Bp - B), (0, 0), (0, 0))
        query = jnp.pad(query, pad)
        key = jnp.pad(key, pad)
        value = jnp.pad(value, pad)
        negmask = jnp.pad(negmask, pad)   # zero-pad == "not masked" -> no NaNs

    blk_q = pl.BlockSpec((b_blk, Lq, D), lambda i: (i, 0, 0))
    blk_kv = pl.BlockSpec((b_blk, Lk, D), lambda i: (i, 0, 0))
    blk_mask = pl.BlockSpec((b_blk, 1, N), lambda i: (i, 0, 0))

    def full(a):
        nd = a.ndim
        return pl.BlockSpec(a.shape, lambda i, _nd=nd: (0,) * _nd)

    out = pl.pallas_call(
        cross_transformer_kernel,
        out_shape=jax.ShapeDtypeStruct((Bp, Lq, D), jnp.float32),
        grid=(n_blocks,),
        in_specs=[
            blk_q, blk_kv, blk_kv, blk_mask,
            full(wq_b), full(wk_b), full(wv_b), full(wo_b),
            full(w1_b), full(w2_b),
            full(vecs), full(bf1), full(hmask), full(seg),
        ],
        out_specs=pl.BlockSpec((b_blk, Lq, D), lambda i: (i, 0, 0)),
        compiler_params=pltpu.CompilerParams(
            dimension_semantics=("parallel",),
            vmem_limit_bytes=32 * 1024 * 1024,
        ),
    )(query, key, value, negmask,
      wq_b, wk_b, wv_b, wo_b, w1_b, w2_b, vecs, bf1, hmask, seg)

    return out[:B]


# ---------------- pure-JAX f32 reference (for sanity check) -----------------
def reference_forward(query, key, value, params, mask=None):
    (wq, bq, wk, bk, wv, bv, wo, bo,
     g1, be1, g2, be2, w1, bf1, w2, bf2) = params
    B, Lq, D = query.shape
    Lk = key.shape[1]
    q = query @ wq + bq
    k = key @ wk + bk
    v = value @ wv + bv
    qh = q.reshape(B, Lq, NUM_HEADS, HEAD_DIM)
    kh = k.reshape(B, Lk, NUM_HEADS, HEAD_DIM)
    vh = v.reshape(B, Lk, NUM_HEADS, HEAD_DIM)
    s = jnp.einsum("bqhd,bkhd->bhqk", qh, kh) * ATTN_SCALE
    if mask is not None:
        s = s + (mask.astype(jnp.float32) * (-1e9))[:, None, None, :]
    p = jax.nn.softmax(s, axis=-1)
    ctx = jnp.einsum("bhqk,bkhd->bqhd", p, vh).reshape(B, Lq, D)
    attn = ctx @ wo + bo
    h1 = _layer_norm(attn, g1, be1)
    z = h1 @ w1 + bf1
    z = 0.5 * z * (1.0 + jax.lax.erf(z * INV_SQRT2))
    z = z @ w2 + bf2
    return _layer_norm(z + h1, g2, be2)


def init_params(key):
    """Deterministic synthetic parameters matching nn.MultiheadAttention /
    LayerNorm / FFN shapes. Projection weights stored as (D_in, D_out)."""
    ks = jax.random.split(key, 8)
    s = 0.02
    wq = s * jax.random.normal(ks[0], (D_MODEL, D_MODEL), jnp.float32)
    wk = s * jax.random.normal(ks[1], (D_MODEL, D_MODEL), jnp.float32)
    wv = s * jax.random.normal(ks[2], (D_MODEL, D_MODEL), jnp.float32)
    wo = s * jax.random.normal(ks[3], (D_MODEL, D_MODEL), jnp.float32)
    bq = jnp.zeros((1, D_MODEL), jnp.float32)
    bk = jnp.zeros((1, D_MODEL), jnp.float32)
    bv = jnp.zeros((1, D_MODEL), jnp.float32)
    bo = jnp.zeros((1, D_MODEL), jnp.float32)
    g1 = jnp.ones((1, D_MODEL), jnp.float32)
    be1 = jnp.zeros((1, D_MODEL), jnp.float32)
    g2 = jnp.ones((1, D_MODEL), jnp.float32)
    be2 = jnp.zeros((1, D_MODEL), jnp.float32)
    w1 = s * jax.random.normal(ks[4], (D_MODEL, D_FF), jnp.float32)
    bf1 = 0.01 * jax.random.normal(ks[5], (1, D_FF), jnp.float32)
    w2 = s * jax.random.normal(ks[6], (D_FF, D_MODEL), jnp.float32)
    bf2 = 0.01 * jax.random.normal(ks[7], (1, D_MODEL), jnp.float32)
    return (wq, bq, wk, bk, wv, bv, wo, bo, g1, be1, g2, be2, w1, bf1, w2, bf2)


if __name__ == "__main__":
    key = jax.random.PRNGKey(0)
    k_p, k_q, k_k, k_v = jax.random.split(key, 4)

    B, Lq, Lk = 16, 8, 8
    params = init_params(k_p)
    query = jax.random.normal(k_q, (B, Lq, D_MODEL), jnp.float32)
    keyt = jax.random.normal(k_k, (B, Lk, D_MODEL), jnp.float32)
    value = jax.random.normal(k_v, (B, Lk, D_MODEL), jnp.float32)
    # key_padding_mask: True == ignore that key position (last 2 keys of batch 1)
    mask = jnp.zeros((B, Lk), jnp.bool_).at[1, Lk - 2:].set(True)

    out = cross_transformer(query, keyt, value, params, mask=mask)
    jax.block_until_ready(out)
    assert out.shape == (B, Lq, D_MODEL)
    assert jnp.all(jnp.isfinite(out))

    ref = reference_forward(query, keyt, value, params, mask=mask)
    err = float(jnp.max(jnp.abs(out - ref)))
    assert err < 0.1, f"max abs error vs f32 reference too large: {err}"
    print("KERNEL_OK")
</pallas_src>

<mosaic_0001>
module attributes {stable_mosaic.version = 11 : i64} {
  func.func @cross_transformer_kernel(%arg0: i32, %arg1: memref<8x8x128xf32, #tpu.memory_space<vmem>>, %arg2: memref<8x8x128xf32, #tpu.memory_space<vmem>>, %arg3: memref<8x8x128xf32, #tpu.memory_space<vmem>>, %arg4: memref<8x1x64xf32, #tpu.memory_space<vmem>>, %arg5: memref<128x128xbf16, #tpu.memory_space<vmem>>, %arg6: memref<128x128xbf16, #tpu.memory_space<vmem>>, %arg7: memref<128x128xbf16, #tpu.memory_space<vmem>>, %arg8: memref<128x128xbf16, #tpu.memory_space<vmem>>, %arg9: memref<128x512xbf16, #tpu.memory_space<vmem>>, %arg10: memref<512x128xbf16, #tpu.memory_space<vmem>>, %arg11: memref<9x128xf32, #tpu.memory_space<vmem>>, %arg12: memref<1x512xf32, #tpu.memory_space<vmem>>, %arg13: memref<8x128xf32, #tpu.memory_space<vmem>>, %arg14: memref<64x64xf32, #tpu.memory_space<vmem>>, %arg15: memref<8x8x128xf32, #tpu.memory_space<vmem>>) attributes {dimension_semantics = [#tpu.dimension_semantics<parallel>], iteration_bounds = array<i64: 2>, scalar_prefetch = 0 : i64, scratch_operands = 0 : i64, tpu.core_type = #tpu.core_type<tc>, window_params = [{transform_indices = @transform_0, window_bounds = array<i64: 8, 8, 128>}, {transform_indices = @transform_1, window_bounds = array<i64: 8, 8, 128>}, {transform_indices = @transform_2, window_bounds = array<i64: 8, 8, 128>}, {transform_indices = @transform_3, window_bounds = array<i64: 8, 1, 64>}, {pipeline_mode = #tpu.pipeline_mode<synchronous>, transform_indices = @transform_4, window_bounds = array<i64: 128, 128>}, {pipeline_mode = #tpu.pipeline_mode<synchronous>, transform_indices = @transform_5, window_bounds = array<i64: 128, 128>}, {pipeline_mode = #tpu.pipeline_mode<synchronous>, transform_indices = @transform_6, window_bounds = array<i64: 128, 128>}, {pipeline_mode = #tpu.pipeline_mode<synchronous>, transform_indices = @transform_7, window_bounds = array<i64: 128, 128>}, {pipeline_mode = #tpu.pipeline_mode<synchronous>, transform_indices = @transform_8, window_bounds = array<i64: 128, 512>}, {pipeline_mode = #tpu.pipeline_mode<synchronous>, transform_indices = @transform_9, window_bounds = array<i64: 512, 128>}, {pipeline_mode = #tpu.pipeline_mode<synchronous>, transform_indices = @transform_10, window_bounds = array<i64: 9, 128>}, {pipeline_mode = #tpu.pipeline_mode<synchronous>, transform_indices = @transform_11, window_bounds = array<i64: 1, 512>}, {pipeline_mode = #tpu.pipeline_mode<synchronous>, transform_indices = @transform_12, window_bounds = array<i64: 8, 128>}, {pipeline_mode = #tpu.pipeline_mode<synchronous>, transform_indices = @transform_13, window_bounds = array<i64: 64, 64>}, {transform_indices = @transform_14, window_bounds = array<i64: 8, 8, 128>}]} {
    %c0 = arith.constant 0 : index
    %c0_0 = arith.constant 0 : index
    %0 = vector.load %arg11[%c0, %c0_0] : memref<9x128xf32, #tpu.memory_space<vmem>>, vector<9x128xf32>
    %1 = vector.extract_strided_slice %0 {offsets = [0, 0], sizes = [1, 128], strides = [1, 1]} : vector<9x128xf32> to vector<1x128xf32>
    %2 = vector.extract_strided_slice %0 {offsets = [1, 0], sizes = [1, 128], strides = [1, 1]} : vector<9x128xf32> to vector<1x128xf32>
    %3 = vector.extract_strided_slice %0 {offsets = [2, 0], sizes = [1, 128], strides = [1, 1]} : vector<9x128xf32> to vector<1x128xf32>
    %4 = vector.extract_strided_slice %0 {offsets = [3, 0], sizes = [1, 128], strides = [1, 1]} : vector<9x128xf32> to vector<1x128xf32>
    %5 = vector.extract_strided_slice %0 {offsets = [4, 0], sizes = [1, 128], strides = [1, 1]} : vector<9x128xf32> to vector<1x128xf32>
    %6 = vector.extract_strided_slice %0 {offsets = [5, 0], sizes = [1, 128], strides = [1, 1]} : vector<9x128xf32> to vector<1x128xf32>
    %7 = vector.extract_strided_slice %0 {offsets = [6, 0], sizes = [1, 128], strides = [1, 1]} : vector<9x128xf32> to vector<1x128xf32>
    %8 = vector.extract_strided_slice %0 {offsets = [7, 0], sizes = [1, 128], strides = [1, 1]} : vector<9x128xf32> to vector<1x128xf32>
    %9 = vector.extract_strided_slice %0 {offsets = [8, 0], sizes = [1, 128], strides = [1, 1]} : vector<9x128xf32> to vector<1x128xf32>
    %c0_1 = arith.constant 0 : index
    %c0_2 = arith.constant 0 : index
    %c0_3 = arith.constant 0 : index
    %10 = vector.load %arg1[%c0_1, %c0_2, %c0_3] : memref<8x8x128xf32, #tpu.memory_space<vmem>>, vector<8x8x128xf32>
    %11 = vector.shape_cast %10 : vector<8x8x128xf32> to vector<64x128xf32>
    %12 = arith.truncf %11 : vector<64x128xf32> to vector<64x128xbf16>
    %c0_4 = arith.constant 0 : index
    %c0_5 = arith.constant 0 : index
    %c0_6 = arith.constant 0 : index
    %13 = vector.load %arg2[%c0_4, %c0_5, %c0_6] : memref<8x8x128xf32, #tpu.memory_space<vmem>>, vector<8x8x128xf32>
    %14 = vector.shape_cast %13 : vector<8x8x128xf32> to vector<64x128xf32>
    %15 = arith.truncf %14 : vector<64x128xf32> to vector<64x128xbf16>
    %c0_7 = arith.constant 0 : index
    %c0_8 = arith.constant 0 : index
    %c0_9 = arith.constant 0 : index
    %16 = vector.load %arg3[%c0_7, %c0_8, %c0_9] : memref<8x8x128xf32, #tpu.memory_space<vmem>>, vector<8x8x128xf32>
    %17 = vector.shape_cast %16 : vector<8x8x128xf32> to vector<64x128xf32>
    %18 = arith.truncf %17 : vector<64x128xf32> to vector<64x128xbf16>
    %c0_10 = arith.constant 0 : index
    %c0_11 = arith.constant 0 : index
    %19 = vector.load %arg5[%c0_10, %c0_11] : memref<128x128xbf16, #tpu.memory_space<vmem>>, vector<128x128xbf16>
    %cst = arith.constant dense<0.000000e+00> : vector<64x128xf32>
    %20 = tpu.matmul %12, %19, %cst {dimension_numbers = #tpu.dot_dimension_numbers<[1], [0], [0], [1], [0, 0, 1, 1], [], []>} : vector<64x128xbf16>, vector<128x128xbf16>, vector<64x128xf32> -> vector<64x128xf32>
    %21 = vector.broadcast %1 : vector<1x128xf32> to vector<64x128xf32>
    %22 = arith.addf %20, %21 : vector<64x128xf32>
    %c0_12 = arith.constant 0 : index
    %c0_13 = arith.constant 0 : index
    %23 = vector.load %arg6[%c0_12, %c0_13] : memref<128x128xbf16, #tpu.memory_space<vmem>>, vector<128x128xbf16>
    %cst_14 = arith.constant dense<0.000000e+00> : vector<64x128xf32>
    %24 = tpu.matmul %15, %23, %cst_14 {dimension_numbers = #tpu.dot_dimension_numbers<[1], [0], [0], [1], [0, 0, 1, 1], [], []>} : vector<64x128xbf16>, vector<128x128xbf16>, vector<64x128xf32> -> vector<64x128xf32>
    %25 = vector.broadcast %2 : vector<1x128xf32> to vector<64x128xf32>
    %26 = arith.addf %24, %25 : vector<64x128xf32>
    %c0_15 = arith.constant 0 : index
    %c0_16 = arith.constant 0 : index
    %27 = vector.load %arg7[%c0_15, %c0_16] : memref<128x128xbf16, #tpu.memory_space<vmem>>, vector<128x128xbf16>
    %cst_17 = arith.constant dense<0.000000e+00> : vector<64x128xf32>
    %28 = tpu.matmul %18, %27, %cst_17 {dimension_numbers = #tpu.dot_dimension_numbers<[1], [0], [0], [1], [0, 0, 1, 1], [], []>} : vector<64x128xbf16>, vector<128x128xbf16>, vector<64x128xf32> -> vector<64x128xf32>
    %29 = vector.broadcast %3 : vector<1x128xf32> to vector<64x128xf32>
    %30 = arith.addf %28, %29 : vector<64x128xf32>
    %cst_18 = arith.constant 2.500000e-01 : f32
    %31 = vector.broadcast %cst_18 : f32 to vector<64x128xf32>
    %32 = arith.mulf %22, %31 : vector<64x128xf32>
    %33 = vector.shape_cast %32 : vector<64x128xf32> to vector<8x8x128xf32>
    %34 = arith.truncf %33 : vector<8x8x128xf32> to vector<8x8x128xbf16>
    %35 = vector.shape_cast %26 : vector<64x128xf32> to vector<8x8x128xf32>
    %36 = vector.shape_cast %30 : vector<64x128xf32> to vector<8x8x128xf32>
    %c0_19 = arith.constant 0 : index
    %c0_20 = arith.constant 0 : index
    %37 = vector.load %arg13[%c0_19, %c0_20] : memref<8x128xf32, #tpu.memory_space<vmem>>, vector<8x128xf32>
    %38 = vector.shape_cast %35 : vector<8x8x128xf32> to vector<8x1x8x128xf32>
    %39 = vector.shape_cast %37 : vector<8x128xf32> to vector<1x8x1x128xf32>
    %40 = vector.broadcast %38 : vector<8x1x8x128xf32> to vector<8x8x8x128xf32>
    %41 = vector.broadcast %39 : vector<1x8x1x128xf32> to vector<8x8x8x128xf32>
    %42 = arith.mulf %40, %41 : vector<8x8x8x128xf32>
    %43 = vector.shape_cast %42 : vector<8x8x8x128xf32> to vector<8x64x128xf32>
    %44 = arith.truncf %43 : vector<8x64x128xf32> to vector<8x64x128xbf16>
    %45 = vector.shape_cast %36 : vector<8x8x128xf32> to vector<8x1x8x128xf32>
    %46 = vector.shape_cast %37 : vector<8x128xf32> to vector<1x8x1x128xf32>
    %47 = vector.broadcast %45 : vector<8x1x8x128xf32> to vector<8x8x8x128xf32>
    %48 = vector.broadcast %46 : vector<1x8x1x128xf32> to vector<8x8x8x128xf32>
    %49 = arith.mulf %47, %48 : vector<8x8x8x128xf32>
    %50 = vector.shape_cast %49 : vector<8x8x8x128xf32> to vector<8x64x128xf32>
    %51 = arith.truncf %50 : vector<8x64x128xf32> to vector<8x64x128xbf16>
    "tpu.trace_start"() <{level = 10 : i32, message = "bqd,bnd->bqn"}> : () -> ()
    %cst_21 = arith.constant dense<0.000000e+00> : vector<8x8x64xf32>
    %52 = tpu.matmul %34, %44, %cst_21 {dimension_numbers = #tpu.dot_dimension_numbers<[2], [2], [1], [1], [0, 0, 0, 1, 1, 1], [0], [0]>} : vector<8x8x128xbf16>, vector<8x64x128xbf16>, vector<8x8x64xf32> -> vector<8x8x64xf32>
    "tpu.trace_stop"() : () -> ()
    %c0_22 = arith.constant 0 : index
    %c0_23 = arith.constant 0 : index
    %c0_24 = arith.constant 0 : index
    %53 = vector.load %arg4[%c0_22, %c0_23, %c0_24] : memref<8x1x64xf32, #tpu.memory_space<vmem>>, vector<8x1x64xf32>
    %54 = vector.broadcast %53 : vector<8x1x64xf32> to vector<8x8x64xf32>
    %55 = arith.addf %52, %54 : vector<8x8x64xf32>
    %cst_25 = arith.constant dense<0xFF800000> : vector<8x8xf32>
    %56 = vector.multi_reduction <maximumf>, %55, %cst_25 [2] : vector<8x8x64xf32> to vector<8x8xf32>
    %57 = vector.shape_cast %56 : vector<8x8xf32> to vector<8x8x1xf32>
    %58 = vector.broadcast %57 : vector<8x8x1xf32> to vector<8x8x64xf32>
    %59 = arith.subf %55, %58 : vector<8x8x64xf32>
    %60 = math.exp %59 : vector<8x8x64xf32>
    %61 = vector.shape_cast %60 : vector<8x8x64xf32> to vector<64x64xf32>
    %c0_26 = arith.constant 0 : index
    %c0_27 = arith.constant 0 : index
    %62 = vector.load %arg14[%c0_26, %c0_27] : memref<64x64xf32, #tpu.memory_space<vmem>>, vector<64x64xf32>
    %cst_28 = arith.constant dense<0.000000e+00> : vector<64x64xf32>
    %63 = tpu.matmul %61, %62, %cst_28 {dimension_numbers = #tpu.dot_dimension_numbers<[1], [0], [0], [1], [0, 0, 1, 1], [], []>} : vector<64x64xf32>, vector<64x64xf32>, vector<64x64xf32> -> vector<64x64xf32>
    %64 = vector.shape_cast %63 : vector<64x64xf32> to vector<8x8x64xf32>
    %cst_29 = arith.constant 1.000000e-30 : f32
    %65 = vector.broadcast %cst_29 : f32 to vector<8x8x64xf32>
    %66 = arith.maximumf %64, %65 : vector<8x8x64xf32>
    %67 = tpu.reciprocal %66 {approx = true} : vector<8x8x64xf32> -> vector<8x8x64xf32>
    %68 = arith.mulf %60, %67 : vector<8x8x64xf32>
    %69 = arith.truncf %68 : vector<8x8x64xf32> to vector<8x8x64xbf16>
    "tpu.trace_start"() <{level = 10 : i32, message = "bqn,bnd->bqd"}> : () -> ()
    %cst_30 = arith.constant dense<0.000000e+00> : vector<8x8x128xf32>
    %70 = tpu.matmul %69, %51, %cst_30 {dimension_numbers = #tpu.dot_dimension_numbers<[2], [1], [1], [2], [0, 0, 0, 1, 1, 2], [0], [0]>} : vector<8x8x64xbf16>, vector<8x64x128xbf16>, vector<8x8x128xf32> -> vector<8x8x128xf32>
    "tpu.trace_stop"() : () -> ()
    %71 = vector.shape_cast %70 : vector<8x8x128xf32> to vector<64x128xf32>
    %72 = arith.truncf %71 : vector<64x128xf32> to vector<64x128xbf16>
    %c0_31 = arith.constant 0 : index
    %c0_32 = arith.constant 0 : index
    %73 = vector.load %arg8[%c0_31, %c0_32] : memref<128x128xbf16, #tpu.memory_space<vmem>>, vector<128x128xbf16>
    %cst_33 = arith.constant dense<0.000000e+00> : vector<64x128xf32>
    %74 = tpu.matmul %72, %73, %cst_33 {dimension_numbers = #tpu.dot_dimension_numbers<[1], [0], [0], [1], [0, 0, 1, 1], [], []>} : vector<64x128xbf16>, vector<128x128xbf16>, vector<64x128xf32> -> vector<64x128xf32>
    %75 = vector.broadcast %4 : vector<1x128xf32> to vector<64x128xf32>
    %76 = arith.addf %74, %75 : vector<64x128xf32>
    %cst_34 = arith.constant dense<0.000000e+00> : vector<64xf32>
    %77 = vector.multi_reduction <add>, %76, %cst_34 [1] : vector<64x128xf32> to vector<64xf32>
    %78 = vector.shape_cast %77 : vector<64xf32> to vector<64x1xf32>
    %cst_35 = arith.constant 1.280000e+02 : f32
    %79 = vector.broadcast %cst_35 : f32 to vector<64x1xf32>
    %80 = arith.divf %78, %79 : vector<64x1xf32>
    %81 = vector.broadcast %80 : vector<64x1xf32> to vector<64x128xf32>
    %82 = arith.subf %76, %81 : vector<64x128xf32>
    %83 = arith.mulf %82, %82 : vector<64x128xf32>
    %cst_36 = arith.constant dense<0.000000e+00> : vector<64xf32>
    %84 = vector.multi_reduction <add>, %83, %cst_36 [1] : vector<64x128xf32> to vector<64xf32>
    %85 = vector.shape_cast %84 : vector<64xf32> to vector<64x1xf32>
    %cst_37 = arith.constant 1.280000e+02 : f32
    %86 = vector.broadcast %cst_37 : f32 to vector<64x1xf32>
    %87 = arith.divf %85, %86 : vector<64x1xf32>
    %88 = vector.broadcast %80 : vector<64x1xf32> to vector<64x128xf32>
    %89 = arith.subf %76, %88 : vector<64x128xf32>
    %cst_38 = arith.constant 9.99999974E-6 : f32
    %90 = vector.broadcast %cst_38 : f32 to vector<64x1xf32>
    %91 = arith.addf %87, %90 : vector<64x1xf32>
    %92 = math.rsqrt %91 : vector<64x1xf32>
    %93 = vector.broadcast %92 : vector<64x1xf32> to vector<64x128xf32>
    %94 = arith.mulf %89, %93 : vector<64x128xf32>
    %95 = vector.broadcast %5 : vector<1x128xf32> to vector<64x128xf32>
    %96 = arith.mulf %94, %95 : vector<64x128xf32>
    %97 = vector.broadcast %6 : vector<1x128xf32> to vector<64x128xf32>
    %98 = arith.addf %96, %97 : vector<64x128xf32>
    %99 = arith.truncf %98 : vector<64x128xf32> to vector<64x128xbf16>
    %c0_39 = arith.constant 0 : index
    %c0_40 = arith.constant 0 : index
    %100 = vector.load %arg9[%c0_39, %c0_40] : memref<128x512xbf16, #tpu.memory_space<vmem>>, vector<128x512xbf16>
    %cst_41 = arith.constant dense<0.000000e+00> : vector<64x512xf32>
    %101 = tpu.matmul %99, %100, %cst_41 {dimension_numbers = #tpu.dot_dimension_numbers<[1], [0], [0], [1], [0, 0, 1, 1], [], []>} : vector<64x128xbf16>, vector<128x512xbf16>, vector<64x512xf32> -> vector<64x512xf32>
    %c0_42 = arith.constant 0 : index
    %c0_43 = arith.constant 0 : index
    %102 = vector.load %arg12[%c0_42, %c0_43] : memref<1x512xf32, #tpu.memory_space<vmem>>, vector<1x512xf32>
    %103 = vector.broadcast %102 : vector<1x512xf32> to vector<64x512xf32>
    %104 = arith.addf %101, %103 : vector<64x512xf32>
    %cst_44 = arith.constant 5.000000e-01 : f32
    %105 = vector.broadcast %cst_44 : f32 to vector<64x512xf32>
    %106 = arith.mulf %105, %104 : vector<64x512xf32>
    %cst_45 = arith.constant 0.707106769 : f32
    %107 = vector.broadcast %cst_45 : f32 to vector<64x512xf32>
    %108 = arith.mulf %104, %107 : vector<64x512xf32>
    %109 = math.erf %108 : vector<64x512xf32>
    %cst_46 = arith.constant 1.000000e+00 : f32
    %110 = vector.broadcast %cst_46 : f32 to vector<64x512xf32>
    %111 = arith.addf %110, %109 : vector<64x512xf32>
    %112 = arith.mulf %106, %111 : vector<64x512xf32>
    %113 = arith.truncf %112 : vector<64x512xf32> to vector<64x512xbf16>
    %c0_47 = arith.constant 0 : index
    %c0_48 = arith.constant 0 : index
    %114 = vector.load %arg10[%c0_47, %c0_48] : memref<512x128xbf16, #tpu.memory_space<vmem>>, vector<512x128xbf16>
    %cst_49 = arith.constant dense<0.000000e+00> : vector<64x128xf32>
    %115 = tpu.matmul %113, %114, %cst_49 {dimension_numbers = #tpu.dot_dimension_numbers<[1], [0], [0], [1], [0, 0, 1, 1], [], []>} : vector<64x512xbf16>, vector<512x128xbf16>, vector<64x128xf32> -> vector<64x128xf32>
    %116 = vector.broadcast %9 : vector<1x128xf32> to vector<64x128xf32>
    %117 = arith.addf %115, %116 : vector<64x128xf32>
    %118 = arith.addf %117, %98 : vector<64x128xf32>
    %cst_50 = arith.constant dense<0.000000e+00> : vector<64xf32>
    %119 = vector.multi_reduction <add>, %118, %cst_50 [1] : vector<64x128xf32> to vector<64xf32>
    %120 = vector.shape_cast %119 : vector<64xf32> to vector<64x1xf32>
    %cst_51 = arith.constant 1.280000e+02 : f32
    %121 = vector.broadcast %cst_51 : f32 to vector<64x1xf32>
    %122 = arith.divf %120, %121 : vector<64x1xf32>
    %123 = vector.broadcast %122 : vector<64x1xf32> to vector<64x128xf32>
    %124 = arith.subf %118, %123 : vector<64x128xf32>
    %125 = arith.mulf %124, %124 : vector<64x128xf32>
    %cst_52 = arith.constant dense<0.000000e+00> : vector<64xf32>
    %126 = vector.multi_reduction <add>, %125, %cst_52 [1] : vector<64x128xf32> to vector<64xf32>
    %127 = vector.shape_cast %126 : vector<64xf32> to vector<64x1xf32>
    %cst_53 = arith.constant 1.280000e+02 : f32
    %128 = vector.broadcast %cst_53 : f32 to vector<64x1xf32>
    %129 = arith.divf %127, %128 : vector<64x1xf32>
    %130 = vector.broadcast %122 : vector<64x1xf32> to vector<64x128xf32>
    %131 = arith.subf %118, %130 : vector<64x128xf32>
    %cst_54 = arith.constant 9.99999974E-6 : f32
    %132 = vector.broadcast %cst_54 : f32 to vector<64x1xf32>
    %133 = arith.addf %129, %132 : vector<64x1xf32>
    %134 = math.rsqrt %133 : vector<64x1xf32>
    %135 = vector.broadcast %134 : vector<64x1xf32> to vector<64x128xf32>
    %136 = arith.mulf %131, %135 : vector<64x128xf32>
    %137 = vector.broadcast %7 : vector<1x128xf32> to vector<64x128xf32>
    %138 = arith.mulf %136, %137 : vector<64x128xf32>
    %139 = vector.broadcast %8 : vector<1x128xf32> to vector<64x128xf32>
    %140 = arith.addf %138, %139 : vector<64x128xf32>
    %141 = vector.shape_cast %140 : vector<64x128xf32> to vector<8x8x128xf32>
    %c0_55 = arith.constant 0 : index
    %c0_56 = arith.constant 0 : index
    %c0_57 = arith.constant 0 : index
    %142 = vector.load %arg15[%c0_55, %c0_56, %c0_57] : memref<8x8x128xf32, #tpu.memory_space<vmem>>, vector<8x8x128xf32>
    tpu.vector_store %arg15[%c0_55, %c0_56, %c0_57], %141 {strides = array<i32>} : memref<8x8x128xf32, #tpu.memory_space<vmem>>, vector<8x8x128xf32>,
    return
  }
  func.func @transform_0(%arg0: i32) -> (i32, i32, i32) {
    %c0_i32 = arith.constant 0 : i32
    %c0_i32_0 = arith.constant 0 : i32
    %c0_i32_1 = arith.constant 0 : i32
    return %arg0, %c0_i32, %c0_i32_0 : i32, i32, i32
  }
  func.func @transform_1(%arg0: i32) -> (i32, i32, i32) {
    %c0_i32 = arith.constant 0 : i32
    %c0_i32_0 = arith.constant 0 : i32
    %c0_i32_1 = arith.constant 0 : i32
    return %arg0, %c0_i32, %c0_i32_0 : i32, i32, i32
  }
  func.func @transform_2(%arg0: i32) -> (i32, i32, i32) {
    %c0_i32 = arith.constant 0 : i32
    %c0_i32_0 = arith.constant 0 : i32
    %c0_i32_1 = arith.constant 0 : i32
    return %arg0, %c0_i32, %c0_i32_0 : i32, i32, i32
  }
  func.func @transform_3(%arg0: i32) -> (i32, i32, i32) {
    %c0_i32 = arith.constant 0 : i32
    %c0_i32_0 = arith.constant 0 : i32
    %c0_i32_1 = arith.constant 0 : i32
    return %arg0, %c0_i32, %c0_i32_0 : i32, i32, i32
  }
  func.func @transform_4(%arg0: i32) -> (i32, i32) {
    %c0_i32 = arith.constant 0 : i32
    %c0_i32_0 = arith.constant 0 : i32
    %c0_i32_1 = arith.constant 0 : i32
    return %c0_i32, %c0_i32_0 : i32, i32
  }
  func.func @transform_5(%arg0: i32) -> (i32, i32) {
    %c0_i32 = arith.constant 0 : i32
    %c0_i32_0 = arith.constant 0 : i32
    %c0_i32_1 = arith.constant 0 : i32
    return %c0_i32, %c0_i32_0 : i32, i32
  }
  func.func @transform_6(%arg0: i32) -> (i32, i32) {
    %c0_i32 = arith.constant 0 : i32
    %c0_i32_0 = arith.constant 0 : i32
    %c0_i32_1 = arith.constant 0 : i32
    return %c0_i32, %c0_i32_0 : i32, i32
  }
  func.func @transform_7(%arg0: i32) -> (i32, i32) {
    %c0_i32 = arith.constant 0 : i32
    %c0_i32_0 = arith.constant 0 : i32
    %c0_i32_1 = arith.constant 0 : i32
    return %c0_i32, %c0_i32_0 : i32, i32
  }
  func.func @transform_8(%arg0: i32) -> (i32, i32) {
    %c0_i32 = arith.constant 0 : i32
    %c0_i32_0 = arith.constant 0 : i32
    %c0_i32_1 = arith.constant 0 : i32
    return %c0_i32, %c0_i32_0 : i32, i32
  }
  func.func @transform_9(%arg0: i32) -> (i32, i32) {
    %c0_i32 = arith.constant 0 : i32
    %c0_i32_0 = arith.constant 0 : i32
    %c0_i32_1 = arith.constant 0 : i32
    return %c0_i32, %c0_i32_0 : i32, i32
  }
  func.func @transform_10(%arg0: i32) -> (i32, i32) {
    %c0_i32 = arith.constant 0 : i32
    %c0_i32_0 = arith.constant 0 : i32
    %c0_i32_1 = arith.constant 0 : i32
    return %c0_i32, %c0_i32_0 : i32, i32
  }
  func.func @transform_11(%arg0: i32) -> (i32, i32) {
    %c0_i32 = arith.constant 0 : i32
    %c0_i32_0 = arith.constant 0 : i32
    %c0_i32_1 = arith.constant 0 : i32
    return %c0_i32, %c0_i32_0 : i32, i32
  }
  func.func @transform_12(%arg0: i32) -> (i32, i32) {
    %c0_i32 = arith.constant 0 : i32
    %c0_i32_0 = arith.constant 0 : i32
    %c0_i32_1 = arith.constant 0 : i32
    return %c0_i32, %c0_i32_0 : i32, i32
  }
  func.func @transform_13(%arg0: i32) -> (i32, i32) {
    %c0_i32 = arith.constant 0 : i32
    %c0_i32_0 = arith.constant 0 : i32
    %c0_i32_1 = arith.constant 0 : i32
    return %c0_i32, %c0_i32_0 : i32, i32
  }
  func.func @transform_14(%arg0: i32) -> (i32, i32, i32) {
    %c0_i32 = arith.constant 0 : i32
    %c0_i32_0 = arith.constant 0 : i32
    %c0_i32_1 = arith.constant 0 : i32
    return %arg0, %c0_i32, %c0_i32_0 : i32, i32, i32
  }
}

</mosaic_0001>

<llo_original>
// kernel: tpu_custom_call.1
$region0: #{tpu_custom_call.1}
  #allocation0 [shape = 'u32[]', space=smem, size = 0x4, offset = 0x4, fixed_abs, tag = 'smem constant byte address 0x4 - core index']
  #allocation1 [shape = 'u32[144,128]{1,0:T(1,128)}', space=vmem, size = 0x12000, scoped, tag = 'internal scratch']
  %s0 = inlined_call_operand.hbm [shape: f32[16,8,128], index: 0, kind: input, shape index: {}]
  %s1 = inlined_call_operand.hbm [shape: f32[16,8,128], index: 1, kind: input, shape index: {}]
  %s2 = inlined_call_operand.hbm [shape: f32[16,8,128], index: 2, kind: input, shape index: {}]
  %s3 = inlined_call_operand.hbm [shape: f32[16,1,64], index: 3, kind: input, shape index: {}]
  %s4 = inlined_call_operand.hbm [shape: bf16[128,128], index: 4, kind: input, shape index: {}]
  %s5 = inlined_call_operand.hbm [shape: bf16[128,128], index: 5, kind: input, shape index: {}]
  %s6 = inlined_call_operand.hbm [shape: bf16[128,128], index: 6, kind: input, shape index: {}]
  %s7 = inlined_call_operand.hbm [shape: bf16[128,128], index: 7, kind: input, shape index: {}]
  %s8 = inlined_call_operand.hbm [shape: bf16[128,512], index: 8, kind: input, shape index: {}]
  %s9 = inlined_call_operand.hbm [shape: bf16[512,128], index: 9, kind: input, shape index: {}]
  %s10 = inlined_call_operand.vmem [shape: f32[9,128], index: 10, kind: input, shape index: {}]
  %s11 = inlined_call_operand.vmem [shape: f32[1,512], index: 11, kind: input, shape index: {}]
  %s12 = inlined_call_operand.hbm [shape: f32[8,128], index: 12, kind: input, shape index: {}]
  %s13 = inlined_call_operand.hbm [shape: f32[64,64], index: 13, kind: input, shape index: {}]
  %s14 = inlined_call_operand.hbm [shape: f32[16,8,128], index: 14, kind: output, shape index: {}]
  %s15 = sld [smem:[#allocation0]]
  $region137: #{tpu_custom_call.1} parent=0
    _
  %s17 = ssub.s32 1, %s15
  %s18 = scalar_select 0, %s17, %s15
  $region1: #{tpu_custom_call.1} parent=0
    #allocation2 [shape = 'u8[65536]{0}', space=vmem, size = 0x10000, scoped, tag = 'input window, operand 0']
    #allocation3 [shape = 's32[2]{0}', space=sflag, size = 0x8, scoped, tag = 'scoped memory for tpu_custom_call.1']
    #allocation4 [shape = 's32[2]{0}', space=sflag, size = 0x8, scoped, tag = 'scoped memory for tpu_custom_call.1']
    #allocation5 [shape = 'u8[65536]{0}', space=vmem, size = 0x10000, scoped, tag = 'input window, operand 1']
    #allocation6 [shape = 's32[2]{0}', space=sflag, size = 0x8, scoped, tag = 'scoped memory for tpu_custom_call.1']
    #allocation7 [shape = 'u8[65536]{0}', space=vmem, size = 0x10000, scoped, tag = 'input window, operand 2']
    #allocation8 [shape = 'u8[8192]{0}', space=vmem, size = 0x2000, scoped, tag = 'input window, operand 3']
    #allocation9 [shape = 's32[2]{0}', space=sflag, size = 0x8, scoped, tag = 'scoped memory for tpu_custom_call.1']
    #allocation10 [shape = 'u8[32768]{0}', space=vmem, size = 0x8000, scoped, tag = 'input window, operand 4, single buffered']
    #allocation11 [shape = 'u8[32768]{0}', space=vmem, size = 0x8000, scoped, tag = 'input window, operand 5, single buffered']
    #allocation12 [shape = 's32[1]{0}', space=sflag, size = 0x4, scoped, tag = 'scoped memory for tpu_custom_call.1']
    #allocation13 [shape = 'u8[32768]{0}', space=vmem, size = 0x8000, scoped, tag = 'input window, operand 6, single buffered']
    #allocation14 [shape = 'u8[32768]{0}', space=vmem, size = 0x8000, scoped, tag = 'input window, operand 7, single buffered']
    #allocation15 [shape = 's32[1]{0}', space=sflag, size = 0x4, scoped, tag = 'scoped memory for tpu_custom_call.1']
    #allocation16 [shape = 'u8[131072]{0}', space=vmem, size = 0x20000, scoped, tag = 'input window, operand 8, single buffered']
    #allocation17 [shape = 'u8[131072]{0}', space=vmem, size = 0x20000, scoped, tag = 'input window, operand 9, single buffered']
    #allocation18 [shape = 's32[1]{0}', space=sflag, size = 0x4, scoped, tag = 'scoped memory for tpu_custom_call.1']
    #allocation19 [shape = 'u8[4096]{0}', space=vmem, size = 0x1000, scoped, tag = 'input window, operand 12, single buffered']
    #allocation20 [shape = 'u8[32768]{0}', space=vmem, size = 0x8000, scoped, tag = 'input window, operand 13, single buffered']
    #allocation21 [shape = 's32[1]{0}', space=sflag, size = 0x4, scoped, tag = 'scoped memory for tpu_custom_call.1']
    #allocation22 [shape = 'u8[65536]{0}', space=vmem, size = 0x10000, scoped, tag = 'output window, operand 0']
    %19 = vsyncpa [#allocation3], 0
    %s20 = scalar_lea.sflag [#allocation3], 1
    %21 = vsyncpa %s20, 0
    %22 = vsyncpa [#allocation6], 0
    %s23 = scalar_lea.sflag [#allocation6], 1
    %24 = vsyncpa %s23, 0
    %25 = vsyncpa [#allocation9], 0
    %s26 = scalar_lea.sflag [#allocation9], 1
    %27 = vsyncpa %s26, 0
    %28 = vsyncpa [#allocation12], 0
    %29 = vsyncpa [#allocation15], 0
    %30 = vsyncpa [#allocation18], 0
    %31 = vsyncpa [#allocation21], 0
    %32 = vsyncpa [#allocation4], 0
    %s33 = scalar_lea.sflag [#allocation4], 1
    %34 = vsyncpa %s33, 0
    loop: start=0, step=1, limit=4
    $region2: #{tpu_custom_call.1} parent=1 // loop_pre_header
      _
    $region3: #{tpu_custom_call.1} parent=1 // loop_header
      %s36 = sphi 0, %s40
      %p37 = scmp.ge.s32.totalorder %s36, 4
      %s46 = sphi 0, %s48
      %s49 = sphi 0, %s46
      %s50 = sphi 0, %s49
      %s66 = sphi 0, %s50
      %s72 = sphi 0, %s74
      %s75 = sphi 0, %s72
      %s76 = sphi 0, %s75
      %s92 = sphi 0, %s76
      %s98 = sphi 0, %s100
      %s101 = sphi 0, %s98
      %s102 = sphi 0, %s101
      %s118 = sphi 0, %s102
      %s124 = sphi 0, %s126
      %s127 = sphi 0, %s124
      %s128 = sphi 0, %s127
      %s144 = sphi 0, %s128
      %s148 = sphi 0, %s148
      %s150 = sphi 0, %s148
      %s151 = sphi 0, %s150
      %s165 = sphi 0, %s151
      %s169 = sphi 0, %s169
      %s171 = sphi 0, %s169
      %s172 = sphi 0, %s171
      %s186 = sphi 0, %s172
      %s190 = sphi 0, %s190
      %s192 = sphi 0, %s190
      %s193 = sphi 0, %s192
      %s207 = sphi 0, %s193
      %s211 = sphi 0, %s211
      %s213 = sphi 0, %s211
      %s214 = sphi 0, %s213
      %s228 = sphi 0, %s214
      %s232 = sphi 0, %s232
      %s234 = sphi 0, %s232
      %s235 = sphi 0, %s234
      %s249 = sphi 0, %s235
      %s253 = sphi 0, %s253
      %s255 = sphi 0, %s253
      %s256 = sphi 0, %s255
      %s270 = sphi 0, %s256
      %s274 = sphi 0, %s274
      %s276 = sphi 0, %s274
      %s277 = sphi 0, %s276
      %s291 = sphi 0, %s277
      %s295 = sphi 0, %s295
      %s297 = sphi 0, %s295
      %s298 = sphi 0, %s297
      %s312 = sphi 0, %s298
      %s316 = sphi 0, %s316
      %s318 = sphi 0, %s316
      %s319 = sphi 0, %s318
      %s333 = sphi 0, %s319
      %s337 = sphi 0, %s337
      %s339 = sphi 0, %s337
      %s340 = sphi 0, %s339
      %s354 = sphi 0, %s340
      %s360 = sphi 0, %s362
      %s363 = sphi 0, %s360
      %s364 = sphi 0, %s363
      %s380 = sphi 0, %s364
    $region4: #{tpu_custom_call.1} parent=1 // loop_header_branch
      %39 = sbr.rel (%p37) target = $region8
    $region5: #{tpu_custom_call.1} parent=1 // loop_body
      %s41 = ssub.s32 %s36, 1
      %s42 = ssub.s32 %s36, 2
      %s43 = sadd.s32 %s36, 1
      %s44 = ssub.s32 %s36, %s43
      %p45 = scmp.eq.s32.totalorder %s44, 0
      %s47 = sadd.s32 %s46, 1
      %s48 = scalar_select %p45, %s46, %s47
      %p51 = pneg %p45
      %p52 = scmp.eq.s32.totalorder %s36, 1
      %p53 = por %p51, %p52
      %p54 = scmp.ne.s32.totalorder %s46, %s49
      %p55 = scmp.eq.s32.totalorder %s36, 0
      %p56 = por %p54, %p55
      %p57 = scmp.ne.s32.totalorder %s46, %s49
      %p58 = scmp.eq.s32.totalorder %s41, 1
      %p59 = por %p57, %p58
      %p60 = scmp.ne.s32.totalorder %s49, %s50
      %p61 = scmp.eq.s32.totalorder %s41, 0
      %p62 = por %p60, %p61
      %p63 = scmp.ne.s32.totalorder %s49, %s50
      %p64 = scmp.eq.s32.totalorder %s42, 1
      %p65 = por %p63, %p64
      %p67 = scmp.ne.s32.totalorder %s50, %s66
      %p68 = scmp.eq.s32.totalorder %s42, 0
      %p69 = por %p67, %p68
      %s70 = ssub.s32 %s36, %s43
      %p71 = scmp.eq.s32.totalorder %s70, 0
      %s73 = sadd.s32 %s72, 1
      %s74 = scalar_select %p71, %s72, %s73
      %p77 = pneg %p71
      %p78 = scmp.eq.s32.totalorder %s36, 1
      %p79 = por %p77, %p78
      %p80 = scmp.ne.s32.totalorder %s72, %s75
      %p81 = scmp.eq.s32.totalorder %s36, 0
      %p82 = por %p80, %p81
      %p83 = scmp.ne.s32.totalorder %s72, %s75
      %p84 = scmp.eq.s32.totalorder %s41, 1
      %p85 = por %p83, %p84
      %p86 = scmp.ne.s32.totalorder %s75, %s76
      %p87 = scmp.eq.s32.totalorder %s41, 0
      %p88 = por %p86, %p87
      %p89 = scmp.ne.s32.totalorder %s75, %s76
      %p90 = scmp.eq.s32.totalorder %s42, 1
      %p91 = por %p89, %p90
      %p93 = scmp.ne.s32.totalorder %s76, %s92
      %p94 = scmp.eq.s32.totalorder %s42, 0
      %p95 = por %p93, %p94
      %s96 = ssub.s32 %s36, %s43
      %p97 = scmp.eq.s32.totalorder %s96, 0
      %s99 = sadd.s32 %s98, 1
      %s100 = scalar_select %p97, %s98, %s99
      %p103 = pneg %p97
      %p104 = scmp.eq.s32.totalorder %s36, 1
      %p105 = por %p103, %p104
      %p106 = scmp.ne.s32.totalorder %s98, %s101
      %p107 = scmp.eq.s32.totalorder %s36, 0
      %p108 = por %p106, %p107
      %p109 = scmp.ne.s32.totalorder %s98, %s101
      %p110 = scmp.eq.s32.totalorder %s41, 1
      %p111 = por %p109, %p110
      %p112 = scmp.ne.s32.totalorder %s101, %s102
      %p113 = scmp.eq.s32.totalorder %s41, 0
      %p114 = por %p112, %p113
      %p115 = scmp.ne.s32.totalorder %s101, %s102
      %p116 = scmp.eq.s32.totalorder %s42, 1
      %p117 = por %p115, %p116
      %p119 = scmp.ne.s32.totalorder %s102, %s118
      %p120 = scmp.eq.s32.totalorder %s42, 0
      %p121 = por %p119, %p120
      %s122 = ssub.s32 %s36, %s43
      %p123 = scmp.eq.s32.totalorder %s122, 0
      %s125 = sadd.s32 %s124, 1
      %s126 = scalar_select %p123, %s124, %s125
      %p129 = pneg %p123
      %p130 = scmp.eq.s32.totalorder %s36, 1
      %p131 = por %p129, %p130
      %p132 = scmp.ne.s32.totalorder %s124, %s127
      %p133 = scmp.eq.s32.totalorder %s36, 0
      %p134 = por %p132, %p133
      %p135 = scmp.ne.s32.totalorder %s124, %s127
      %p136 = scmp.eq.s32.totalorder %s41, 1
      %p137 = por %p135, %p136
      %p138 = scmp.ne.s32.totalorder %s127, %s128
      %p139 = scmp.eq.s32.totalorder %s41, 0
      %p140 = por %p138, %p139
      %p141 = scmp.ne.s32.totalorder %s127, %s128
      %p142 = scmp.eq.s32.totalorder %s42, 1
      %p143 = por %p141, %p142
      %p145 = scmp.ne.s32.totalorder %s128, %s144
      %p146 = scmp.eq.s32.totalorder %s42, 0
      %p147 = por %p145, %p146
      %s149 = sadd.s32 %s148, 1
      %p152 = scmp.eq.s32.totalorder %s36, 1
      %p153 = scmp.ne.s32.totalorder %s148, %s150
      %p154 = scmp.eq.s32.totalorder %s36, 0
      %p155 = por %p153, %p154
      %p156 = scmp.ne.s32.totalorder %s148, %s150
      %p157 = scmp.eq.s32.totalorder %s41, 1
      %p158 = por %p156, %p157
      %p159 = scmp.ne.s32.totalorder %s150, %s151
      %p160 = scmp.eq.s32.totalorder %s41, 0
      %p161 = por %p159, %p160
      %p162 = scmp.ne.s32.totalorder %s150, %s151
      %p163 = scmp.eq.s32.totalorder %s42, 1
      %p164 = por %p162, %p163
      %p166 = scmp.ne.s32.totalorder %s151, %s165
      %p167 = scmp.eq.s32.totalorder %s42, 0
      %p168 = por %p166, %p167
      %s170 = sadd.s32 %s169, 1
      %p173 = scmp.eq.s32.totalorder %s36, 1
      %p174 = scmp.ne.s32.totalorder %s169, %s171
      %p175 = scmp.eq.s32.totalorder %s36, 0
      %p176 = por %p174, %p175
      %p177 = scmp.ne.s32.totalorder %s169, %s171
      %p178 = scmp.eq.s32.totalorder %s41, 1
      %p179 = por %p177, %p178
      %p180 = scmp.ne.s32.totalorder %s171, %s172
      %p181 = scmp.eq.s32.totalorder %s41, 0
      %p182 = por %p180, %p181
      %p183 = scmp.ne.s32.totalorder %s171, %s172
      %p184 = scmp.eq.s32.totalorder %s42, 1
      %p185 = por %p183, %p184
      %p187 = scmp.ne.s32.totalorder %s172, %s186
      %p188 = scmp.eq.s32.totalorder %s42, 0
      %p189 = por %p187, %p188
      %s191 = sadd.s32 %s190, 1
      %p194 = scmp.eq.s32.totalorder %s36, 1
      %p195 = scmp.ne.s32.totalorder %s190, %s192
      %p196 = scmp.eq.s32.totalorder %s36, 0
      %p197 = por %p195, %p196
      %p198 = scmp.ne.s32.totalorder %s190, %s192
      %p199 = scmp.eq.s32.totalorder %s41, 1
      %p200 = por %p198, %p199
      %p201 = scmp.ne.s32.totalorder %s192, %s193
      %p202 = scmp.eq.s32.totalorder %s41, 0
      %p203 = por %p201, %p202
      %p204 = scmp.ne.s32.totalorder %s192, %s193
      %p205 = scmp.eq.s32.totalorder %s42, 1
      %p206 = por %p204, %p205
      %p208 = scmp.ne.s32.totalorder %s193, %s207
      %p209 = scmp.eq.s32.totalorder %s42, 0
      %p210 = por %p208, %p209
      %s212 = sadd.s32 %s211, 1
      %p215 = scmp.eq.s32.totalorder %s36, 1
      %p216 = scmp.ne.s32.totalorder %s211, %s213
      %p217 = scmp.eq.s32.totalorder %s36, 0
      %p218 = por %p216, %p217
      %p219 = scmp.ne.s32.totalorder %s211, %s213
      %p220 = scmp.eq.s32.totalorder %s41, 1
      %p221 = por %p219, %p220
      %p222 = scmp.ne.s32.totalorder %s213, %s214
      %p223 = scmp.eq.s32.totalorder %s41, 0
      %p224 = por %p222, %p223
      %p225 = scmp.ne.s32.totalorder %s213, %s214
      %p226 = scmp.eq.s32.totalorder %s42, 1
      %p227 = por %p225, %p226
      %p229 = scmp.ne.s32.totalorder %s214, %s228
      %p230 = scmp.eq.s32.totalorder %s42, 0
      %p231 = por %p229, %p230
      %s233 = sadd.s32 %s232, 1
      %p236 = scmp.eq.s32.totalorder %s36, 1
      %p237 = scmp.ne.s32.totalorder %s232, %s234
      %p238 = scmp.eq.s32.totalorder %s36, 0
      %p239 = por %p237, %p238
      %p240 = scmp.ne.s32.totalorder %s232, %s234
      %p241 = scmp.eq.s32.totalorder %s41, 1
      %p242 = por %p240, %p241
      %p243 = scmp.ne.s32.totalorder %s234, %s235
      %p244 = scmp.eq.s32.totalorder %s41, 0
      %p245 = por %p243, %p244
      %p246 = scmp.ne.s32.totalorder %s234, %s235
      %p247 = scmp.eq.s32.totalorder %s42, 1
      %p248 = por %p246, %p247
      %p250 = scmp.ne.s32.totalorder %s235, %s249
      %p251 = scmp.eq.s32.totalorder %s42, 0
      %p252 = por %p250, %p251
      %s254 = sadd.s32 %s253, 1
      %p257 = scmp.eq.s32.totalorder %s36, 1
      %p258 = scmp.ne.s32.totalorder %s253, %s255
      %p259 = scmp.eq.s32.totalorder %s36, 0
      %p260 = por %p258, %p259
      %p261 = scmp.ne.s32.totalorder %s253, %s255
      %p262 = scmp.eq.s32.totalorder %s41, 1
      %p263 = por %p261, %p262
      %p264 = scmp.ne.s32.totalorder %s255, %s256
      %p265 = scmp.eq.s32.totalorder %s41, 0
      %p266 = por %p264, %p265
      %p267 = scmp.ne.s32.totalorder %s255, %s256
      %p268 = scmp.eq.s32.totalorder %s42, 1
      %p269 = por %p267, %p268
      %p271 = scmp.ne.s32.totalorder %s256, %s270
      %p272 = scmp.eq.s32.totalorder %s42, 0
      %p273 = por %p271, %p272
      %s275 = sadd.s32 %s274, 1
      %p278 = scmp.eq.s32.totalorder %s36, 1
      %p279 = scmp.ne.s32.totalorder %s274, %s276
      %p280 = scmp.eq.s32.totalorder %s36, 0
      %p281 = por %p279, %p280
      %p282 = scmp.ne.s32.totalorder %s274, %s276
      %p283 = scmp.eq.s32.totalorder %s41, 1
      %p284 = por %p282, %p283
      %p285 = scmp.ne.s32.totalorder %s276, %s277
      %p286 = scmp.eq.s32.totalorder %s41, 0
      %p287 = por %p285, %p286
      %p288 = scmp.ne.s32.totalorder %s276, %s277
      %p289 = scmp.eq.s32.totalorder %s42, 1
      %p290 = por %p288, %p289
      %p292 = scmp.ne.s32.totalorder %s277, %s291
      %p293 = scmp.eq.s32.totalorder %s42, 0
      %p294 = por %p292, %p293
      %s296 = sadd.s32 %s295, 1
      %p299 = scmp.eq.s32.totalorder %s36, 1
      %p300 = scmp.ne.s32.totalorder %s295, %s297
      %p301 = scmp.eq.s32.totalorder %s36, 0
      %p302 = por %p300, %p301
      %p303 = scmp.ne.s32.totalorder %s295, %s297
      %p304 = scmp.eq.s32.totalorder %s41, 1
      %p305 = por %p303, %p304
      %p306 = scmp.ne.s32.totalorder %s297, %s298
      %p307 = scmp.eq.s32.totalorder %s41, 0
      %p308 = por %p306, %p307
      %p309 = scmp.ne.s32.totalorder %s297, %s298
      %p310 = scmp.eq.s32.totalorder %s42, 1
      %p311 = por %p309, %p310
      %p313 = scmp.ne.s32.totalorder %s298, %s312
      %p314 = scmp.eq.s32.totalorder %s42, 0
      %p315 = por %p313, %p314
      %s317 = sadd.s32 %s316, 1
      %p320 = scmp.eq.s32.totalorder %s36, 1
      %p321 = scmp.ne.s32.totalorder %s316, %s318
      %p322 = scmp.eq.s32.totalorder %s36, 0
      %p323 = por %p321, %p322
      %p324 = scmp.ne.s32.totalorder %s316, %s318
      %p325 = scmp.eq.s32.totalorder %s41, 1
      %p326 = por %p324, %p325
      %p327 = scmp.ne.s32.totalorder %s318, %s319
      %p328 = scmp.eq.s32.totalorder %s41, 0
      %p329 = por %p327, %p328
      %p330 = scmp.ne.s32.totalorder %s318, %s319
      %p331 = scmp.eq.s32.totalorder %s42, 1
      %p332 = por %p330, %p331
      %p334 = scmp.ne.s32.totalorder %s319, %s333
      %p335 = scmp.eq.s32.totalorder %s42, 0
      %p336 = por %p334, %p335
      %s338 = sadd.s32 %s337, 1
      %p341 = scmp.eq.s32.totalorder %s36, 1
      %p342 = scmp.ne.s32.totalorder %s337, %s339
      %p343 = scmp.eq.s32.totalorder %s36, 0
      %p344 = por %p342, %p343
      %p345 = scmp.ne.s32.totalorder %s337, %s339
      %p346 = scmp.eq.s32.totalorder %s41, 1
      %p347 = por %p345, %p346
      %p348 = scmp.ne.s32.totalorder %s339, %s340
      %p349 = scmp.eq.s32.totalorder %s41, 0
      %p350 = por %p348, %p349
      %p351 = scmp.ne.s32.totalorder %s339, %s340
      %p352 = scmp.eq.s32.totalorder %s42, 1
      %p353 = por %p351, %p352
      %p355 = scmp.ne.s32.totalorder %s340, %s354
      %p356 = scmp.eq.s32.totalorder %s42, 0
      %p357 = por %p355, %p356
      %s358 = ssub.s32 %s36, %s43
      %p359 = scmp.eq.s32.totalorder %s358, 0
      %s361 = sadd.s32 %s360, 1
      %s362 = scalar_select %p359, %s360, %s361
      %p365 = pneg %p359
      %p366 = scmp.eq.s32.totalorder %s36, 1
      %p367 = por %p365, %p366
      %p368 = scmp.ne.s32.totalorder %s360, %s363
      %p369 = scmp.eq.s32.totalorder %s36, 0
      %p370 = por %p368, %p369
      %p371 = scmp.ne.s32.totalorder %s360, %s363
      %p372 = scmp.eq.s32.totalorder %s41, 1
      %p373 = por %p371, %p372
      %p374 = scmp.ne.s32.totalorder %s363, %s364
      %p375 = scmp.eq.s32.totalorder %s41, 0
      %p376 = por %p374, %p375
      %p377 = scmp.ne.s32.totalorder %s363, %s364
      %p378 = scmp.eq.s32.totalorder %s42, 1
      %p379 = por %p377, %p378
      %p381 = scmp.ne.s32.totalorder %s364, %s380
      %p382 = scmp.eq.s32.totalorder %s42, 0
      %p383 = por %p381, %p382
      %p384 = scmp.le.s32.totalorder 1, %s36
      %p385 = scmp.lt.s32.totalorder %s36, 3
      %p386 = pnand %p384, %p385
      %p387 = pneg %p386
      // Predicated region
      $region9: #{tpu_custom_call.1} parent=5 // pred_check
        _
      $region10: #{tpu_custom_call.1} parent=5 // pred_check_branch
        %389 = sbr.rel (%p386) target = $region12
      $region11: #{tpu_custom_call.1} parent=5 // pred_region
        %s390 = ssub.s32 %s36, 1
        // Predicated region
        $region13: #{tpu_custom_call.1} parent=11 // pred_check
          %p391 = pneg %p161
        $region14: #{tpu_custom_call.1} parent=11 // pred_check_branch
          %393 = sbr.rel (%p391) target = $region16
        $region15: #{tpu_custom_call.1} parent=11 // pred_region
          %s395 = ssub.s32 1024, 1024
          %396 = vsyncadd [#allocation9], %s395
          %s397 = sshll.u32 [#allocation10], 4
          %s398 = int_to_ptr.vmem [resolvable:$true] %s397
          %403 = dma.hbm_to_vmem [thread:$0]  %s4, 1024, %s398, [#allocation9], 64, 64, 4
        $region16: #{tpu_custom_call.1} parent=11 // pred_fallthru
          _
        // Predicated region
        $region17: #{tpu_custom_call.1} parent=11 // pred_check
          %p404 = pneg %p182
        $region18: #{tpu_custom_call.1} parent=11 // pred_check_branch
          %406 = sbr.rel (%p404) target = $region20
        $region19: #{tpu_custom_call.1} parent=11 // pred_region
          %s408 = ssub.s32 1024, 1024
          %409 = vsyncadd [#allocation12], %s408
          %s410 = sshll.u32 [#allocation11], 4
          %s411 = int_to_ptr.vmem [resolvable:$true] %s410
          %416 = dma.hbm_to_vmem [thread:$0]  %s5, 1024, %s411, [#allocation12], 64, 64, 4
        $region20: #{tpu_custom_call.1} parent=11 // pred_fallthru
          _
        // Predicated region
        $region21: #{tpu_custom_call.1} parent=11 // pred_check
          %p417 = pneg %p203
        $region22: #{tpu_custom_call.1} parent=11 // pred_check_branch
          %419 = sbr.rel (%p417) target = $region24
        $region23: #{tpu_custom_call.1} parent=11 // pred_region
          %s421 = ssub.s32 1024, 1024
          %422 = vsyncadd [#allocation12], %s421
          %s423 = sshll.u32 [#allocation13], 4
          %s424 = int_to_ptr.vmem [resolvable:$true] %s423
          %429 = dma.hbm_to_vmem [thread:$0]  %s6, 1024, %s424, [#allocation12], 64, 64, 4
        $region24: #{tpu_custom_call.1} parent=11 // pred_fallthru
          _
        // Predicated region
        $region25: #{tpu_custom_call.1} parent=11 // pred_check
          %p430 = pneg %p224
        $region26: #{tpu_custom_call.1} parent=11 // pred_check_branch
          %432 = sbr.rel (%p430) target = $region28
        $region27: #{tpu_custom_call.1} parent=11 // pred_region
          %s434 = ssub.s32 1024, 1024
          %435 = vsyncadd [#allocation15], %s434
          %s436 = sshll.u32 [#allocation14], 4
          %s437 = int_to_ptr.vmem [resolvable:$true] %s436
          %442 = dma.hbm_to_vmem [thread:$0]  %s7, 1024, %s437, [#allocation15], 64, 64, 4
        $region28: #{tpu_custom_call.1} parent=11 // pred_fallthru
          _
        // Predicated region
        $region29: #{tpu_custom_call.1} parent=11 // pred_check
          %p443 = pneg %p245
        $region30: #{tpu_custom_call.1} parent=11 // pred_check_branch
          %445 = sbr.rel (%p443) target = $region32
        $region31: #{tpu_custom_call.1} parent=11 // pred_region
          %s447 = ssub.s32 4096, 4096
          %448 = vsyncadd [#allocation15], %s447
          %s449 = sshll.u32 [#allocation16], 4
          %s450 = int_to_ptr.vmem [resolvable:$true] %s449
          %455 = dma.hbm_to_vmem [thread:$0]  %s8, 4096, %s450, [#allocation15], 256, 256, 16
        $region32: #{tpu_custom_call.1} parent=11 // pred_fallthru
          _
        // Predicated region
        $region33: #{tpu_custom_call.1} parent=11 // pred_check
          %p456 = pneg %p266
        $region34: #{tpu_custom_call.1} parent=11 // pred_check_branch
          %458 = sbr.rel (%p456) target = $region36
        $region35: #{tpu_custom_call.1} parent=11 // pred_region
          %s460 = ssub.s32 4096, 4096
          %461 = vsyncadd [#allocation18], %s460
          %s462 = sshll.u32 [#allocation17], 4
          %s463 = int_to_ptr.vmem [resolvable:$true] %s462
          %468 = dma.hbm_to_vmem [thread:$0]  %s9, 4096, %s463, [#allocation18], 64, 64, 4
        $region36: #{tpu_custom_call.1} parent=11 // pred_fallthru
          _
        // Predicated region
        $region37: #{tpu_custom_call.1} parent=11 // pred_check
          %p469 = pneg %p287
        $region38: #{tpu_custom_call.1} parent=11 // pred_check_branch
          %471 = sbr.rel (%p469) target = $region40
        $region39: #{tpu_custom_call.1} parent=11 // pred_region
          _
        $region40: #{tpu_custom_call.1} parent=11 // pred_fallthru
          _
        // Predicated region
        $region41: #{tpu_custom_call.1} parent=11 // pred_check
          %p472 = pneg %p308
        $region42: #{tpu_custom_call.1} parent=11 // pred_check_branch
          %474 = sbr.rel (%p472) target = $region44
        $region43: #{tpu_custom_call.1} parent=11 // pred_region
          _
        $region44: #{tpu_custom_call.1} parent=11 // pred_fallthru
          _
        // Predicated region
        $region45: #{tpu_custom_call.1} parent=11 // pred_check
          %p475 = pneg %p329
        $region46: #{tpu_custom_call.1} parent=11 // pred_check_branch
          %477 = sbr.rel (%p475) target = $region48
        $region47: #{tpu_custom_call.1} parent=11 // pred_region
          %s479 = ssub.s32 128, 128
          %480 = vsyncadd [#allocation18], %s479
          %s482 = sshll.u32 [#allocation19], 4
          %s483 = int_to_ptr.vmem [resolvable:$true] %s482
          %485 = dma.hbm_to_vmem [thread:$0]  %s12, 128, %s483, [#allocation18]
        $region48: #{tpu_custom_call.1} parent=11 // pred_fallthru
          _
        // Predicated region
        $region49: #{tpu_custom_call.1} parent=11 // pred_check
          %p486 = pneg %p350
        $region50: #{tpu_custom_call.1} parent=11 // pred_check_branch
          %488 = sbr.rel (%p486) target = $region52
        $region51: #{tpu_custom_call.1} parent=11 // pred_region
          %s490 = ssub.s32 1024, 1024
          %491 = vsyncadd [#allocation21], %s490
          %s492 = sshll.u32 [#allocation20], 4
          %s493 = int_to_ptr.vmem [resolvable:$true] %s492
          %498 = dma.hbm_to_vmem [thread:$0]  %s13, 1024, %s493, [#allocation21], 128, 128, 8
        $region52: #{tpu_custom_call.1} parent=11 // pred_fallthru
          _
      $region12: #{tpu_custom_call.1} parent=5 // pred_fallthru
        _
      %p499 = scmp.lt.s32.totalorder %s36, 2
      // Predicated region
      $region53: #{tpu_custom_call.1} parent=5 // pred_check
        %p500 = pneg %p499
      $region54: #{tpu_custom_call.1} parent=5 // pred_check_branch
        %502 = sbr.rel (%p500) target = $region56
      $region55: #{tpu_custom_call.1} parent=5 // pred_region
        // Predicated region
        $region57: #{tpu_custom_call.1} parent=55 // pred_check
          %p503 = pneg %p56
        $region58: #{tpu_custom_call.1} parent=55 // pred_check_branch
          %505 = sbr.rel (%p503) target = $region60
        $region59: #{tpu_custom_call.1} parent=55 // pred_region
          %s506 = sand.u32 %s46, 1
          %s507 = scalar_lea.sflag [#allocation3], %s506
          %s508 = sand.u32 %s46, 1
          %s509 = smul.addr %s508, 64
          %s510 = scalar_lea.vmem [#allocation2], %s509
          %s511 = smul.u32 8, %s36
          %s513 = ssub.s32 1024, 1024
          %514 = vsyncadd %s507, %s513
          %s515 = smul.addr %s511, 128
          %s516 = scalar_lea.hbm %s0, %s515
          %s517 = sshll.u32 %s510, 4
          %s518 = int_to_ptr.vmem [resolvable:$true] %s517
          %523 = dma.hbm_to_vmem [thread:$0]  %s516, 1024, %s518, %s507, 128, 128, 8
        $region60: #{tpu_custom_call.1} parent=55 // pred_fallthru
          _
        // Predicated region
        $region61: #{tpu_custom_call.1} parent=55 // pred_check
          %p524 = pneg %p82
        $region62: #{tpu_custom_call.1} parent=55 // pred_check_branch
          %526 = sbr.rel (%p524) target = $region64
        $region63: #{tpu_custom_call.1} parent=55 // pred_region
          %s527 = sand.u32 %s36, 1
          %s528 = scalar_lea.sflag [#allocation6], %s527
          %s529 = sand.u32 %s72, 1
          %s530 = smul.addr %s529, 64
          %s531 = scalar_lea.vmem [#allocation5], %s530
          %s532 = smul.u32 8, %s36
          %s534 = ssub.s32 1024, 1024
          %535 = vsyncadd %s528, %s534
          %s536 = smul.addr %s532, 128
          %s537 = scalar_lea.hbm %s1, %s536
          %s538 = sshll.u32 %s531, 4
          %s539 = int_to_ptr.vmem [resolvable:$true] %s538
          %544 = dma.hbm_to_vmem [thread:$0]  %s537, 1024, %s539, %s528, 128, 128, 8
        $region64: #{tpu_custom_call.1} parent=55 // pred_fallthru
          _
        // Predicated region
        $region65: #{tpu_custom_call.1} parent=55 // pred_check
          %p545 = pneg %p108
        $region66: #{tpu_custom_call.1} parent=55 // pred_check_branch
          %547 = sbr.rel (%p545) target = $region68
        $region67: #{tpu_custom_call.1} parent=55 // pred_region
          %s548 = sand.u32 %s36, 1
          %s549 = scalar_lea.sflag [#allocation6], %s548
          %s550 = sand.u32 %s98, 1
          %s551 = smul.addr %s550, 64
          %s552 = scalar_lea.vmem [#allocation7], %s551
          %s553 = smul.u32 8, %s36
          %s555 = ssub.s32 1024, 1024
          %556 = vsyncadd %s549, %s555
          %s557 = smul.addr %s553, 128
          %s558 = scalar_lea.hbm %s2, %s557
          %s559 = sshll.u32 %s552, 4
          %s560 = int_to_ptr.vmem [resolvable:$true] %s559
          %565 = dma.hbm_to_vmem [thread:$0]  %s558, 1024, %s560, %s549, 128, 128, 8
        $region68: #{tpu_custom_call.1} parent=55 // pred_fallthru
          _
        // Predicated region
        $region69: #{tpu_custom_call.1} parent=55 // pred_check
          %p566 = pneg %p134
        $region70: #{tpu_custom_call.1} parent=55 // pred_check_branch
          %568 = sbr.rel (%p566) target = $region72
        $region71: #{tpu_custom_call.1} parent=55 // pred_region
          %s569 = sand.u32 %s36, 1
          %s570 = scalar_lea.sflag [#allocation9], %s569
          %s571 = sand.u32 %s124, 1
          %s572 = smul.addr %s571, 8
          %s573 = scalar_lea.vmem [#allocation8], %s572
          %s574 = smul.u32 8, %s36
          %s576 = ssub.s32 128, 128
          %577 = vsyncadd %s570, %s576
          %s578 = smul.addr %s574, 16
          %s579 = scalar_lea.hbm %s3, %s578
          %s580 = sshll.u32 %s573, 4
          %s581 = int_to_ptr.vmem [resolvable:$true] %s580
          %586 = dma.hbm_to_vmem [thread:$0]  %s579, 128, %s581, %s570, 16, 16, 1
        $region72: #{tpu_custom_call.1} parent=55 // pred_fallthru
          _
      $region56: #{tpu_custom_call.1} parent=5 // pred_fallthru
        _
      %p587 = scmp.le.s32.totalorder 1, %s36
      %p588 = scmp.lt.s32.totalorder %s36, 3
      %p589 = pnand %p587, %p588
      %p590 = pneg %p589
      // Predicated region
      $region73: #{tpu_custom_call.1} parent=5 // pred_check
        _
      $region74: #{tpu_custom_call.1} parent=5 // pred_check_branch
        %592 = sbr.rel (%p589) target = $region76
      $region75: #{tpu_custom_call.1} parent=5 // pred_region
        %s593 = ssub.s32 %s36, 1
        %s594 = sand.u32 %s49, 1
        %s595 = scalar_lea.sflag [#allocation3], %s594
        %s596 = sand.u32 %s49, 1
        %s597 = smul.addr %s596, 64
        %s598 = scalar_lea.vmem [#allocation2], %s597
        // Predicated region
        $region77: #{tpu_custom_call.1} parent=75 // pred_check
          %p599 = pneg %p62
        $region78: #{tpu_custom_call.1} parent=75 // pred_check_branch
          %601 = sbr.rel (%p599) target = $region80
        $region79: #{tpu_custom_call.1} parent=75 // pred_region
          %602 = dma.done %s595, 1024
        $region80: #{tpu_custom_call.1} parent=75 // pred_fallthru
          _
        %s603 = sand.u32 %s41, 1
        %s604 = scalar_lea.sflag [#allocation6], %s603
        %s605 = sand.u32 %s75, 1
        %s606 = smul.addr %s605, 64
        %s607 = scalar_lea.vmem [#allocation5], %s606
        // Predicated region
        $region81: #{tpu_custom_call.1} parent=75 // pred_check
          %p608 = pneg %p88
        $region82: #{tpu_custom_call.1} parent=75 // pred_check_branch
          %610 = sbr.rel (%p608) target = $region84
        $region83: #{tpu_custom_call.1} parent=75 // pred_region
          %611 = dma.done %s604, 1024
        $region84: #{tpu_custom_call.1} parent=75 // pred_fallthru
          _
        %s612 = sand.u32 %s41, 1
        %s613 = scalar_lea.sflag [#allocation6], %s612
        %s614 = sand.u32 %s101, 1
        %s615 = smul.addr %s614, 64
        %s616 = scalar_lea.vmem [#allocation7], %s615
        // Predicated region
        $region85: #{tpu_custom_call.1} parent=75 // pred_check
          %p617 = pneg %p114
        $region86: #{tpu_custom_call.1} parent=75 // pred_check_branch
          %619 = sbr.rel (%p617) target = $region88
        $region87: #{tpu_custom_call.1} parent=75 // pred_region
          %620 = dma.done %s613, 1024
        $region88: #{tpu_custom_call.1} parent=75 // pred_fallthru
          _
        %s621 = sand.u32 %s41, 1
        %s622 = scalar_lea.sflag [#allocation9], %s621
        %s623 = sand.u32 %s127, 1
        %s624 = smul.addr %s623, 8
        %s625 = scalar_lea.vmem [#allocation8], %s624
        // Predicated region
        $region89: #{tpu_custom_call.1} parent=75 // pred_check
          %p626 = pneg %p140
        $region90: #{tpu_custom_call.1} parent=75 // pred_check_branch
          %628 = sbr.rel (%p626) target = $region92
        $region91: #{tpu_custom_call.1} parent=75 // pred_region
          %629 = dma.done %s622, 128
        $region92: #{tpu_custom_call.1} parent=75 // pred_fallthru
          _
        // Predicated region
        $region93: #{tpu_custom_call.1} parent=75 // pred_check
          %p630 = pneg %p161
        $region94: #{tpu_custom_call.1} parent=75 // pred_check_branch
          %632 = sbr.rel (%p630) target = $region96
        $region95: #{tpu_custom_call.1} parent=75 // pred_region
          %633 = dma.done [#allocation9], 1024
        $region96: #{tpu_custom_call.1} parent=75 // pred_fallthru
          _
        // Predicated region
        $region97: #{tpu_custom_call.1} parent=75 // pred_check
          %p634 = pneg %p182
        $region98: #{tpu_custom_call.1} parent=75 // pred_check_branch
          %636 = sbr.rel (%p634) target = $region100
        $region99: #{tpu_custom_call.1} parent=75 // pred_region
          %637 = dma.done [#allocation12], 1024
        $region100: #{tpu_custom_call.1} parent=75 // pred_fallthru
          _
        // Predicated region
        $region101: #{tpu_custom_call.1} parent=75 // pred_check
          %p638 = pneg %p203
        $region102: #{tpu_custom_call.1} parent=75 // pred_check_branch
          %640 = sbr.rel (%p638) target = $region104
        $region103: #{tpu_custom_call.1} parent=75 // pred_region
          %641 = dma.done [#allocation12], 1024
        $region104: #{tpu_custom_call.1} parent=75 // pred_fallthru
          _
        // Predicated region
        $region105: #{tpu_custom_call.1} parent=75 // pred_check
          %p642 = pneg %p224
        $region106: #{tpu_custom_call.1} parent=75 // pred_check_branch
          %644 = sbr.rel (%p642) target = $region108
        $region107: #{tpu_custom_call.1} parent=75 // pred_region
          %645 = dma.done [#allocation15], 1024
        $region108: #{tpu_custom_call.1} parent=75 // pred_fallthru
          _
        // Predicated region
        $region109: #{tpu_custom_call.1} parent=75 // pred_check
          %p646 = pneg %p245
        $region110: #{tpu_custom_call.1} parent=75 // pred_check_branch
          %648 = sbr.rel (%p646) target = $region112
        $region111: #{tpu_custom_call.1} parent=75 // pred_region
          %649 = dma.done [#allocation15], 4096
        $region112: #{tpu_custom_call.1} parent=75 // pred_fallthru
          _
        // Predicated region
        $region113: #{tpu_custom_call.1} parent=75 // pred_check
          %p650 = pneg %p266
        $region114: #{tpu_custom_call.1} parent=75 // pred_check_branch
          %652 = sbr.rel (%p650) target = $region116
        $region115: #{tpu_custom_call.1} parent=75 // pred_region
          %653 = dma.done [#allocation18], 4096
        $region116: #{tpu_custom_call.1} parent=75 // pred_fallthru
          _
        // Predicated region
        $region117: #{tpu_custom_call.1} parent=75 // pred_check
          %p654 = pneg %p329
        $region118: #{tpu_custom_call.1} parent=75 // pred_check_branch
          %656 = sbr.rel (%p654) target = $region120
        $region119: #{tpu_custom_call.1} parent=75 // pred_region
          %657 = dma.done [#allocation18], 128
        $region120: #{tpu_custom_call.1} parent=75 // pred_fallthru
          _
        // Predicated region
        $region121: #{tpu_custom_call.1} parent=75 // pred_check
          %p658 = pneg %p350
        $region122: #{tpu_custom_call.1} parent=75 // pred_check_branch
          %660 = sbr.rel (%p658) target = $region124
        $region123: #{tpu_custom_call.1} parent=75 // pred_region
          %661 = dma.done [#allocation21], 1024
        $region124: #{tpu_custom_call.1} parent=75 // pred_fallthru
          _
        %s662 = sand.u32 %s49, 1
        %s663 = scalar_lea.sflag [#allocation3], %s662
        %s664 = sand.u32 %s49, 1
        %s665 = smul.addr %s664, 64
        %s666 = scalar_lea.vmem [#allocation2], %s665
        %p667 = pneg %p62
        %p668 = pneg %p59
        %s669 = sand.u32 %s41, 1
        %s670 = scalar_lea.sflag [#allocation6], %s669
        %s671 = sand.u32 %s75, 1
        %s672 = smul.addr %s671, 64
        %s673 = scalar_lea.vmem [#allocation5], %s672
        %p674 = pneg %p88
        %p675 = pneg %p85
        %s676 = sand.u32 %s41, 1
        %s677 = scalar_lea.sflag [#allocation6], %s676
        %s678 = sand.u32 %s101, 1
        %s679 = smul.addr %s678, 64
        %s680 = scalar_lea.vmem [#allocation7], %s679
        %p681 = pneg %p114
        %p682 = pneg %p111
        %s683 = sand.u32 %s41, 1
        %s684 = scalar_lea.sflag [#allocation9], %s683
        %s685 = sand.u32 %s127, 1
        %s686 = smul.addr %s685, 8
        %s687 = scalar_lea.vmem [#allocation8], %s686
        %p688 = pneg %p140
        %p689 = pneg %p137
        %p690 = pneg %p161
        %p691 = pneg %p158
        %p692 = pneg %p182
        %p693 = pneg %p179
        %p694 = pneg %p203
        %p695 = pneg %p200
        %p696 = pneg %p224
        %p697 = pneg %p221
        %p698 = pneg %p245
        %p699 = pneg %p242
        %p700 = pneg %p266
        %p701 = pneg %p263
        %p702 = pneg %p287
        %p703 = pneg %p284
        %p704 = pneg %p308
        %p705 = pneg %p305
        %p706 = pneg %p329
        %p707 = pneg %p326
        %p708 = pneg %p350
        %p709 = pneg %p347
        %p710 = pneg %p376
        %p711 = pneg %p373
        %s712 = sand.u32 %s363, 1
        %s713 = scalar_lea.sflag [#allocation4], %s712
        %s714 = sand.u32 %s363, 1
        %s715 = smul.addr %s714, 64
        %s716 = scalar_lea.vmem [#allocation22], %s715
        %s717 = smul.u32 8, %s41
        %s718 = smul.u32 8, %s41
        %s719 = smul.u32 8, %s41
        %s720 = smul.u32 8, %s41
        %s721 = smul.u32 8, %s41
        %v723 = vld [vmem:[%s10] sm:$0xff]
        %v724 = vld [vmem:[%s10 + $0x8] sm:$0x1]
        %v725 = vld [vmem:[%s598] sm:$0xff]
        %v726 = vld [vmem:[%s598 + $0x8] sm:$0xff]
        %v727 = vld [vmem:[%s598 + $0x10] sm:$0xff]
        %v728 = vld [vmem:[%s598 + $0x18] sm:$0xff]
        %v729 = vld [vmem:[%s598 + $0x20] sm:$0xff]
        %v730 = vld [vmem:[%s598 + $0x28] sm:$0xff]
        %v731 = vld [vmem:[%s598 + $0x30] sm:$0xff]
        %v732 = vld [vmem:[%s598 + $0x38] sm:$0xff]
        %v733 = vpack.c.bf16 %v726, %v725
        %v734 = vpack.c.bf16 %v728, %v727
        %v735 = vpack.c.bf16 %v730, %v729
        %v736 = vpack.c.bf16 %v732, %v731
        %v737 = vld [vmem:[%s607] sm:$0xff]
        %v738 = vld [vmem:[%s607 + $0x8] sm:$0xff]
        %v739 = vld [vmem:[%s607 + $0x10] sm:$0xff]
        %v740 = vld [vmem:[%s607 + $0x18] sm:$0xff]
        %v741 = vld [vmem:[%s607 + $0x20] sm:$0xff]
        %v742 = vld [vmem:[%s607 + $0x28] sm:$0xff]
        %v743 = vld [vmem:[%s607 + $0x30] sm:$0xff]
        %v744 = vld [vmem:[%s607 + $0x38] sm:$0xff]
        %v745 = vpack.c.bf16 %v738, %v737
        %v746 = vpack.c.bf16 %v740, %v739
        %v747 = vpack.c.bf16 %v742, %v741
        %v748 = vpack.c.bf16 %v744, %v743
        %v749 = vld [vmem:[%s616] sm:$0xff]
        %v750 = vld [vmem:[%s616 + $0x8] sm:$0xff]
        %v751 = vld [vmem:[%s616 + $0x10] sm:$0xff]
        %v752 = vld [vmem:[%s616 + $0x18] sm:$0xff]
        %v753 = vld [vmem:[%s616 + $0x20] sm:$0xff]
        %v754 = vld [vmem:[%s616 + $0x28] sm:$0xff]
        %v755 = vld [vmem:[%s616 + $0x30] sm:$0xff]
        %v756 = vld [vmem:[%s616 + $0x38] sm:$0xff]
        %v757 = vpack.c.bf16 %v750, %v749
        %v758 = vpack.c.bf16 %v752, %v751
        %v759 = vpack.c.bf16 %v754, %v753
        %v760 = vpack.c.bf16 %v756, %v755
        %v761 = vld [vmem:[#allocation10] sm:$0xf]
        %v762 = vld [vmem:[#allocation10 + $0x4] sm:$0xf]
        %v763 = vld [vmem:[#allocation10 + $0x8] sm:$0xf]
        %v764 = vld [vmem:[#allocation10 + $0xc] sm:$0xf]
        %v765 = vld [vmem:[#allocation10 + $0x10] sm:$0xf]
        %v766 = vld [vmem:[#allocation10 + $0x14] sm:$0xf]
        %v767 = vld [vmem:[#allocation10 + $0x18] sm:$0xf]
        %v768 = vld [vmem:[#allocation10 + $0x1c] sm:$0xf]
        %v769 = vld [vmem:[#allocation10 + $0x20] sm:$0xf]
        %v770 = vld [vmem:[#allocation10 + $0x24] sm:$0xf]
        %v771 = vld [vmem:[#allocation10 + $0x28] sm:$0xf]
        %v772 = vld [vmem:[#allocation10 + $0x2c] sm:$0xf]
        %v773 = vld [vmem:[#allocation10 + $0x30] sm:$0xf]
        %v774 = vld [vmem:[#allocation10 + $0x34] sm:$0xf]
        %v775 = vld [vmem:[#allocation10 + $0x38] sm:$0xf]
        %v776 = vld [vmem:[#allocation10 + $0x3c] sm:$0xf]
        %v777 = vlaneseq
        %v778 = vshrl.u32 %v777, 7
        %v779 = vsub.s32 0, %v778
        %v780 = vrot.slane %v723, %v779
        %v797 = vunpack.c.l.b16 %v761
        %v798 = vunpack.c.l.b16 %v762
        %v799 = vunpack.c.l.b16 %v763
        %v800 = vunpack.c.l.b16 %v764
        %v801 = vunpack.c.l.b16 %v765
        %v802 = vunpack.c.l.b16 %v766
        %v803 = vunpack.c.l.b16 %v767
        %v804 = vunpack.c.l.b16 %v768
        %v805 = vunpack.c.l.b16 %v769
        %v806 = vunpack.c.l.b16 %v770
        %v807 = vunpack.c.l.b16 %v771
        %v808 = vunpack.c.l.b16 %v772
        %v809 = vunpack.c.l.b16 %v773
        %v810 = vunpack.c.l.b16 %v774
        %v811 = vunpack.c.l.b16 %v775
        %v812 = vunpack.c.l.b16 %v776
        %v813 = vpack.c.b16 %v798, %v797
        %v814 = vpack.c.b16 %v800, %v799
        %v815 = vpack.c.b16 %v802, %v801
        %v816 = vpack.c.b16 %v804, %v803
        %v817 = vpack.c.b16 %v806, %v805
        %v818 = vpack.c.b16 %v808, %v807
        %v819 = vpack.c.b16 %v810, %v809
        %v820 = vpack.c.b16 %v812, %v811
        %829 = vmatprep.subr.bf16.mxu0 0
        %830 = vmatpush1.bf16.msra.mxu0 %v820
        %831 = vmatprep.subr.bf16.mxu0 0
        %832 = vmatpush1.bf16.msra.mxu0 %v819
        %833 = vmatprep.subr.bf16.mxu0 0
        %834 = vmatpush1.bf16.msra.mxu0 %v818
        %835 = vmatprep.subr.bf16.mxu0 0
        %836 = vmatpush1.bf16.msra.mxu0 %v817
        %837 = vmatprep.subr.bf16.mxu0 0
        %838 = vmatpush1.bf16.msra.mxu0 %v816
        %839 = vmatprep.subr.bf16.mxu0 0
        %840 = vmatpush1.bf16.msra.mxu0 %v815
        %841 = vmatprep.subr.bf16.mxu0 0
        %842 = vmatpush1.bf16.msra.mxu0 %v814
        %843 = vmatprep.subr.bf16.mxu0 0
        %844 = vmatpush1.bf16.msra.mxu0 %v813
        %845 = vmatprep.subr.bf16.mxu0 0
        %846 = vmatpush2.bf16.msra.mxu0 0
        %847 = vmatprep.subr.bf16.mxu0 0
        %848 = vmatpush2.bf16.msra.mxu0 0
        %849 = vmatprep.subr.bf16.mxu0 0
        %850 = vmatpush2.bf16.msra.mxu0 0
        %851 = vmatprep.subr.bf16.mxu0 0
        %852 = vmatpush2.bf16.msra.mxu0 0
        %853 = vmatprep.subr.bf16.mxu0 0
        %854 = vmatpush2.bf16.msra.mxu0 0
        %855 = vmatprep.subr.bf16.mxu0 0
        %856 = vmatpush2.bf16.msra.mxu0 0
        %857 = vmatprep.subr.bf16.mxu0 0
        %858 = vmatpush2.bf16.msra.mxu0 0
        %859 = vmatprep.subr.bf16.mxu0 0
        %860 = vmatpush2.bf16.msra.mxu0 0
        %861 = vmatprep.mubr.bf16.mxu0 0
        %862 = vmatmul.mubr.bf16.gmra.mxu0 %v733
        %v863 = vpop.f32.mrf.mxu0
        %v864 = vadd.f32 %v780, %v863
        %v865 = vpop.f32.mrf.mxu0
        %v866 = vpop.f32.mrf.mxu0
        %v867 = vadd.f32 %v780, %v866
        %v868 = vpop.f32.mrf.mxu0
        %869 = vmatprep.mubr.bf16.mxu0 0
        %870 = vmatmul.mubr.bf16.gmra.mxu0 %v734
        %v871 = vpop.f32.mrf.mxu0
        %v872 = vadd.f32 %v780, %v871
        %v873 = vpop.f32.mrf.mxu0
        %v874 = vpop.f32.mrf.mxu0
        %v875 = vadd.f32 %v780, %v874
        %v876 = vpop.f32.mrf.mxu0
        %877 = vmatprep.mubr.bf16.mxu0 0
        %878 = vmatmul.mubr.bf16.gmra.mxu0 %v735
        %v879 = vpop.f32.mrf.mxu0
        %v880 = vadd.f32 %v780, %v879
        %v881 = vpop.f32.mrf.mxu0
        %v882 = vpop.f32.mrf.mxu0
        %v883 = vadd.f32 %v780, %v882
        %v884 = vpop.f32.mrf.mxu0
        %885 = vmatprep.mubr.bf16.mxu0 0
        %886 = vmatmul.mubr.bf16.gmra.mxu0 %v736
        %v887 = vpop.f32.mrf.mxu0
        %v888 = vadd.f32 %v780, %v887
        %v889 = vpop.f32.mrf.mxu0
        %v890 = vpop.f32.mrf.mxu0
        %v891 = vadd.f32 %v780, %v890
        %v892 = vpop.f32.mrf.mxu0
        %893 = vdwg.mxu0
        %v894 = vld [vmem:[#allocation11] sm:$0xf]
        %v895 = vld [vmem:[#allocation11 + $0x4] sm:$0xf]
        %v896 = vld [vmem:[#allocation11 + $0x8] sm:$0xf]
        %v897 = vld [vmem:[#allocation11 + $0xc] sm:$0xf]
        %v898 = vld [vmem:[#allocation11 + $0x10] sm:$0xf]
        %v899 = vld [vmem:[#allocation11 + $0x14] sm:$0xf]
        %v900 = vld [vmem:[#allocation11 + $0x18] sm:$0xf]
        %v901 = vld [vmem:[#allocation11 + $0x1c] sm:$0xf]
        %v902 = vld [vmem:[#allocation11 + $0x20] sm:$0xf]
        %v903 = vld [vmem:[#allocation11 + $0x24] sm:$0xf]
        %v904 = vld [vmem:[#allocation11 + $0x28] sm:$0xf]
        %v905 = vld [vmem:[#allocation11 + $0x2c] sm:$0xf]
        %v906 = vld [vmem:[#allocation11 + $0x30] sm:$0xf]
        %v907 = vld [vmem:[#allocation11 + $0x34] sm:$0xf]
        %v908 = vld [vmem:[#allocation11 + $0x38] sm:$0xf]
        %v909 = vld [vmem:[#allocation11 + $0x3c] sm:$0xf]
        %v910 = vlaneseq
        %v911 = vshrl.u32 %v910, 7
        %v912 = vsub.s32 1, %v911
        %v913 = vrot.slane %v723, %v912
        %v930 = vunpack.c.l.b16 %v894
        %v931 = vunpack.c.l.b16 %v895
        %v932 = vunpack.c.l.b16 %v896
        %v933 = vunpack.c.l.b16 %v897
        %v934 = vunpack.c.l.b16 %v898
        %v935 = vunpack.c.l.b16 %v899
        %v936 = vunpack.c.l.b16 %v900
        %v937 = vunpack.c.l.b16 %v901
        %v938 = vunpack.c.l.b16 %v902
        %v939 = vunpack.c.l.b16 %v903
        %v940 = vunpack.c.l.b16 %v904
        %v941 = vunpack.c.l.b16 %v905
        %v942 = vunpack.c.l.b16 %v906
        %v943 = vunpack.c.l.b16 %v907
        %v944 = vunpack.c.l.b16 %v908
        %v945 = vunpack.c.l.b16 %v909
        %v946 = vpack.c.b16 %v931, %v930
        %v947 = vpack.c.b16 %v933, %v932
        %v948 = vpack.c.b16 %v935, %v934
        %v949 = vpack.c.b16 %v937, %v936
        %v950 = vpack.c.b16 %v939, %v938
        %v951 = vpack.c.b16 %v941, %v940
        %v952 = vpack.c.b16 %v943, %v942
        %v953 = vpack.c.b16 %v945, %v944
        %962 = vmatprep.subr.bf16.mxu0 0
        %963 = vmatpush1.bf16.msra.mxu0 %v953
        %964 = vmatprep.subr.bf16.mxu0 0
        %965 = vmatpush1.bf16.msra.mxu0 %v952
        %966 = vmatprep.subr.bf16.mxu0 0
        %967 = vmatpush1.bf16.msra.mxu0 %v951
        %968 = vmatprep.subr.bf16.mxu0 0
        %969 = vmatpush1.bf16.msra.mxu0 %v950
        %970 = vmatprep.subr.bf16.mxu0 0
        %971 = vmatpush1.bf16.msra.mxu0 %v949
        %972 = vmatprep.subr.bf16.mxu0 0
        %973 = vmatpush1.bf16.msra.mxu0 %v948
        %974 = vmatprep.subr.bf16.mxu0 0
        %975 = vmatpush1.bf16.msra.mxu0 %v947
        %976 = vmatprep.subr.bf16.mxu0 0
        %977 = vmatpush1.bf16.msra.mxu0 %v946
        %978 = vmatprep.subr.bf16.mxu0 0
        %979 = vmatpush2.bf16.msra.mxu0 0
        %980 = vmatprep.subr.bf16.mxu0 0
        %981 = vmatpush2.bf16.msra.mxu0 0
        %982 = vmatprep.subr.bf16.mxu0 0
        %983 = vmatpush2.bf16.msra.mxu0 0
        %984 = vmatprep.subr.bf16.mxu0 0
        %985 = vmatpush2.bf16.msra.mxu0 0
        %986 = vmatprep.subr.bf16.mxu0 0
        %987 = vmatpush2.bf16.msra.mxu0 0
        %988 = vmatprep.subr.bf16.mxu0 0
        %989 = vmatpush2.bf16.msra.mxu0 0
        %990 = vmatprep.subr.bf16.mxu0 0
        %991 = vmatpush2.bf16.msra.mxu0 0
        %992 = vmatprep.subr.bf16.mxu0 0
        %993 = vmatpush2.bf16.msra.mxu0 0
        %994 = vmatprep.mubr.bf16.mxu0 0
        %995 = vmatmul.mubr.bf16.gmra.mxu0 %v745
        %v996 = vpop.f32.mrf.mxu0
        %v997 = vadd.f32 %v913, %v996
        %v998 = vpop.f32.mrf.mxu0
        %v999 = vpop.f32.mrf.mxu0
        %v1000 = vadd.f32 %v913, %v999
        %v1001 = vpop.f32.mrf.mxu0
        %1002 = vmatprep.mubr.bf16.mxu0 0
        %1003 = vmatmul.mubr.bf16.gmra.mxu0 %v746
        %v1004 = vpop.f32.mrf.mxu0
        %v1005 = vadd.f32 %v913, %v1004
        %v1006 = vpop.f32.mrf.mxu0
        %v1007 = vpop.f32.mrf.mxu0
        %v1008 = vadd.f32 %v913, %v1007
        %v1009 = vpop.f32.mrf.mxu0
        %1010 = vmatprep.mubr.bf16.mxu0 0
        %1011 = vmatmul.mubr.bf16.gmra.mxu0 %v747
        %v1012 = vpop.f32.mrf.mxu0
        %v1013 = vadd.f32 %v913, %v1012
        %v1014 = vpop.f32.mrf.mxu0
        %v1015 = vpop.f32.mrf.mxu0
        %v1016 = vadd.f32 %v913, %v1015
        %v1017 = vpop.f32.mrf.mxu0
        %1018 = vmatprep.mubr.bf16.mxu0 0
        %1019 = vmatmul.mubr.bf16.gmra.mxu0 %v748
        %v1020 = vpop.f32.mrf.mxu0
        %v1021 = vadd.f32 %v913, %v1020
        %v1022 = vpop.f32.mrf.mxu0
        %v1023 = vpop.f32.mrf.mxu0
        %v1024 = vadd.f32 %v913, %v1023
        %v1025 = vpop.f32.mrf.mxu0
        %1026 = vdwg.mxu0
        %v1027 = vld [vmem:[#allocation13] sm:$0xf]
        %v1028 = vld [vmem:[#allocation13 + $0x4] sm:$0xf]
        %v1029 = vld [vmem:[#allocation13 + $0x8] sm:$0xf]
        %v1030 = vld [vmem:[#allocation13 + $0xc] sm:$0xf]
        %v1031 = vld [vmem:[#allocation13 + $0x10] sm:$0xf]
        %v1032 = vld [vmem:[#allocation13 + $0x14] sm:$0xf]
        %v1033 = vld [vmem:[#allocation13 + $0x18] sm:$0xf]
        %v1034 = vld [vmem:[#allocation13 + $0x1c] sm:$0xf]
        %v1035 = vld [vmem:[#allocation13 + $0x20] sm:$0xf]
        %v1036 = vld [vmem:[#allocation13 + $0x24] sm:$0xf]
        %v1037 = vld [vmem:[#allocation13 + $0x28] sm:$0xf]
        %v1038 = vld [vmem:[#allocation13 + $0x2c] sm:$0xf]
        %v1039 = vld [vmem:[#allocation13 + $0x30] sm:$0xf]
        %v1040 = vld [vmem:[#allocation13 + $0x34] sm:$0xf]
        %v1041 = vld [vmem:[#allocation13 + $0x38] sm:$0xf]
        %v1042 = vld [vmem:[#allocation13 + $0x3c] sm:$0xf]
        %v1043 = vlaneseq
        %v1044 = vshrl.u32 %v1043, 7
        %v1045 = vsub.s32 2, %v1044
        %v1046 = vrot.slane %v723, %v1045
        %v1063 = vunpack.c.l.b16 %v1027
        %v1064 = vunpack.c.l.b16 %v1028
        %v1065 = vunpack.c.l.b16 %v1029
        %v1066 = vunpack.c.l.b16 %v1030
        %v1067 = vunpack.c.l.b16 %v1031
        %v1068 = vunpack.c.l.b16 %v1032
        %v1069 = vunpack.c.l.b16 %v1033
        %v1070 = vunpack.c.l.b16 %v1034
        %v1071 = vunpack.c.l.b16 %v1035
        %v1072 = vunpack.c.l.b16 %v1036
        %v1073 = vunpack.c.l.b16 %v1037
        %v1074 = vunpack.c.l.b16 %v1038
        %v1075 = vunpack.c.l.b16 %v1039
        %v1076 = vunpack.c.l.b16 %v1040
        %v1077 = vunpack.c.l.b16 %v1041
        %v1078 = vunpack.c.l.b16 %v1042
        %v1079 = vpack.c.b16 %v1064, %v1063
        %v1080 = vpack.c.b16 %v1066, %v1065
        %v1081 = vpack.c.b16 %v1068, %v1067
        %v1082 = vpack.c.b16 %v1070, %v1069
        %v1083 = vpack.c.b16 %v1072, %v1071
        %v1084 = vpack.c.b16 %v1074, %v1073
        %v1085 = vpack.c.b16 %v1076, %v1075
        %v1086 = vpack.c.b16 %v1078, %v1077
        %1095 = vmatprep.subr.bf16.mxu0 0
        %1096 = vmatpush1.bf16.msra.mxu0 %v1086
        %1097 = vmatprep.subr.bf16.mxu0 0
        %1098 = vmatpush1.bf16.msra.mxu0 %v1085
        %1099 = vmatprep.subr.bf16.mxu0 0
        %1100 = vmatpush1.bf16.msra.mxu0 %v1084
        %1101 = vmatprep.subr.bf16.mxu0 0
        %1102 = vmatpush1.bf16.msra.mxu0 %v1083
        %1103 = vmatprep.subr.bf16.mxu0 0
        %1104 = vmatpush1.bf16.msra.mxu0 %v1082
        %1105 = vmatprep.subr.bf16.mxu0 0
        %1106 = vmatpush1.bf16.msra.mxu0 %v1081
        %1107 = vmatprep.subr.bf16.mxu0 0
        %1108 = vmatpush1.bf16.msra.mxu0 %v1080
        %1109 = vmatprep.subr.bf16.mxu0 0
        %1110 = vmatpush1.bf16.msra.mxu0 %v1079
        %1111 = vmatprep.subr.bf16.mxu0 0
        %1112 = vmatpush2.bf16.msra.mxu0 0
        %1113 = vmatprep.subr.bf16.mxu0 0
        %1114 = vmatpush2.bf16.msra.mxu0 0
        %1115 = vmatprep.subr.bf16.mxu0 0
        %1116 = vmatpush2.bf16.msra.mxu0 0
        %1117 = vmatprep.subr.bf16.mxu0 0
        %1118 = vmatpush2.bf16.msra.mxu0 0
        %1119 = vmatprep.subr.bf16.mxu0 0
        %1120 = vmatpush2.bf16.msra.mxu0 0
        %1121 = vmatprep.subr.bf16.mxu0 0
        %1122 = vmatpush2.bf16.msra.mxu0 0
        %1123 = vmatprep.subr.bf16.mxu0 0
        %1124 = vmatpush2.bf16.msra.mxu0 0
        %1125 = vmatprep.subr.bf16.mxu0 0
        %1126 = vmatpush2.bf16.msra.mxu0 0
        %1127 = vmatprep.mubr.bf16.mxu0 0
        %1128 = vmatmul.mubr.bf16.gmra.mxu0 %v757
        %v1129 = vpop.f32.mrf.mxu0
        %v1130 = vadd.f32 %v1046, %v1129
        %v1131 = vpop.f32.mrf.mxu0
        %v1132 = vpop.f32.mrf.mxu0
        %v1133 = vadd.f32 %v1046, %v1132
        %v1134 = vpop.f32.mrf.mxu0
        %1135 = vmatprep.mubr.bf16.mxu0 0
        %1136 = vmatmul.mubr.bf16.gmra.mxu0 %v758
        %v1137 = vpop.f32.mrf.mxu0
        %v1138 = vadd.f32 %v1046, %v1137
        %v1139 = vpop.f32.mrf.mxu0
        %v1140 = vpop.f32.mrf.mxu0
        %v1141 = vadd.f32 %v1046, %v1140
        %v1142 = vpop.f32.mrf.mxu0
        %1143 = vmatprep.mubr.bf16.mxu0 0
        %1144 = vmatmul.mubr.bf16.gmra.mxu0 %v759
        %v1145 = vpop.f32.mrf.mxu0
        %v1146 = vadd.f32 %v1046, %v1145
        %v1147 = vpop.f32.mrf.mxu0
        %v1148 = vpop.f32.mrf.mxu0
        %v1149 = vadd.f32 %v1046, %v1148
        %v1150 = vpop.f32.mrf.mxu0
        %1151 = vmatprep.mubr.bf16.mxu0 0
        %1152 = vmatmul.mubr.bf16.gmra.mxu0 %v760
        %v1153 = vpop.f32.mrf.mxu0
        %v1154 = vadd.f32 %v1046, %v1153
        %v1155 = vpop.f32.mrf.mxu0
        %v1156 = vpop.f32.mrf.mxu0
        %v1157 = vadd.f32 %v1046, %v1156
        %v1158 = vpop.f32.mrf.mxu0
        %1159 = vdwg.mxu0
        %v1160 = vmul.f32 %v864, 0.25
        %v1161 = vmul.f32 %v867, 0.25
        %v1162 = vmul.f32 %v872, 0.25
        %v1163 = vmul.f32 %v875, 0.25
        %v1164 = vmul.f32 %v880, 0.25
        %v1165 = vmul.f32 %v883, 0.25
        %v1166 = vmul.f32 %v888, 0.25
        %v1167 = vmul.f32 %v891, 0.25
        %v1168 = vpack.c.bf16 %v1160, %v1160
        %v1169 = vpack.c.bf16 %v1161, %v1161
        %v1170 = vpack.c.bf16 %v1162, %v1162
        %v1171 = vpack.c.bf16 %v1163, %v1163
        %v1172 = vpack.c.bf16 %v1164, %v1164
        %v1173 = vpack.c.bf16 %v1165, %v1165
        %v1174 = vpack.c.bf16 %v1166, %v1166
        %v1175 = vpack.c.bf16 %v1167, %v1167
        %v1176 = vld [vmem:[#allocation19] sm:$0xff]
        %v1178 = vcombine.high %v1176, %v1176
        %v1180 = vunpack.c.l.s4 1966171168
        %v1181 = vunpack.c.0.s8 %v1180
        %v1182 = vlaneseq
        %v1183 = vshrl.u32 %v1182, 7
        %v1184 = vsub.s32 %v1181, %v1183
        %v1185 = vrot.slane %v1176, %v1184
        %v1187 = vunpack.c.l.s4 1966171168
        %v1188 = vunpack.c.0.s8 %v1187
        %v1189 = vlaneseq
        %v1190 = vshrl.u32 %v1189, 7
        %v1191 = vsub.s32 %v1188, %v1190
        %v1192 = vrot.slane %v1178, %v1191
        %v1193 = vcombine.high %v1185, %v1185
        %v1194 = vcombine.high %v1192, %v1192
        %v1196 = vunpack.c.l.s4 1966171168
        %v1197 = vunpack.c.0.s8 %v1196
        %v1198 = vlaneseq
        %v1199 = vshrl.u32 %v1198, 7
        %v1200 = vsub.s32 %v1197, %v1199
        %v1201 = vrot.slane %v1185, %v1200
        %v1203 = vunpack.c.l.s4 1966171168
        %v1204 = vunpack.c.0.s8 %v1203
        %v1205 = vlaneseq
        %v1206 = vshrl.u32 %v1205, 7
        %v1207 = vsub.s32 %v1204, %v1206
        %v1208 = vrot.slane %v1192, %v1207
        %v1210 = vunpack.c.l.s4 1966171168
        %v1211 = vunpack.c.0.s8 %v1210
        %v1212 = vlaneseq
        %v1213 = vshrl.u32 %v1212, 7
        %v1214 = vsub.s32 %v1211, %v1213
        %v1215 = vrot.slane %v1193, %v1214
        %v1217 = vunpack.c.l.s4 1966171168
        %v1218 = vunpack.c.0.s8 %v1217
        %v1219 = vlaneseq
        %v1220 = vshrl.u32 %v1219, 7
        %v1221 = vsub.s32 %v1218, %v1220
        %v1222 = vrot.slane %v1194, %v1221
        %v1223 = vcombine.high %v1201, %v1201
        %v1224 = vcombine.high %v1208, %v1208
        %v1225 = vcombine.high %v1215, %v1215
        %v1226 = vcombine.high %v1222, %v1222
        %v1227 = vlaneseq
        %v1228 = vshrl.u32 %v1227, 7
        %v1229 = vsub.s32 0, %v1228
        %v1230 = vrot.slane %v1201, %v1229
        %v1231 = vlaneseq
        %v1232 = vshrl.u32 %v1231, 7
        %v1233 = vsub.s32 0, %v1232
        %v1234 = vrot.slane %v1215, %v1233
        %v1235 = vlaneseq
        %v1236 = vshrl.u32 %v1235, 7
        %v1237 = vsub.s32 0, %v1236
        %v1238 = vrot.slane %v1223, %v1237
        %v1239 = vlaneseq
        %v1240 = vshrl.u32 %v1239, 7
        %v1241 = vsub.s32 0, %v1240
        %v1242 = vrot.slane %v1225, %v1241
        %v1243 = vlaneseq
        %v1244 = vshrl.u32 %v1243, 7
        %v1245 = vsub.s32 0, %v1244
        %v1246 = vrot.slane %v1208, %v1245
        %v1247 = vlaneseq
        %v1248 = vshrl.u32 %v1247, 7
        %v1249 = vsub.s32 0, %v1248
        %v1250 = vrot.slane %v1222, %v1249
        %v1251 = vlaneseq
        %v1252 = vshrl.u32 %v1251, 7
        %v1253 = vsub.s32 0, %v1252
        %v1254 = vrot.slane %v1224, %v1253
        %v1255 = vlaneseq
        %v1256 = vshrl.u32 %v1255, 7
        %v1257 = vsub.s32 0, %v1256
        %v1258 = vrot.slane %v1226, %v1257
        %v1267 = vmul.f32 %v997, %v1230
        %v1268 = vmul.f32 %v997, %v1234
        %v1269 = vmul.f32 %v997, %v1238
        %v1270 = vmul.f32 %v997, %v1242
        %v1271 = vmul.f32 %v997, %v1246
        %v1272 = vmul.f32 %v997, %v1250
        %v1273 = vmul.f32 %v997, %v1254
        %v1274 = vmul.f32 %v997, %v1258
        %v1275 = vmul.f32 %v1000, %v1230
        %v1276 = vmul.f32 %v1000, %v1234
        %v1277 = vmul.f32 %v1000, %v1238
        %v1278 = vmul.f32 %v1000, %v1242
        %v1279 = vmul.f32 %v1000, %v1246
        %v1280 = vmul.f32 %v1000, %v1250
        %v1281 = vmul.f32 %v1000, %v1254
        %v1282 = vmul.f32 %v1000, %v1258
        %v1283 = vmul.f32 %v1005, %v1230
        %v1284 = vmul.f32 %v1005, %v1234
        %v1285 = vmul.f32 %v1005, %v1238
        %v1286 = vmul.f32 %v1005, %v1242
        %v1287 = vmul.f32 %v1005, %v1246
        %v1288 = vmul.f32 %v1005, %v1250
        %v1289 = vmul.f32 %v1005, %v1254
        %v1290 = vmul.f32 %v1005, %v1258
        %v1291 = vmul.f32 %v1008, %v1230
        %v1292 = vmul.f32 %v1008, %v1234
        %v1293 = vmul.f32 %v1008, %v1238
        %v1294 = vmul.f32 %v1008, %v1242
        %v1295 = vmul.f32 %v1008, %v1246
        %v1296 = vmul.f32 %v1008, %v1250
        %v1297 = vmul.f32 %v1008, %v1254
        %v1298 = vmul.f32 %v1008, %v1258
        %v1299 = vmul.f32 %v1013, %v1230
        %v1300 = vmul.f32 %v1013, %v1234
        %v1301 = vmul.f32 %v1013, %v1238
        %v1302 = vmul.f32 %v1013, %v1242
        %v1303 = vmul.f32 %v1013, %v1246
        %v1304 = vmul.f32 %v1013, %v1250
        %v1305 = vmul.f32 %v1013, %v1254
        %v1306 = vmul.f32 %v1013, %v1258
        %v1307 = vmul.f32 %v1016, %v1230
        %v1308 = vmul.f32 %v1016, %v1234
        %v1309 = vmul.f32 %v1016, %v1238
        %v1310 = vmul.f32 %v1016, %v1242
        %v1311 = vmul.f32 %v1016, %v1246
        %v1312 = vmul.f32 %v1016, %v1250
        %v1313 = vmul.f32 %v1016, %v1254
        %v1314 = vmul.f32 %v1016, %v1258
        %v1315 = vmul.f32 %v1021, %v1230
        %v1316 = vmul.f32 %v1021, %v1234
        %v1317 = vmul.f32 %v1021, %v1238
        %v1318 = vmul.f32 %v1021, %v1242
        %v1319 = vmul.f32 %v1021, %v1246
        %v1320 = vmul.f32 %v1021, %v1250
        %v1321 = vmul.f32 %v1021, %v1254
        %v1322 = vmul.f32 %v1021, %v1258
        %v1323 = vmul.f32 %v1024, %v1230
        %v1324 = vmul.f32 %v1024, %v1234
        %v1325 = vmul.f32 %v1024, %v1238
        %v1326 = vmul.f32 %v1024, %v1242
        %v1327 = vmul.f32 %v1024, %v1246
        %v1328 = vmul.f32 %v1024, %v1250
        %v1329 = vmul.f32 %v1024, %v1254
        %v1330 = vmul.f32 %v1024, %v1258
        %v1331 = vpack.c.bf16 %v1268, %v1267
        %v1332 = vpack.c.bf16 %v1270, %v1269
        %v1333 = vpack.c.bf16 %v1272, %v1271
        %v1334 = vpack.c.bf16 %v1274, %v1273
        %v1335 = vpack.c.bf16 %v1276, %v1275
        %v1336 = vpack.c.bf16 %v1278, %v1277
        %v1337 = vpack.c.bf16 %v1280, %v1279
        %v1338 = vpack.c.bf16 %v1282, %v1281
        %v1339 = vpack.c.bf16 %v1284, %v1283
        %v1340 = vpack.c.bf16 %v1286, %v1285
        %v1341 = vpack.c.bf16 %v1288, %v1287
        %v1342 = vpack.c.bf16 %v1290, %v1289
        %v1343 = vpack.c.bf16 %v1292, %v1291
        %v1344 = vpack.c.bf16 %v1294, %v1293
        %v1345 = vpack.c.bf16 %v1296, %v1295
        %v1346 = vpack.c.bf16 %v1298, %v1297
        %v1347 = vpack.c.bf16 %v1300, %v1299
        %v1348 = vpack.c.bf16 %v1302, %v1301
        %v1349 = vpack.c.bf16 %v1304, %v1303
        %v1350 = vpack.c.bf16 %v1306, %v1305
        %v1351 = vpack.c.bf16 %v1308, %v1307
        %v1352 = vpack.c.bf16 %v1310, %v1309
        %v1353 = vpack.c.bf16 %v1312, %v1311
        %v1354 = vpack.c.bf16 %v1314, %v1313
        %v1355 = vpack.c.bf16 %v1316, %v1315
        %v1356 = vpack.c.bf16 %v1318, %v1317
        %v1357 = vpack.c.bf16 %v1320, %v1319
        %v1358 = vpack.c.bf16 %v1322, %v1321
        %v1359 = vpack.c.bf16 %v1324, %v1323
        %v1360 = vpack.c.bf16 %v1326, %v1325
        %v1361 = vpack.c.bf16 %v1328, %v1327
        %v1362 = vpack.c.bf16 %v1330, %v1329
        %v1363 = vmul.f32 %v1130, %v1230
        %v1364 = vmul.f32 %v1130, %v1234
        %v1365 = vmul.f32 %v1130, %v1238
        %v1366 = vmul.f32 %v1130, %v1242
        %v1367 = vmul.f32 %v1130, %v1246
        %v1368 = vmul.f32 %v1130, %v1250
        %v1369 = vmul.f32 %v1130, %v1254
        %v1370 = vmul.f32 %v1130, %v1258
        %v1371 = vmul.f32 %v1133, %v1230
        %v1372 = vmul.f32 %v1133, %v1234
        %v1373 = vmul.f32 %v1133, %v1238
        %v1374 = vmul.f32 %v1133, %v1242
        %v1375 = vmul.f32 %v1133, %v1246
        %v1376 = vmul.f32 %v1133, %v1250
        %v1377 = vmul.f32 %v1133, %v1254
        %v1378 = vmul.f32 %v1133, %v1258
        %v1379 = vmul.f32 %v1138, %v1230
        %v1380 = vmul.f32 %v1138, %v1234
        %v1381 = vmul.f32 %v1138, %v1238
        %v1382 = vmul.f32 %v1138, %v1242
        %v1383 = vmul.f32 %v1138, %v1246
        %v1384 = vmul.f32 %v1138, %v1250
        %v1385 = vmul.f32 %v1138, %v1254
        %v1386 = vmul.f32 %v1138, %v1258
        %v1387 = vmul.f32 %v1141, %v1230
        %v1388 = vmul.f32 %v1141, %v1234
        %v1389 = vmul.f32 %v1141, %v1238
        %v1390 = vmul.f32 %v1141, %v1242
        %v1391 = vmul.f32 %v1141, %v1246
        %v1392 = vmul.f32 %v1141, %v1250
        %v1393 = vmul.f32 %v1141, %v1254
        %v1394 = vmul.f32 %v1141, %v1258
        %v1395 = vmul.f32 %v1146, %v1230
        %v1396 = vmul.f32 %v1146, %v1234
        %v1397 = vmul.f32 %v1146, %v1238
        %v1398 = vmul.f32 %v1146, %v1242
        %v1399 = vmul.f32 %v1146, %v1246
        %v1400 = vmul.f32 %v1146, %v1250
        %v1401 = vmul.f32 %v1146, %v1254
        %v1402 = vmul.f32 %v1146, %v1258
        %v1403 = vmul.f32 %v1149, %v1230
        %v1404 = vmul.f32 %v1149, %v1234
        %v1405 = vmul.f32 %v1149, %v1238
        %v1406 = vmul.f32 %v1149, %v1242
        %v1407 = vmul.f32 %v1149, %v1246
        %v1408 = vmul.f32 %v1149, %v1250
        %v1409 = vmul.f32 %v1149, %v1254
        %v1410 = vmul.f32 %v1149, %v1258
        %v1411 = vmul.f32 %v1154, %v1230
        %v1412 = vmul.f32 %v1154, %v1234
        %v1413 = vmul.f32 %v1154, %v1238
        %v1414 = vmul.f32 %v1154, %v1242
        %v1415 = vmul.f32 %v1154, %v1246
        %v1416 = vmul.f32 %v1154, %v1250
        %v1417 = vmul.f32 %v1154, %v1254
        %v1418 = vmul.f32 %v1154, %v1258
        %v1419 = vmul.f32 %v1157, %v1230
        %v1420 = vmul.f32 %v1157, %v1234
        %v1421 = vmul.f32 %v1157, %v1238
        %v1422 = vmul.f32 %v1157, %v1242
        %v1423 = vmul.f32 %v1157, %v1246
        %v1424 = vmul.f32 %v1157, %v1250
        %v1425 = vmul.f32 %v1157, %v1254
        %v1426 = vmul.f32 %v1157, %v1258
        %v1427 = vpack.c.bf16 %v1364, %v1363
        %v1428 = vpack.c.bf16 %v1366, %v1365
        %v1429 = vpack.c.bf16 %v1368, %v1367
        %v1430 = vpack.c.bf16 %v1370, %v1369
        %v1431 = vpack.c.bf16 %v1372, %v1371
        %v1432 = vpack.c.bf16 %v1374, %v1373
        %v1433 = vpack.c.bf16 %v1376, %v1375
        %v1434 = vpack.c.bf16 %v1378, %v1377
        %v1435 = vpack.c.bf16 %v1380, %v1379
        %v1436 = vpack.c.bf16 %v1382, %v1381
        %v1437 = vpack.c.bf16 %v1384, %v1383
        %v1438 = vpack.c.bf16 %v1386, %v1385
        %v1439 = vpack.c.bf16 %v1388, %v1387
        %v1440 = vpack.c.bf16 %v1390, %v1389
        %v1441 = vpack.c.bf16 %v1392, %v1391
        %v1442 = vpack.c.bf16 %v1394, %v1393
        %v1443 = vpack.c.bf16 %v1396, %v1395
        %v1444 = vpack.c.bf16 %v1398, %v1397
        %v1445 = vpack.c.bf16 %v1400, %v1399
        %v1446 = vpack.c.bf16 %v1402, %v1401
        %v1447 = vpack.c.bf16 %v1404, %v1403
        %v1448 = vpack.c.bf16 %v1406, %v1405
        %v1449 = vpack.c.bf16 %v1408, %v1407
        %v1450 = vpack.c.bf16 %v1410, %v1409
        %v1451 = vpack.c.bf16 %v1412, %v1411
        %v1452 = vpack.c.bf16 %v1414, %v1413
        %v1453 = vpack.c.bf16 %v1416, %v1415
        %v1454 = vpack.c.bf16 %v1418, %v1417
        %v1455 = vpack.c.bf16 %v1420, %v1419
        %v1456 = vpack.c.bf16 %v1422, %v1421
        %v1457 = vpack.c.bf16 %v1424, %v1423
        %v1458 = vpack.c.bf16 %v1426, %v1425
        %v1459 = vld [vmem:[%s625] sm:$0x1]
        %v1460 = vld [vmem:[%s625 + $0x1] sm:$0x1]
        %v1461 = vld [vmem:[%s625 + $0x2] sm:$0x1]
        %v1462 = vld [vmem:[%s625 + $0x3] sm:$0x1]
        %v1463 = vld [vmem:[%s625 + $0x4] sm:$0x1]
        %v1464 = vld [vmem:[%s625 + $0x5] sm:$0x1]
        %v1465 = vld [vmem:[%s625 + $0x6] sm:$0x1]
        %v1466 = vld [vmem:[%s625 + $0x7] sm:$0x1]
        %v1475 = vlaneseq
        %v1476 = vshrl.u32 %v1475, 7
        %v1477 = vsub.s32 0, %v1476
        %v1478 = vrot.slane %v1459, %v1477
        %v1479 = vlaneseq
        %v1480 = vshrl.u32 %v1479, 7
        %v1481 = vsub.s32 0, %v1480
        %v1482 = vrot.slane %v1460, %v1481
        %v1483 = vlaneseq
        %v1484 = vshrl.u32 %v1483, 7
        %v1485 = vsub.s32 0, %v1484
        %v1486 = vrot.slane %v1461, %v1485
        %v1487 = vlaneseq
        %v1488 = vshrl.u32 %v1487, 7
        %v1489 = vsub.s32 0, %v1488
        %v1490 = vrot.slane %v1462, %v1489
        %v1491 = vlaneseq
        %v1492 = vshrl.u32 %v1491, 7
        %v1493 = vsub.s32 0, %v1492
        %v1494 = vrot.slane %v1463, %v1493
        %v1495 = vlaneseq
        %v1496 = vshrl.u32 %v1495, 7
        %v1497 = vsub.s32 0, %v1496
        %v1498 = vrot.slane %v1464, %v1497
        %v1499 = vlaneseq
        %v1500 = vshrl.u32 %v1499, 7
        %v1501 = vsub.s32 0, %v1500
        %v1502 = vrot.slane %v1465, %v1501
        %v1503 = vlaneseq
        %v1504 = vshrl.u32 %v1503, 7
        %v1505 = vsub.s32 0, %v1504
        %v1506 = vrot.slane %v1466, %v1505
        %1515 = vmatprep.subr.bf16.mxu0 0
        %1516 = vmatpush1.bf16.xpose.msra.mxu0 0
        %1517 = vmatprep.subr.bf16.mxu0 0
        %1518 = vmatpush1.bf16.xpose.msra.mxu0 0
        %1519 = vmatprep.subr.bf16.mxu0 0
        %1520 = vmatpush1.bf16.xpose.msra.mxu0 0
        %1521 = vmatprep.subr.bf16.mxu0 0
        %1522 = vmatpush1.bf16.xpose.msra.mxu0 0
        %1523 = vmatprep.subr.bf16.mxu0 0
        %1524 = vmatpush1.bf16.xpose.msra.mxu0 %v1334
        %1525 = vmatprep.subr.bf16.mxu0 0
        %1526 = vmatpush1.bf16.xpose.msra.mxu0 %v1333
        %1527 = vmatprep.subr.bf16.mxu0 0
        %1528 = vmatpush1.bf16.xpose.msra.mxu0 %v1332
        %1529 = vmatprep.subr.bf16.mxu0 0
        %1530 = vmatpush1.bf16.xpose.msra.mxu0 %v1331
        %1531 = vmatprep.subr.bf16.mxu0 0
        %1532 = vmatpush2.bf16.xpose.msra.mxu0 0
        %1533 = vmatprep.subr.bf16.mxu0 0
        %1534 = vmatpush2.bf16.xpose.msra.mxu0 0
        %1535 = vmatprep.subr.bf16.mxu0 0
        %1536 = vmatpush2.bf16.xpose.msra.mxu0 0
        %1537 = vmatprep.subr.bf16.mxu0 0
        %1538 = vmatpush2.bf16.xpose.msra.mxu0 0
        %1539 = vmatprep.subr.bf16.mxu0 0
        %1540 = vmatpush2.bf16.xpose.msra.mxu0 0
        %1541 = vmatprep.subr.bf16.mxu0 0
        %1542 = vmatpush2.bf16.xpose.msra.mxu0 0
        %1543 = vmatprep.subr.bf16.mxu0 0
        %1544 = vmatpush2.bf16.xpose.msra.mxu0 0
        %1545 = vmatprep.subr.bf16.mxu0 0
        %1546 = vmatpush2.bf16.xpose.msra.mxu0 0
        %1547 = vmatprep.mubr.bf16.mxu0 0
        %1548 = vmatmul.mubr.bf16.gmra.mxu0 %v1168
        %v1549 = vpop.f32.mrf.mxu0
        %v1550 = vadd.f32 %v1478, %v1549
        %v1551 = vpop.f32.mrf.mxu0
        %v1552 = vpop.f32.mrf.mxu0
        %v1553 = vpop.f32.mrf.mxu0
        %1554 = vdwg.mxu0
        %1555 = vmatprep.subr.bf16.mxu0 0
        %1556 = vmatpush1.bf16.xpose.msra.mxu0 0
        %1557 = vmatprep.subr.bf16.mxu0 0
        %1558 = vmatpush1.bf16.xpose.msra.mxu0 0
        %1559 = vmatprep.subr.bf16.mxu0 0
        %1560 = vmatpush1.bf16.xpose.msra.mxu0 0
        %1561 = vmatprep.subr.bf16.mxu0 0
        %1562 = vmatpush1.bf16.xpose.msra.mxu0 0
        %1563 = vmatprep.subr.bf16.mxu0 0
        %1564 = vmatpush1.bf16.xpose.msra.mxu0 %v1338
        %1565 = vmatprep.subr.bf16.mxu0 0
        %1566 = vmatpush1.bf16.xpose.msra.mxu0 %v1337
        %1567 = vmatprep.subr.bf16.mxu0 0
        %1568 = vmatpush1.bf16.xpose.msra.mxu0 %v1336
        %1569 = vmatprep.subr.bf16.mxu0 0
        %1570 = vmatpush1.bf16.xpose.msra.mxu0 %v1335
        %1571 = vmatprep.subr.bf16.mxu0 0
        %1572 = vmatpush2.bf16.xpose.msra.mxu0 0
        %1573 = vmatprep.subr.bf16.mxu0 0
        %1574 = vmatpush2.bf16.xpose.msra.mxu0 0
        %1575 = vmatprep.subr.bf16.mxu0 0
        %1576 = vmatpush2.bf16.xpose.msra.mxu0 0
        %1577 = vmatprep.subr.bf16.mxu0 0
        %1578 = vmatpush2.bf16.xpose.msra.mxu0 0
        %1579 = vmatprep.subr.bf16.mxu0 0
        %1580 = vmatpush2.bf16.xpose.msra.mxu0 0
        %1581 = vmatprep.subr.bf16.mxu0 0
        %1582 = vmatpush2.bf16.xpose.msra.mxu0 0
        %1583 = vmatprep.subr.bf16.mxu0 0
        %1584 = vmatpush2.bf16.xpose.msra.mxu0 0
        %1585 = vmatprep.subr.bf16.mxu0 0
        %1586 = vmatpush2.bf16.xpose.msra.mxu0 0
        %1587 = vmatprep.mubr.bf16.mxu0 0
        %1588 = vmatmul.mubr.bf16.gmra.mxu0 %v1169
        %v1589 = vpop.f32.mrf.mxu0
        %v1590 = vadd.f32 %v1482, %v1589
        %v1591 = vpop.f32.mrf.mxu0
        %v1592 = vpop.f32.mrf.mxu0
        %v1593 = vpop.f32.mrf.mxu0
        %1594 = vdwg.mxu0
        %1595 = vmatprep.subr.bf16.mxu0 0
        %1596 = vmatpush1.bf16.xpose.msra.mxu0 0
        %1597 = vmatprep.subr.bf16.mxu0 0
        %1598 = vmatpush1.bf16.xpose.msra.mxu0 0
        %1599 = vmatprep.subr.bf16.mxu0 0
        %1600 = vmatpush1.bf16.xpose.msra.mxu0 0
        %1601 = vmatprep.subr.bf16.mxu0 0
        %1602 = vmatpush1.bf16.xpose.msra.mxu0 0
        %1603 = vmatprep.subr.bf16.mxu0 0
        %1604 = vmatpush1.bf16.xpose.msra.mxu0 %v1342
        %1605 = vmatprep.subr.bf16.mxu0 0
        %1606 = vmatpush1.bf16.xpose.msra.mxu0 %v1341
        %1607 = vmatprep.subr.bf16.mxu0 0
        %1608 = vmatpush1.bf16.xpose.msra.mxu0 %v1340
        %1609 = vmatprep.subr.bf16.mxu0 0
        %1610 = vmatpush1.bf16.xpose.msra.mxu0 %v1339
        %1611 = vmatprep.subr.bf16.mxu0 0
        %1612 = vmatpush2.bf16.xpose.msra.mxu0 0
        %1613 = vmatprep.subr.bf16.mxu0 0
        %1614 = vmatpush2.bf16.xpose.msra.mxu0 0
        %1615 = vmatprep.subr.bf16.mxu0 0
        %1616 = vmatpush2.bf16.xpose.msra.mxu0 0
        %1617 = vmatprep.subr.bf16.mxu0 0
        %1618 = vmatpush2.bf16.xpose.msra.mxu0 0
        %1619 = vmatprep.subr.bf16.mxu0 0
        %1620 = vmatpush2.bf16.xpose.msra.mxu0 0
        %1621 = vmatprep.subr.bf16.mxu0 0
        %1622 = vmatpush2.bf16.xpose.msra.mxu0 0
        %1623 = vmatprep.subr.bf16.mxu0 0
        %1624 = vmatpush2.bf16.xpose.msra.mxu0 0
        %1625 = vmatprep.subr.bf16.mxu0 0
        %1626 = vmatpush2.bf16.xpose.msra.mxu0 0
        %1627 = vmatprep.mubr.bf16.mxu0 0
        %1628 = vmatmul.mubr.bf16.gmra.mxu0 %v1170
        %v1629 = vpop.f32.mrf.mxu0
        %v1630 = vadd.f32 %v1486, %v1629
        %v1631 = vpop.f32.mrf.mxu0
        %v1632 = vpop.f32.mrf.mxu0
        %v1633 = vpop.f32.mrf.mxu0
        %1634 = vdwg.mxu0
        %1635 = vmatprep.subr.bf16.mxu0 0
        %1636 = vmatpush1.bf16.xpose.msra.mxu0 0
        %1637 = vmatprep.subr.bf16.mxu0 0
        %1638 = vmatpush1.bf16.xpose.msra.mxu0 0
        %1639 = vmatprep.subr.bf16.mxu0 0
        %1640 = vmatpush1.bf16.xpose.msra.mxu0 0
        %1641 = vmatprep.subr.bf16.mxu0 0
        %1642 = vmatpush1.bf16.xpose.msra.mxu0 0
        %1643 = vmatprep.subr.bf16.mxu0 0
        %1644 = vmatpush1.bf16.xpose.msra.mxu0 %v1346
        %1645 = vmatprep.subr.bf16.mxu0 0
        %1646 = vmatpush1.bf16.xpose.msra.mxu0 %v1345
        %1647 = vmatprep.subr.bf16.mxu0 0
        %1648 = vmatpush1.bf16.xpose.msra.mxu0 %v1344
        %1649 = vmatprep.subr.bf16.mxu0 0
        %1650 = vmatpush1.bf16.xpose.msra.mxu0 %v1343
        %1651 = vmatprep.subr.bf16.mxu0 0
        %1652 = vmatpush2.bf16.xpose.msra.mxu0 0
        %1653 = vmatprep.subr.bf16.mxu0 0
        %1654 = vmatpush2.bf16.xpose.msra.mxu0 0
        %1655 = vmatprep.subr.bf16.mxu0 0
        %1656 = vmatpush2.bf16.xpose.msra.mxu0 0
        %1657 = vmatprep.subr.bf16.mxu0 0
        %1658 = vmatpush2.bf16.xpose.msra.mxu0 0
        %1659 = vmatprep.subr.bf16.mxu0 0
        %1660 = vmatpush2.bf16.xpose.msra.mxu0 0
        %1661 = vmatprep.subr.bf16.mxu0 0
        %1662 = vmatpush2.bf16.xpose.msra.mxu0 0
        %1663 = vmatprep.subr.bf16.mxu0 0
        %1664 = vmatpush2.bf16.xpose.msra.mxu0 0
        %1665 = vmatprep.subr.bf16.mxu0 0
        %1666 = vmatpush2.bf16.xpose.msra.mxu0 0
        %1667 = vmatprep.mubr.bf16.mxu0 0
        %1668 = vmatmul.mubr.bf16.gmra.mxu0 %v1171
        %v1669 = vpop.f32.mrf.mxu0
        %v1670 = vadd.f32 %v1490, %v1669
        %v1671 = vpop.f32.mrf.mxu0
        %v1672 = vpop.f32.mrf.mxu0
        %v1673 = vpop.f32.mrf.mxu0
        %1674 = vdwg.mxu0
        %1675 = vmatprep.subr.bf16.mxu0 0
        %1676 = vmatpush1.bf16.xpose.msra.mxu0 0
        %1677 = vmatprep.subr.bf16.mxu0 0
        %1678 = vmatpush1.bf16.xpose.msra.mxu0 0
        %1679 = vmatprep.subr.bf16.mxu0 0
        %1680 = vmatpush1.bf16.xpose.msra.mxu0 0
        %1681 = vmatprep.subr.bf16.mxu0 0
        %1682 = vmatpush1.bf16.xpose.msra.mxu0 0
        %1683 = vmatprep.subr.bf16.mxu0 0
        %1684 = vmatpush1.bf16.xpose.msra.mxu0 %v1350
        %1685 = vmatprep.subr.bf16.mxu0 0
        %1686 = vmatpush1.bf16.xpose.msra.mxu0 %v1349
        %1687 = vmatprep.subr.bf16.mxu0 0
        %1688 = vmatpush1.bf16.xpose.msra.mxu0 %v1348
        %1689 = vmatprep.subr.bf16.mxu0 0
        %1690 = vmatpush1.bf16.xpose.msra.mxu0 %v1347
        %1691 = vmatprep.subr.bf16.mxu0 0
        %1692 = vmatpush2.bf16.xpose.msra.mxu0 0
        %1693 = vmatprep.subr.bf16.mxu0 0
        %1694 = vmatpush2.bf16.xpose.msra.mxu0 0
        %1695 = vmatprep.subr.bf16.mxu0 0
        %1696 = vmatpush2.bf16.xpose.msra.mxu0 0
        %1697 = vmatprep.subr.bf16.mxu0 0
        %1698 = vmatpush2.bf16.xpose.msra.mxu0 0
        %1699 = vmatprep.subr.bf16.mxu0 0
        %1700 = vmatpush2.bf16.xpose.msra.mxu0 0
        %1701 = vmatprep.subr.bf16.mxu0 0
        %1702 = vmatpush2.bf16.xpose.msra.mxu0 0
        %1703 = vmatprep.subr.bf16.mxu0 0
        %1704 = vmatpush2.bf16.xpose.msra.mxu0 0
        %1705 = vmatprep.subr.bf16.mxu0 0
        %1706 = vmatpush2.bf16.xpose.msra.mxu0 0
        %1707 = vmatprep.mubr.bf16.mxu0 0
        %1708 = vmatmul.mubr.bf16.gmra.mxu0 %v1172
        %v1709 = vpop.f32.mrf.mxu0
        %v1710 = vadd.f32 %v1494, %v1709
        %v1711 = vpop.f32.mrf.mxu0
        %v1712 = vpop.f32.mrf.mxu0
        %v1713 = vpop.f32.mrf.mxu0
        %1714 = vdwg.mxu0
        %1715 = vmatprep.subr.bf16.mxu0 0
        %1716 = vmatpush1.bf16.xpose.msra.mxu0 0
        %1717 = vmatprep.subr.bf16.mxu0 0
        %1718 = vmatpush1.bf16.xpose.msra.mxu0 0
        %1719 = vmatprep.subr.bf16.mxu0 0
        %1720 = vmatpush1.bf16.xpose.msra.mxu0 0
        %1721 = vmatprep.subr.bf16.mxu0 0
        %1722 = vmatpush1.bf16.xpose.msra.mxu0 0
        %1723 = vmatprep.subr.bf16.mxu0 0
        %1724 = vmatpush1.bf16.xpose.msra.mxu0 %v1354
        %1725 = vmatprep.subr.bf16.mxu0 0
        %1726 = vmatpush1.bf16.xpose.msra.mxu0 %v1353
        %1727 = vmatprep.subr.bf16.mxu0 0
        %1728 = vmatpush1.bf16.xpose.msra.mxu0 %v1352
        %1729 = vmatprep.subr.bf16.mxu0 0
        %1730 = vmatpush1.bf16.xpose.msra.mxu0 %v1351
        %1731 = vmatprep.subr.bf16.mxu0 0
        %1732 = vmatpush2.bf16.xpose.msra.mxu0 0
        %1733 = vmatprep.subr.bf16.mxu0 0
        %1734 = vmatpush2.bf16.xpose.msra.mxu0 0
        %1735 = vmatprep.subr.bf16.mxu0 0
        %1736 = vmatpush2.bf16.xpose.msra.mxu0 0
        %1737 = vmatprep.subr.bf16.mxu0 0
        %1738 = vmatpush2.bf16.xpose.msra.mxu0 0
        %1739 = vmatprep.subr.bf16.mxu0 0
        %1740 = vmatpush2.bf16.xpose.msra.mxu0 0
        %1741 = vmatprep.subr.bf16.mxu0 0
        %1742 = vmatpush2.bf16.xpose.msra.mxu0 0
        %1743 = vmatprep.subr.bf16.mxu0 0
        %1744 = vmatpush2.bf16.xpose.msra.mxu0 0
        %1745 = vmatprep.subr.bf16.mxu0 0
        %1746 = vmatpush2.bf16.xpose.msra.mxu0 0
        %1747 = vmatprep.mubr.bf16.mxu0 0
        %1748 = vmatmul.mubr.bf16.gmra.mxu0 %v1173
        %v1749 = vpop.f32.mrf.mxu0
        %v1750 = vadd.f32 %v1498, %v1749
        %v1751 = vpop.f32.mrf.mxu0
        %v1752 = vpop.f32.mrf.mxu0
        %v1753 = vpop.f32.mrf.mxu0
        %1754 = vdwg.mxu0
        %1755 = vmatprep.subr.bf16.mxu0 0
        %1756 = vmatpush1.bf16.xpose.msra.mxu0 0
        %1757 = vmatprep.subr.bf16.mxu0 0
        %1758 = vmatpush1.bf16.xpose.msra.mxu0 0
        %1759 = vmatprep.subr.bf16.mxu0 0
        %1760 = vmatpush1.bf16.xpose.msra.mxu0 0
        %1761 = vmatprep.subr.bf16.mxu0 0
        %1762 = vmatpush1.bf16.xpose.msra.mxu0 0
        %1763 = vmatprep.subr.bf16.mxu0 0
        %1764 = vmatpush1.bf16.xpose.msra.mxu0 %v1358
        %1765 = vmatprep.subr.bf16.mxu0 0
        %1766 = vmatpush1.bf16.xpose.msra.mxu0 %v1357
        %1767 = vmatprep.subr.bf16.mxu0 0
        %1768 = vmatpush1.bf16.xpose.msra.mxu0 %v1356
        %1769 = vmatprep.subr.bf16.mxu0 0
        %1770 = vmatpush1.bf16.xpose.msra.mxu0 %v1355
        %1771 = vmatprep.subr.bf16.mxu0 0
        %1772 = vmatpush2.bf16.xpose.msra.mxu0 0
        %1773 = vmatprep.subr.bf16.mxu0 0
        %1774 = vmatpush2.bf16.xpose.msra.mxu0 0
        %1775 = vmatprep.subr.bf16.mxu0 0
        %1776 = vmatpush2.bf16.xpose.msra.mxu0 0
        %1777 = vmatprep.subr.bf16.mxu0 0
        %1778 = vmatpush2.bf16.xpose.msra.mxu0 0
        %1779 = vmatprep.subr.bf16.mxu0 0
        %1780 = vmatpush2.bf16.xpose.msra.mxu0 0
        %1781 = vmatprep.subr.bf16.mxu0 0
        %1782 = vmatpush2.bf16.xpose.msra.mxu0 0
        %1783 = vmatprep.subr.bf16.mxu0 0
        %1784 = vmatpush2.bf16.xpose.msra.mxu0 0
        %1785 = vmatprep.subr.bf16.mxu0 0
        %1786 = vmatpush2.bf16.xpose.msra.mxu0 0
        %1787 = vmatprep.mubr.bf16.mxu0 0
        %1788 = vmatmul.mubr.bf16.gmra.mxu0 %v1174
        %v1789 = vpop.f32.mrf.mxu0
        %v1790 = vadd.f32 %v1502, %v1789
        %v1791 = vpop.f32.mrf.mxu0
        %v1792 = vpop.f32.mrf.mxu0
        %v1793 = vpop.f32.mrf.mxu0
        %1794 = vdwg.mxu0
        %1795 = vmatprep.subr.bf16.mxu0 0
        %1796 = vmatpush1.bf16.xpose.msra.mxu0 0
        %1797 = vmatprep.subr.bf16.mxu0 0
        %1798 = vmatpush1.bf16.xpose.msra.mxu0 0
        %1799 = vmatprep.subr.bf16.mxu0 0
        %1800 = vmatpush1.bf16.xpose.msra.mxu0 0
        %1801 = vmatprep.subr.bf16.mxu0 0
        %1802 = vmatpush1.bf16.xpose.msra.mxu0 0
        %1803 = vmatprep.subr.bf16.mxu0 0
        %1804 = vmatpush1.bf16.xpose.msra.mxu0 %v1362
        %1805 = vmatprep.subr.bf16.mxu0 0
        %1806 = vmatpush1.bf16.xpose.msra.mxu0 %v1361
        %1807 = vmatprep.subr.bf16.mxu0 0
        %1808 = vmatpush1.bf16.xpose.msra.mxu0 %v1360
        %1809 = vmatprep.subr.bf16.mxu0 0
        %1810 = vmatpush1.bf16.xpose.msra.mxu0 %v1359
        %1811 = vmatprep.subr.bf16.mxu0 0
        %1812 = vmatpush2.bf16.xpose.msra.mxu0 0
        %1813 = vmatprep.subr.bf16.mxu0 0
        %1814 = vmatpush2.bf16.xpose.msra.mxu0 0
        %1815 = vmatprep.subr.bf16.mxu0 0
        %1816 = vmatpush2.bf16.xpose.msra.mxu0 0
        %1817 = vmatprep.subr.bf16.mxu0 0
        %1818 = vmatpush2.bf16.xpose.msra.mxu0 0
        %1819 = vmatprep.subr.bf16.mxu0 0
        %1820 = vmatpush2.bf16.xpose.msra.mxu0 0
        %1821 = vmatprep.subr.bf16.mxu0 0
        %1822 = vmatpush2.bf16.xpose.msra.mxu0 0
        %1823 = vmatprep.subr.bf16.mxu0 0
        %1824 = vmatpush2.bf16.xpose.msra.mxu0 0
        %1825 = vmatprep.subr.bf16.mxu0 0
        %1826 = vmatpush2.bf16.xpose.msra.mxu0 0
        %1827 = vmatprep.mubr.bf16.mxu0 0
        %1828 = vmatmul.mubr.bf16.gmra.mxu0 %v1175
        %v1829 = vpop.f32.mrf.mxu0
        %v1830 = vadd.f32 %v1506, %v1829
        %v1831 = vpop.f32.mrf.mxu0
        %v1832 = vpop.f32.mrf.mxu0
        %v1833 = vpop.f32.mrf.mxu0
        %1834 = vdwg.mxu0
        %vm1835 = vcmask 523264
        %v1836 = vsel %vm1835, %v1550, -inf
        %1837 = vmax.xlane.f32.xlu0 %v1836
        %v1838 = vpop.xlane.xlu0 %1837
        %v1839 = vsel %vm1835, %v1590, -inf
        %1840 = vmax.xlane.f32.xlu0 %v1839
        %v1841 = vpop.xlane.xlu0 %1840
        %v1842 = vsel %vm1835, %v1630, -inf
        %1843 = vmax.xlane.f32.xlu0 %v1842
        %v1844 = vpop.xlane.xlu0 %1843
        %v1845 = vsel %vm1835, %v1670, -inf
        %1846 = vmax.xlane.f32.xlu0 %v1845
        %v1847 = vpop.xlane.xlu0 %1846
        %v1848 = vsel %vm1835, %v1710, -inf
        %1849 = vmax.xlane.f32.xlu0 %v1848
        %v1850 = vpop.xlane.xlu0 %1849
        %v1851 = vsel %vm1835, %v1750, -inf
        %1852 = vmax.xlane.f32.xlu0 %v1851
        %v1853 = vpop.xlane.xlu0 %1852
        %v1854 = vsel %vm1835, %v1790, -inf
        %1855 = vmax.xlane.f32.xlu0 %v1854
        %v1856 = vpop.xlane.xlu0 %1855
        %v1857 = vsel %vm1835, %v1830, -inf
        %1858 = vmax.xlane.f32.xlu0 %v1857
        %v1859 = vpop.xlane.xlu0 %1858
        %v1860 = vsub.f32 %v1550, %v1838
        %v1861 = vsub.f32 %v1590, %v1841
        %v1862 = vsub.f32 %v1630, %v1844
        %v1863 = vsub.f32 %v1670, %v1847
        %v1864 = vsub.f32 %v1710, %v1850
        %v1865 = vsub.f32 %v1750, %v1853
        %v1866 = vsub.f32 %v1790, %v1856
        %v1867 = vsub.f32 %v1830, %v1859
        %v1868 = vmul.f32 %v1860, 1.442695
        %v1869 = vpow.pop %v1868
        %v1870 = vmul.f32 %v1861, 1.442695
        %v1871 = vpow.pop %v1870
        %v1872 = vmul.f32 %v1862, 1.442695
        %v1873 = vpow.pop %v1872
        %v1874 = vmul.f32 %v1863, 1.442695
        %v1875 = vpow.pop %v1874
        %v1876 = vmul.f32 %v1864, 1.442695
        %v1877 = vpow.pop %v1876
        %v1878 = vmul.f32 %v1865, 1.442695
        %v1879 = vpow.pop %v1878
        %v1880 = vmul.f32 %v1866, 1.442695
        %v1881 = vpow.pop %v1880
        %v1882 = vmul.f32 %v1867, 1.442695
        %v1883 = vpow.pop %v1882
        %v1884 = vld [vmem:[#allocation20] sm:$0xff]
        %v1885 = vld [vmem:[#allocation20 + $0x8] sm:$0xff]
        %v1886 = vld [vmem:[#allocation20 + $0x10] sm:$0xff]
        %v1887 = vld [vmem:[#allocation20 + $0x18] sm:$0xff]
        %v1888 = vld [vmem:[#allocation20 + $0x20] sm:$0xff]
        %v1889 = vld [vmem:[#allocation20 + $0x28] sm:$0xff]
        %v1890 = vld [vmem:[#allocation20 + $0x30] sm:$0xff]
        %v1891 = vld [vmem:[#allocation20 + $0x38] sm:$0xff]
        %v1893 = vsel %vm1835, %v1869, 0
        %v1896 = vsel %vm1835, %v1871, 0
        %v1899 = vsel %vm1835, %v1873, 0
        %v1902 = vsel %vm1835, %v1875, 0
        %v1905 = vsel %vm1835, %v1877, 0
        %v1908 = vsel %vm1835, %v1879, 0
        %v1911 = vsel %vm1835, %v1881, 0
        %v1914 = vsel %vm1835, %v1883, 0
        %1916 = vmatprep.subr.mxu0 0.0
        %1917 = vmatpush1.msra.mxu0 0.0
        %1918 = vmatprep.subr.mxu0 0.0
        %1919 = vmatpush1.msra.mxu0 0.0
        %1920 = vmatprep.subr.mxu0 0.0
        %1921 = vmatpush1.msra.mxu0 0.0
        %1922 = vmatprep.subr.mxu0 0.0
        %1923 = vmatpush1.msra.mxu0 0.0
        %1924 = vmatprep.subr.mxu0 0.0
        %1925 = vmatpush1.msra.mxu0 0.0
        %1926 = vmatprep.subr.mxu0 0.0
        %1927 = vmatpush1.msra.mxu0 0.0
        %1928 = vmatprep.subr.mxu0 0.0
        %1929 = vmatpush1.msra.mxu0 0.0
        %1930 = vmatprep.subr.mxu0 0.0
        %1931 = vmatpush1.msra.mxu0 0.0
        %1932 = vmatprep.subr.mxu0 0.0
        %1933 = vmatpush1.msra.mxu0 %v1891
        %1934 = vmatprep.subr.mxu0 0.0
        %1935 = vmatpush1.msra.mxu0 %v1890
        %1936 = vmatprep.subr.mxu0 0.0
        %1937 = vmatpush1.msra.mxu0 %v1889
        %1938 = vmatprep.subr.mxu0 0.0
        %1939 = vmatpush1.msra.mxu0 %v1888
        %1940 = vmatprep.subr.mxu0 0.0
        %1941 = vmatpush1.msra.mxu0 %v1887
        %1942 = vmatprep.subr.mxu0 0.0
        %1943 = vmatpush1.msra.mxu0 %v1886
        %1944 = vmatprep.subr.mxu0 0.0
        %1945 = vmatpush1.msra.mxu0 %v1885
        %1946 = vmatprep.subr.mxu0 0.0
        %1947 = vmatpush1.msra.mxu0 %v1884
        %1948 = vmatprep.subr.mxu0 0.0
        %1949 = vmatpush2.msra.mxu0 0.0
        %1950 = vmatprep.subr.mxu0 0.0
        %1951 = vmatpush2.msra.mxu0 0.0
        %1952 = vmatprep.subr.mxu0 0.0
        %1953 = vmatpush2.msra.mxu0 0.0
        %1954 = vmatprep.subr.mxu0 0.0
        %1955 = vmatpush2.msra.mxu0 0.0
        %1956 = vmatprep.subr.mxu0 0.0
        %1957 = vmatpush2.msra.mxu0 0.0
        %1958 = vmatprep.subr.mxu0 0.0
        %1959 = vmatpush2.msra.mxu0 0.0
        %1960 = vmatprep.subr.mxu0 0.0
        %1961 = vmatpush2.msra.mxu0 0.0
        %1962 = vmatprep.subr.mxu0 0.0
        %1963 = vmatpush2.msra.mxu0 0.0
        %1964 = vmatprep.subr.mxu0 0.0
        %1965 = vmatpush2.msra.mxu0 0.0
        %1966 = vmatprep.subr.mxu0 0.0
        %1967 = vmatpush2.msra.mxu0 0.0
        %1968 = vmatprep.subr.mxu0 0.0
        %1969 = vmatpush2.msra.mxu0 0.0
        %1970 = vmatprep.subr.mxu0 0.0
        %1971 = vmatpush2.msra.mxu0 0.0
        %1972 = vmatprep.subr.mxu0 0.0
        %1973 = vmatpush2.msra.mxu0 0.0
        %1974 = vmatprep.subr.mxu0 0.0
        %1975 = vmatpush2.msra.mxu0 0.0
        %1976 = vmatprep.subr.mxu0 0.0
        %1977 = vmatpush2.msra.mxu0 0.0
        %1978 = vmatprep.subr.mxu0 0.0
        %1979 = vmatpush2.msra.mxu0 0.0
        %1980 = vmatprep.mubr.f32.mxu0 0.0
        %1981 = vmatmul.mubr.f32.gmra.mxu0 %v1893
        %v1982 = vpop.f32.mrf.mxu0
        %v1983 = vadd.f32 0.0, %v1982
        %v1984 = vpop.f32.mrf.mxu0
        %1985 = vmatprep.mubr.f32.mxu0 0.0
        %1986 = vmatmul.mubr.f32.gmra.mxu0 %v1896
        %v1987 = vpop.f32.mrf.mxu0
        %v1988 = vadd.f32 0.0, %v1987
        %v1989 = vpop.f32.mrf.mxu0
        %1990 = vmatprep.mubr.f32.mxu0 0.0
        %1991 = vmatmul.mubr.f32.gmra.mxu0 %v1899
        %v1992 = vpop.f32.mrf.mxu0
        %v1993 = vadd.f32 0.0, %v1992
        %v1994 = vpop.f32.mrf.mxu0
        %1995 = vmatprep.mubr.f32.mxu0 0.0
        %1996 = vmatmul.mubr.f32.gmra.mxu0 %v1902
        %v1997 = vpop.f32.mrf.mxu0
        %v1998 = vadd.f32 0.0, %v1997
        %v1999 = vpop.f32.mrf.mxu0
        %2000 = vmatprep.mubr.f32.mxu0 0.0
        %2001 = vmatmul.mubr.f32.gmra.mxu0 %v1905
        %v2002 = vpop.f32.mrf.mxu0
        %v2003 = vadd.f32 0.0, %v2002
        %v2004 = vpop.f32.mrf.mxu0
        %2005 = vmatprep.mubr.f32.mxu0 0.0
        %2006 = vmatmul.mubr.f32.gmra.mxu0 %v1908
        %v2007 = vpop.f32.mrf.mxu0
        %v2008 = vadd.f32 0.0, %v2007
        %v2009 = vpop.f32.mrf.mxu0
        %2010 = vmatprep.mubr.f32.mxu0 0.0
        %2011 = vmatmul.mubr.f32.gmra.mxu0 %v1911
        %v2012 = vpop.f32.mrf.mxu0
        %v2013 = vadd.f32 0.0, %v2012
        %v2014 = vpop.f32.mrf.mxu0
        %2015 = vmatprep.mubr.f32.mxu0 0.0
        %2016 = vmatmul.mubr.f32.gmra.mxu0 %v1914
        %v2017 = vpop.f32.mrf.mxu0
        %v2018 = vadd.f32 0.0, %v2017
        %v2019 = vpop.f32.mrf.mxu0
        %2020 = vdwg.mxu0
        %v2021 = vmax.f32 %v1983, 1e-30
        %v2022 = vmax.f32 %v1988, 1e-30
        %v2023 = vmax.f32 %v1993, 1e-30
        %v2024 = vmax.f32 %v1998, 1e-30
        %v2025 = vmax.f32 %v2003, 1e-30
        %v2026 = vmax.f32 %v2008, 1e-30
        %v2027 = vmax.f32 %v2013, 1e-30
        %v2028 = vmax.f32 %v2018, 1e-30
        %v2029 = vrcp.pop %v2021
        %v2030 = vrcp.pop %v2022
        %v2031 = vrcp.pop %v2023
        %v2032 = vrcp.pop %v2024
        %v2033 = vrcp.pop %v2025
        %v2034 = vrcp.pop %v2026
        %v2035 = vrcp.pop %v2027
        %v2036 = vrcp.pop %v2028
        %v2037 = vmul.f32 %v1869, %v2029
        %v2038 = vmul.f32 %v1871, %v2030
        %v2039 = vmul.f32 %v1873, %v2031
        %v2040 = vmul.f32 %v1875, %v2032
        %v2041 = vmul.f32 %v1877, %v2033
        %v2042 = vmul.f32 %v1879, %v2034
        %v2043 = vmul.f32 %v1881, %v2035
        %v2044 = vmul.f32 %v1883, %v2036
        %v2045 = vpack.c.bf16 %v2037, %v2037
        %v2046 = vpack.c.bf16 %v2038, %v2038
        %v2047 = vpack.c.bf16 %v2039, %v2039
        %v2048 = vpack.c.bf16 %v2040, %v2040
        %v2049 = vpack.c.bf16 %v2041, %v2041
        %v2050 = vpack.c.bf16 %v2042, %v2042
        %v2051 = vpack.c.bf16 %v2043, %v2043
        %v2052 = vpack.c.bf16 %v2044, %v2044
        %v2054 = vsel %vm1835, %v2045, 0
        %2056 = vmatprep.subr.bf16.mxu0 0
        %2057 = vmatpush1.bf16.msra.mxu0 0
        %2058 = vmatprep.subr.bf16.mxu0 0
        %2059 = vmatpush1.bf16.msra.mxu0 0
        %2060 = vmatprep.subr.bf16.mxu0 0
        %2061 = vmatpush1.bf16.msra.mxu0 0
        %2062 = vmatprep.subr.bf16.mxu0 0
        %2063 = vmatpush1.bf16.msra.mxu0 0
        %2064 = vmatprep.subr.bf16.mxu0 0
        %2065 = vmatpush1.bf16.msra.mxu0 %v1430
        %2066 = vmatprep.subr.bf16.mxu0 0
        %2067 = vmatpush1.bf16.msra.mxu0 %v1429
        %2068 = vmatprep.subr.bf16.mxu0 0
        %2069 = vmatpush1.bf16.msra.mxu0 %v1428
        %2070 = vmatprep.subr.bf16.mxu0 0
        %2071 = vmatpush1.bf16.msra.mxu0 %v1427
        %2072 = vmatprep.subr.bf16.mxu0 0
        %2073 = vmatpush2.bf16.msra.mxu0 0
        %2074 = vmatprep.subr.bf16.mxu0 0
        %2075 = vmatpush2.bf16.msra.mxu0 0
        %2076 = vmatprep.subr.bf16.mxu0 0
        %2077 = vmatpush2.bf16.msra.mxu0 0
        %2078 = vmatprep.subr.bf16.mxu0 0
        %2079 = vmatpush2.bf16.msra.mxu0 0
        %2080 = vmatprep.subr.bf16.mxu0 0
        %2081 = vmatpush2.bf16.msra.mxu0 0
        %2082 = vmatprep.subr.bf16.mxu0 0
        %2083 = vmatpush2.bf16.msra.mxu0 0
        %2084 = vmatprep.subr.bf16.mxu0 0
        %2085 = vmatpush2.bf16.msra.mxu0 0
        %2086 = vmatprep.subr.bf16.mxu0 0
        %2087 = vmatpush2.bf16.msra.mxu0 0
        %2088 = vmatprep.mubr.bf16.mxu0 0
        %2089 = vmatmul.mubr.bf16.gmra.mxu0 %v2054
        %v2090 = vpop.f32.mrf.mxu0
        %v2091 = vadd.f32 0.0, %v2090
        %v2092 = vpop.f32.mrf.mxu0
        %v2093 = vpop.f32.mrf.mxu0
        %v2094 = vpop.f32.mrf.mxu0
        %2095 = vdwg.mxu0
        %v2097 = vsel %vm1835, %v2046, 0
        %2099 = vmatprep.subr.bf16.mxu0 0
        %2100 = vmatpush1.bf16.msra.mxu0 0
        %2101 = vmatprep.subr.bf16.mxu0 0
        %2102 = vmatpush1.bf16.msra.mxu0 0
        %2103 = vmatprep.subr.bf16.mxu0 0
        %2104 = vmatpush1.bf16.msra.mxu0 0
        %2105 = vmatprep.subr.bf16.mxu0 0
        %2106 = vmatpush1.bf16.msra.mxu0 0
        %2107 = vmatprep.subr.bf16.mxu0 0
        %2108 = vmatpush1.bf16.msra.mxu0 %v1434
        %2109 = vmatprep.subr.bf16.mxu0 0
        %2110 = vmatpush1.bf16.msra.mxu0 %v1433
        %2111 = vmatprep.subr.bf16.mxu0 0
        %2112 = vmatpush1.bf16.msra.mxu0 %v1432
        %2113 = vmatprep.subr.bf16.mxu0 0
        %2114 = vmatpush1.bf16.msra.mxu0 %v1431
        %2115 = vmatprep.subr.bf16.mxu0 0
        %2116 = vmatpush2.bf16.msra.mxu0 0
        %2117 = vmatprep.subr.bf16.mxu0 0
        %2118 = vmatpush2.bf16.msra.mxu0 0
        %2119 = vmatprep.subr.bf16.mxu0 0
        %2120 = vmatpush2.bf16.msra.mxu0 0
        %2121 = vmatprep.subr.bf16.mxu0 0
        %2122 = vmatpush2.bf16.msra.mxu0 0
        %2123 = vmatprep.subr.bf16.mxu0 0
        %2124 = vmatpush2.bf16.msra.mxu0 0
        %2125 = vmatprep.subr.bf16.mxu0 0
        %2126 = vmatpush2.bf16.msra.mxu0 0
        %2127 = vmatprep.subr.bf16.mxu0 0
        %2128 = vmatpush2.bf16.msra.mxu0 0
        %2129 = vmatprep.subr.bf16.mxu0 0
        %2130 = vmatpush2.bf16.msra.mxu0 0
        %2131 = vmatprep.mubr.bf16.mxu0 0
        %2132 = vmatmul.mubr.bf16.gmra.mxu0 %v2097
        %v2133 = vpop.f32.mrf.mxu0
        %v2134 = vadd.f32 0.0, %v2133
        %v2135 = vpop.f32.mrf.mxu0
        %v2136 = vpop.f32.mrf.mxu0
        %v2137 = vpop.f32.mrf.mxu0
        %2138 = vdwg.mxu0
        %v2140 = vsel %vm1835, %v2047, 0
        %2142 = vmatprep.subr.bf16.mxu0 0
        %2143 = vmatpush1.bf16.msra.mxu0 0
        %2144 = vmatprep.subr.bf16.mxu0 0
        %2145 = vmatpush1.bf16.msra.mxu0 0
        %2146 = vmatprep.subr.bf16.mxu0 0
        %2147 = vmatpush1.bf16.msra.mxu0 0
        %2148 = vmatprep.subr.bf16.mxu0 0
        %2149 = vmatpush1.bf16.msra.mxu0 0
        %2150 = vmatprep.subr.bf16.mxu0 0
        %2151 = vmatpush1.bf16.msra.mxu0 %v1438
        %2152 = vmatprep.subr.bf16.mxu0 0
        %2153 = vmatpush1.bf16.msra.mxu0 %v1437
        %2154 = vmatprep.subr.bf16.mxu0 0
        %2155 = vmatpush1.bf16.msra.mxu0 %v1436
        %2156 = vmatprep.subr.bf16.mxu0 0
        %2157 = vmatpush1.bf16.msra.mxu0 %v1435
        %2158 = vmatprep.subr.bf16.mxu0 0
        %2159 = vmatpush2.bf16.msra.mxu0 0
        %2160 = vmatprep.subr.bf16.mxu0 0
        %2161 = vmatpush2.bf16.msra.mxu0 0
        %2162 = vmatprep.subr.bf16.mxu0 0
        %2163 = vmatpush2.bf16.msra.mxu0 0
        %2164 = vmatprep.subr.bf16.mxu0 0
        %2165 = vmatpush2.bf16.msra.mxu0 0
        %2166 = vmatprep.subr.bf16.mxu0 0
        %2167 = vmatpush2.bf16.msra.mxu0 0
        %2168 = vmatprep.subr.bf16.mxu0 0
        %2169 = vmatpush2.bf16.msra.mxu0 0
        %2170 = vmatprep.subr.bf16.mxu0 0
        %2171 = vmatpush2.bf16.msra.mxu0 0
        %2172 = vmatprep.subr.bf16.mxu0 0
        %2173 = vmatpush2.bf16.msra.mxu0 0
        %2174 = vmatprep.mubr.bf16.mxu0 0
        %2175 = vmatmul.mubr.bf16.gmra.mxu0 %v2140
        %v2176 = vpop.f32.mrf.mxu0
        %v2177 = vadd.f32 0.0, %v2176
        %v2178 = vpop.f32.mrf.mxu0
        %v2179 = vpop.f32.mrf.mxu0
        %v2180 = vpop.f32.mrf.mxu0
        %2181 = vdwg.mxu0
        %v2183 = vsel %vm1835, %v2048, 0
        %2185 = vmatprep.subr.bf16.mxu0 0
        %2186 = vmatpush1.bf16.msra.mxu0 0
        %2187 = vmatprep.subr.bf16.mxu0 0
        %2188 = vmatpush1.bf16.msra.mxu0 0
        %2189 = vmatprep.subr.bf16.mxu0 0
        %2190 = vmatpush1.bf16.msra.mxu0 0
        %2191 = vmatprep.subr.bf16.mxu0 0
        %2192 = vmatpush1.bf16.msra.mxu0 0
        %2193 = vmatprep.subr.bf16.mxu0 0
        %2194 = vmatpush1.bf16.msra.mxu0 %v1442
        %2195 = vmatprep.subr.bf16.mxu0 0
        %2196 = vmatpush1.bf16.msra.mxu0 %v1441
        %2197 = vmatprep.subr.bf16.mxu0 0
        %2198 = vmatpush1.bf16.msra.mxu0 %v1440
        %2199 = vmatprep.subr.bf16.mxu0 0
        %2200 = vmatpush1.bf16.msra.mxu0 %v1439
        %2201 = vmatprep.subr.bf16.mxu0 0
        %2202 = vmatpush2.bf16.msra.mxu0 0
        %2203 = vmatprep.subr.bf16.mxu0 0
        %2204 = vmatpush2.bf16.msra.mxu0 0
        %2205 = vmatprep.subr.bf16.mxu0 0
        %2206 = vmatpush2.bf16.msra.mxu0 0
        %2207 = vmatprep.subr.bf16.mxu0 0
        %2208 = vmatpush2.bf16.msra.mxu0 0
        %2209 = vmatprep.subr.bf16.mxu0 0
        %2210 = vmatpush2.bf16.msra.mxu0 0
        %2211 = vmatprep.subr.bf16.mxu0 0
        %2212 = vmatpush2.bf16.msra.mxu0 0
        %2213 = vmatprep.subr.bf16.mxu0 0
        %2214 = vmatpush2.bf16.msra.mxu0 0
        %2215 = vmatprep.subr.bf16.mxu0 0
        %2216 = vmatpush2.bf16.msra.mxu0 0
        %2217 = vmatprep.mubr.bf16.mxu0 0
        %2218 = vmatmul.mubr.bf16.gmra.mxu0 %v2183
        %v2219 = vpop.f32.mrf.mxu0
        %v2220 = vadd.f32 0.0, %v2219
        %v2221 = vpop.f32.mrf.mxu0
        %v2222 = vpop.f32.mrf.mxu0
        %v2223 = vpop.f32.mrf.mxu0
        %2224 = vdwg.mxu0
        %v2226 = vsel %vm1835, %v2049, 0
        %2228 = vmatprep.subr.bf16.mxu0 0
        %2229 = vmatpush1.bf16.msra.mxu0 0
        %2230 = vmatprep.subr.bf16.mxu0 0
        %2231 = vmatpush1.bf16.msra.mxu0 0
        %2232 = vmatprep.subr.bf16.mxu0 0
        %2233 = vmatpush1.bf16.msra.mxu0 0
        %2234 = vmatprep.subr.bf16.mxu0 0
        %2235 = vmatpush1.bf16.msra.mxu0 0
        %2236 = vmatprep.subr.bf16.mxu0 0
        %2237 = vmatpush1.bf16.msra.mxu0 %v1446
        %2238 = vmatprep.subr.bf16.mxu0 0
        %2239 = vmatpush1.bf16.msra.mxu0 %v1445
        %2240 = vmatprep.subr.bf16.mxu0 0
        %2241 = vmatpush1.bf16.msra.mxu0 %v1444
        %2242 = vmatprep.subr.bf16.mxu0 0
        %2243 = vmatpush1.bf16.msra.mxu0 %v1443
        %2244 = vmatprep.subr.bf16.mxu0 0
        %2245 = vmatpush2.bf16.msra.mxu0 0
        %2246 = vmatprep.subr.bf16.mxu0 0
        %2247 = vmatpush2.bf16.msra.mxu0 0
        %2248 = vmatprep.subr.bf16.mxu0 0
        %2249 = vmatpush2.bf16.msra.mxu0 0
        %2250 = vmatprep.subr.bf16.mxu0 0
        %2251 = vmatpush2.bf16.msra.mxu0 0
        %2252 = vmatprep.subr.bf16.mxu0 0
        %2253 = vmatpush2.bf16.msra.mxu0 0
        %2254 = vmatprep.subr.bf16.mxu0 0
        %2255 = vmatpush2.bf16.msra.mxu0 0
        %2256 = vmatprep.subr.bf16.mxu0 0
        %2257 = vmatpush2.bf16.msra.mxu0 0
        %2258 = vmatprep.subr.bf16.mxu0 0
        %2259 = vmatpush2.bf16.msra.mxu0 0
        %2260 = vmatprep.mubr.bf16.mxu0 0
        %2261 = vmatmul.mubr.bf16.gmra.mxu0 %v2226
        %v2262 = vpop.f32.mrf.mxu0
        %v2263 = vadd.f32 0.0, %v2262
        %v2264 = vpop.f32.mrf.mxu0
        %v2265 = vpop.f32.mrf.mxu0
        %v2266 = vpop.f32.mrf.mxu0
        %2267 = vdwg.mxu0
        %v2269 = vsel %vm1835, %v2050, 0
        %2271 = vmatprep.subr.bf16.mxu0 0
        %2272 = vmatpush1.bf16.msra.mxu0 0
        %2273 = vmatprep.subr.bf16.mxu0 0
        %2274 = vmatpush1.bf16.msra.mxu0 0
        %2275 = vmatprep.subr.bf16.mxu0 0
        %2276 = vmatpush1.bf16.msra.mxu0 0
        %2277 = vmatprep.subr.bf16.mxu0 0
        %2278 = vmatpush1.bf16.msra.mxu0 0
        %2279 = vmatprep.subr.bf16.mxu0 0
        %2280 = vmatpush1.bf16.msra.mxu0 %v1450
        %2281 = vmatprep.subr.bf16.mxu0 0
        %2282 = vmatpush1.bf16.msra.mxu0 %v1449
        %2283 = vmatprep.subr.bf16.mxu0 0
        %2284 = vmatpush1.bf16.msra.mxu0 %v1448
        %2285 = vmatprep.subr.bf16.mxu0 0
        %2286 = vmatpush1.bf16.msra.mxu0 %v1447
        %2287 = vmatprep.subr.bf16.mxu0 0
        %2288 = vmatpush2.bf16.msra.mxu0 0
        %2289 = vmatprep.subr.bf16.mxu0 0
        %2290 = vmatpush2.bf16.msra.mxu0 0
        %2291 = vmatprep.subr.bf16.mxu0 0
        %2292 = vmatpush2.bf16.msra.mxu0 0
        %2293 = vmatprep.subr.bf16.mxu0 0
        %2294 = vmatpush2.bf16.msra.mxu0 0
        %2295 = vmatprep.subr.bf16.mxu0 0
        %2296 = vmatpush2.bf16.msra.mxu0 0
        %2297 = vmatprep.subr.bf16.mxu0 0
        %2298 = vmatpush2.bf16.msra.mxu0 0
        %2299 = vmatprep.subr.bf16.mxu0 0
        %2300 = vmatpush2.bf16.msra.mxu0 0
        %2301 = vmatprep.subr.bf16.mxu0 0
        %2302 = vmatpush2.bf16.msra.mxu0 0
        %2303 = vmatprep.mubr.bf16.mxu0 0
        %2304 = vmatmul.mubr.bf16.gmra.mxu0 %v2269
        %v2305 = vpop.f32.mrf.mxu0
        %v2306 = vadd.f32 0.0, %v2305
        %v2307 = vpop.f32.mrf.mxu0
        %v2308 = vpop.f32.mrf.mxu0
        %v2309 = vpop.f32.mrf.mxu0
        %2310 = vdwg.mxu0
        %v2312 = vsel %vm1835, %v2051, 0
        %2314 = vmatprep.subr.bf16.mxu0 0
        %2315 = vmatpush1.bf16.msra.mxu0 0
        %2316 = vmatprep.subr.bf16.mxu0 0
        %2317 = vmatpush1.bf16.msra.mxu0 0
        %2318 = vmatprep.subr.bf16.mxu0 0
        %2319 = vmatpush1.bf16.msra.mxu0 0
        %2320 = vmatprep.subr.bf16.mxu0 0
        %2321 = vmatpush1.bf16.msra.mxu0 0
        %2322 = vmatprep.subr.bf16.mxu0 0
        %2323 = vmatpush1.bf16.msra.mxu0 %v1454
        %2324 = vmatprep.subr.bf16.mxu0 0
        %2325 = vmatpush1.bf16.msra.mxu0 %v1453
        %2326 = vmatprep.subr.bf16.mxu0 0
        %2327 = vmatpush1.bf16.msra.mxu0 %v1452
        %2328 = vmatprep.subr.bf16.mxu0 0
        %2329 = vmatpush1.bf16.msra.mxu0 %v1451
        %2330 = vmatprep.subr.bf16.mxu0 0
        %2331 = vmatpush2.bf16.msra.mxu0 0
        %2332 = vmatprep.subr.bf16.mxu0 0
        %2333 = vmatpush2.bf16.msra.mxu0 0
        %2334 = vmatprep.subr.bf16.mxu0 0
        %2335 = vmatpush2.bf16.msra.mxu0 0
        %2336 = vmatprep.subr.bf16.mxu0 0
        %2337 = vmatpush2.bf16.msra.mxu0 0
        %2338 = vmatprep.subr.bf16.mxu0 0
        %2339 = vmatpush2.bf16.msra.mxu0 0
        %2340 = vmatprep.subr.bf16.mxu0 0
        %2341 = vmatpush2.bf16.msra.mxu0 0
        %2342 = vmatprep.subr.bf16.mxu0 0
        %2343 = vmatpush2.bf16.msra.mxu0 0
        %2344 = vmatprep.subr.bf16.mxu0 0
        %2345 = vmatpush2.bf16.msra.mxu0 0
        %2346 = vmatprep.mubr.bf16.mxu0 0
        %2347 = vmatmul.mubr.bf16.gmra.mxu0 %v2312
        %v2348 = vpop.f32.mrf.mxu0
        %v2349 = vadd.f32 0.0, %v2348
        %v2350 = vpop.f32.mrf.mxu0
        %v2351 = vpop.f32.mrf.mxu0
        %v2352 = vpop.f32.mrf.mxu0
        %2353 = vdwg.mxu0
        %v2355 = vsel %vm1835, %v2052, 0
        %2357 = vmatprep.subr.bf16.mxu0 0
        %2358 = vmatpush1.bf16.msra.mxu0 0
        %2359 = vmatprep.subr.bf16.mxu0 0
        %2360 = vmatpush1.bf16.msra.mxu0 0
        %2361 = vmatprep.subr.bf16.mxu0 0
        %2362 = vmatpush1.bf16.msra.mxu0 0
        %2363 = vmatprep.subr.bf16.mxu0 0
        %2364 = vmatpush1.bf16.msra.mxu0 0
        %2365 = vmatprep.subr.bf16.mxu0 0
        %2366 = vmatpush1.bf16.msra.mxu0 %v1458
        %2367 = vmatprep.subr.bf16.mxu0 0
        %2368 = vmatpush1.bf16.msra.mxu0 %v1457
        %2369 = vmatprep.subr.bf16.mxu0 0
        %2370 = vmatpush1.bf16.msra.mxu0 %v1456
        %2371 = vmatprep.subr.bf16.mxu0 0
        %2372 = vmatpush1.bf16.msra.mxu0 %v1455
        %2373 = vmatprep.subr.bf16.mxu0 0
        %2374 = vmatpush2.bf16.msra.mxu0 0
        %2375 = vmatprep.subr.bf16.mxu0 0
        %2376 = vmatpush2.bf16.msra.mxu0 0
        %2377 = vmatprep.subr.bf16.mxu0 0
        %2378 = vmatpush2.bf16.msra.mxu0 0
        %2379 = vmatprep.subr.bf16.mxu0 0
        %2380 = vmatpush2.bf16.msra.mxu0 0
        %2381 = vmatprep.subr.bf16.mxu0 0
        %2382 = vmatpush2.bf16.msra.mxu0 0
        %2383 = vmatprep.subr.bf16.mxu0 0
        %2384 = vmatpush2.bf16.msra.mxu0 0
        %2385 = vmatprep.subr.bf16.mxu0 0
        %2386 = vmatpush2.bf16.msra.mxu0 0
        %2387 = vmatprep.subr.bf16.mxu0 0
        %2388 = vmatpush2.bf16.msra.mxu0 0
        %2389 = vmatprep.mubr.bf16.mxu0 0
        %2390 = vmatmul.mubr.bf16.gmra.mxu0 %v2355
        %v2391 = vpop.f32.mrf.mxu0
        %v2392 = vadd.f32 0.0, %v2391
        %v2393 = vpop.f32.mrf.mxu0
        %v2394 = vpop.f32.mrf.mxu0
        %v2395 = vpop.f32.mrf.mxu0
        %2396 = vdwg.mxu0
        %v2397 = vpack.c.bf16 %v2134, %v2091
        %v2398 = vpack.c.bf16 %v2220, %v2177
        %v2399 = vpack.c.bf16 %v2306, %v2263
        %v2400 = vpack.c.bf16 %v2392, %v2349
        %v2401 = vld [vmem:[#allocation14] sm:$0xf]
        %v2402 = vld [vmem:[#allocation14 + $0x4] sm:$0xf]
        %v2403 = vld [vmem:[#allocation14 + $0x8] sm:$0xf]
        %v2404 = vld [vmem:[#allocation14 + $0xc] sm:$0xf]
        %v2405 = vld [vmem:[#allocation14 + $0x10] sm:$0xf]
        %v2406 = vld [vmem:[#allocation14 + $0x14] sm:$0xf]
        %v2407 = vld [vmem:[#allocation14 + $0x18] sm:$0xf]
        %v2408 = vld [vmem:[#allocation14 + $0x1c] sm:$0xf]
        %v2409 = vld [vmem:[#allocation14 + $0x20] sm:$0xf]
        %v2410 = vld [vmem:[#allocation14 + $0x24] sm:$0xf]
        %v2411 = vld [vmem:[#allocation14 + $0x28] sm:$0xf]
        %v2412 = vld [vmem:[#allocation14 + $0x2c] sm:$0xf]
        %v2413 = vld [vmem:[#allocation14 + $0x30] sm:$0xf]
        %v2414 = vld [vmem:[#allocation14 + $0x34] sm:$0xf]
        %v2415 = vld [vmem:[#allocation14 + $0x38] sm:$0xf]
        %v2416 = vld [vmem:[#allocation14 + $0x3c] sm:$0xf]
        %v2417 = vlaneseq
        %v2418 = vshrl.u32 %v2417, 7
        %v2419 = vsub.s32 3, %v2418
        %v2420 = vrot.slane %v723, %v2419
        %v2437 = vunpack.c.l.b16 %v2401
        %v2438 = vunpack.c.l.b16 %v2402
        %v2439 = vunpack.c.l.b16 %v2403
        %v2440 = vunpack.c.l.b16 %v2404
        %v2441 = vunpack.c.l.b16 %v2405
        %v2442 = vunpack.c.l.b16 %v2406
        %v2443 = vunpack.c.l.b16 %v2407
        %v2444 = vunpack.c.l.b16 %v2408
        %v2445 = vunpack.c.l.b16 %v2409
        %v2446 = vunpack.c.l.b16 %v2410
        %v2447 = vunpack.c.l.b16 %v2411
        %v2448 = vunpack.c.l.b16 %v2412
        %v2449 = vunpack.c.l.b16 %v2413
        %v2450 = vunpack.c.l.b16 %v2414
        %v2451 = vunpack.c.l.b16 %v2415
        %v2452 = vunpack.c.l.b16 %v2416
        %v2453 = vpack.c.b16 %v2438, %v2437
        %v2454 = vpack.c.b16 %v2440, %v2439
        %v2455 = vpack.c.b16 %v2442, %v2441
        %v2456 = vpack.c.b16 %v2444, %v2443
        %v2457 = vpack.c.b16 %v2446, %v2445
        %v2458 = vpack.c.b16 %v2448, %v2447
        %v2459 = vpack.c.b16 %v2450, %v2449
        %v2460 = vpack.c.b16 %v2452, %v2451
        %2469 = vmatprep.subr.bf16.mxu0 0
        %2470 = vmatpush1.bf16.msra.mxu0 %v2460
        %2471 = vmatprep.subr.bf16.mxu0 0
        %2472 = vmatpush1.bf16.msra.mxu0 %v2459
        %2473 = vmatprep.subr.bf16.mxu0 0
        %2474 = vmatpush1.bf16.msra.mxu0 %v2458
        %2475 = vmatprep.subr.bf16.mxu0 0
        %2476 = vmatpush1.bf16.msra.mxu0 %v2457
        %2477 = vmatprep.subr.bf16.mxu0 0
        %2478 = vmatpush1.bf16.msra.mxu0 %v2456
        %2479 = vmatprep.subr.bf16.mxu0 0
        %2480 = vmatpush1.bf16.msra.mxu0 %v2455
        %2481 = vmatprep.subr.bf16.mxu0 0
        %2482 = vmatpush1.bf16.msra.mxu0 %v2454
        %2483 = vmatprep.subr.bf16.mxu0 0
        %2484 = vmatpush1.bf16.msra.mxu0 %v2453
        %2485 = vmatprep.subr.bf16.mxu0 0
        %2486 = vmatpush2.bf16.msra.mxu0 0
        %2487 = vmatprep.subr.bf16.mxu0 0
        %2488 = vmatpush2.bf16.msra.mxu0 0
        %2489 = vmatprep.subr.bf16.mxu0 0
        %2490 = vmatpush2.bf16.msra.mxu0 0
        %2491 = vmatprep.subr.bf16.mxu0 0
        %2492 = vmatpush2.bf16.msra.mxu0 0
        %2493 = vmatprep.subr.bf16.mxu0 0
        %2494 = vmatpush2.bf16.msra.mxu0 0
        %2495 = vmatprep.subr.bf16.mxu0 0
        %2496 = vmatpush2.bf16.msra.mxu0 0
        %2497 = vmatprep.subr.bf16.mxu0 0
        %2498 = vmatpush2.bf16.msra.mxu0 0
        %2499 = vmatprep.subr.bf16.mxu0 0
        %2500 = vmatpush2.bf16.msra.mxu0 0
        %2501 = vmatprep.mubr.bf16.mxu0 0
        %2502 = vmatmul.mubr.bf16.gmra.mxu0 %v2397
        %v2503 = vpop.f32.mrf.mxu0
        %v2504 = vadd.f32 %v2420, %v2503
        %v2505 = vpop.f32.mrf.mxu0
        %v2506 = vpop.f32.mrf.mxu0
        %v2507 = vadd.f32 %v2420, %v2506
        %v2508 = vpop.f32.mrf.mxu0
        %2509 = vmatprep.mubr.bf16.mxu0 0
        %2510 = vmatmul.mubr.bf16.gmra.mxu0 %v2398
        %v2511 = vpop.f32.mrf.mxu0
        %v2512 = vadd.f32 %v2420, %v2511
        %v2513 = vpop.f32.mrf.mxu0
        %v2514 = vpop.f32.mrf.mxu0
        %v2515 = vadd.f32 %v2420, %v2514
        %v2516 = vpop.f32.mrf.mxu0
        %2517 = vmatprep.mubr.bf16.mxu0 0
        %2518 = vmatmul.mubr.bf16.gmra.mxu0 %v2399
        %v2519 = vpop.f32.mrf.mxu0
        %v2520 = vadd.f32 %v2420, %v2519
        %v2521 = vpop.f32.mrf.mxu0
        %v2522 = vpop.f32.mrf.mxu0
        %v2523 = vadd.f32 %v2420, %v2522
        %v2524 = vpop.f32.mrf.mxu0
        %2525 = vmatprep.mubr.bf16.mxu0 0
        %2526 = vmatmul.mubr.bf16.gmra.mxu0 %v2400
        %v2527 = vpop.f32.mrf.mxu0
        %v2528 = vadd.f32 %v2420, %v2527
        %v2529 = vpop.f32.mrf.mxu0
        %v2530 = vpop.f32.mrf.mxu0
        %v2531 = vadd.f32 %v2420, %v2530
        %v2532 = vpop.f32.mrf.mxu0
        %2533 = vdwg.mxu0
        %2534 = vadd.xlane.f32.xlu0 %v2504
        %v2535 = vpop.xlane.xlu0 %2534
        %2536 = vadd.xlane.f32.xlu0 %v2507
        %v2537 = vpop.xlane.xlu0 %2536
        %2538 = vadd.xlane.f32.xlu0 %v2512
        %v2539 = vpop.xlane.xlu0 %2538
        %2540 = vadd.xlane.f32.xlu0 %v2515
        %v2541 = vpop.xlane.xlu0 %2540
        %2542 = vadd.xlane.f32.xlu0 %v2520
        %v2543 = vpop.xlane.xlu0 %2542
        %2544 = vadd.xlane.f32.xlu0 %v2523
        %v2545 = vpop.xlane.xlu0 %2544
        %2546 = vadd.xlane.f32.xlu0 %v2528
        %v2547 = vpop.xlane.xlu0 %2546
        %2548 = vadd.xlane.f32.xlu0 %v2531
        %v2549 = vpop.xlane.xlu0 %2548
        %v2550 = vrcp.pop 128.0
        %v2551 = vmul.f32 %v2535, %v2550
        %v2552 = vmul.f32 %v2537, %v2550
        %v2553 = vmul.f32 %v2539, %v2550
        %v2554 = vmul.f32 %v2541, %v2550
        %v2555 = vmul.f32 %v2543, %v2550
        %v2556 = vmul.f32 %v2545, %v2550
        %v2557 = vmul.f32 %v2547, %v2550
        %v2558 = vmul.f32 %v2549, %v2550
        %v2559 = vsub.f32 %v2504, %v2551
        %v2560 = vsub.f32 %v2507, %v2552
        %v2561 = vsub.f32 %v2512, %v2553
        %v2562 = vsub.f32 %v2515, %v2554
        %v2563 = vsub.f32 %v2520, %v2555
        %v2564 = vsub.f32 %v2523, %v2556
        %v2565 = vsub.f32 %v2528, %v2557
        %v2566 = vsub.f32 %v2531, %v2558
        %v2567 = vmul.f32 %v2559, %v2559
        %v2568 = vmul.f32 %v2560, %v2560
        %v2569 = vmul.f32 %v2561, %v2561
        %v2570 = vmul.f32 %v2562, %v2562
        %v2571 = vmul.f32 %v2563, %v2563
        %v2572 = vmul.f32 %v2564, %v2564
        %v2573 = vmul.f32 %v2565, %v2565
        %v2574 = vmul.f32 %v2566, %v2566
        %2575 = vadd.xlane.f32.xlu0 %v2567
        %v2576 = vpop.xlane.xlu0 %2575
        %2577 = vadd.xlane.f32.xlu0 %v2568
        %v2578 = vpop.xlane.xlu0 %2577
        %2579 = vadd.xlane.f32.xlu0 %v2569
        %v2580 = vpop.xlane.xlu0 %2579
        %2581 = vadd.xlane.f32.xlu0 %v2570
        %v2582 = vpop.xlane.xlu0 %2581
        %2583 = vadd.xlane.f32.xlu0 %v2571
        %v2584 = vpop.xlane.xlu0 %2583
        %2585 = vadd.xlane.f32.xlu0 %v2572
        %v2586 = vpop.xlane.xlu0 %2585
        %2587 = vadd.xlane.f32.xlu0 %v2573
        %v2588 = vpop.xlane.xlu0 %2587
        %2589 = vadd.xlane.f32.xlu0 %v2574
        %v2590 = vpop.xlane.xlu0 %2589
        %v2591 = vmul.f32 %v2576, %v2550
        %v2592 = vmul.f32 %v2578, %v2550
        %v2593 = vmul.f32 %v2580, %v2550
        %v2594 = vmul.f32 %v2582, %v2550
        %v2595 = vmul.f32 %v2584, %v2550
        %v2596 = vmul.f32 %v2586, %v2550
        %v2597 = vmul.f32 %v2588, %v2550
        %v2598 = vmul.f32 %v2590, %v2550
        %v2599 = vadd.f32 %v2591, 1e-05
        %v2600 = vadd.f32 %v2592, 1e-05
        %v2601 = vadd.f32 %v2593, 1e-05
        %v2602 = vadd.f32 %v2594, 1e-05
        %v2603 = vadd.f32 %v2595, 1e-05
        %v2604 = vadd.f32 %v2596, 1e-05
        %v2605 = vadd.f32 %v2597, 1e-05
        %v2606 = vadd.f32 %v2598, 1e-05
        %v2607 = vrsqrt.pop %v2599
        %v2608 = vrsqrt.pop %v2600
        %v2609 = vrsqrt.pop %v2601
        %v2610 = vrsqrt.pop %v2602
        %v2611 = vrsqrt.pop %v2603
        %v2612 = vrsqrt.pop %v2604
        %v2613 = vrsqrt.pop %v2605
        %v2614 = vrsqrt.pop %v2606
        %v2615 = vmul.f32 %v2559, %v2607
        %v2616 = vmul.f32 %v2560, %v2608
        %v2617 = vmul.f32 %v2561, %v2609
        %v2618 = vmul.f32 %v2562, %v2610
        %v2619 = vmul.f32 %v2563, %v2611
        %v2620 = vmul.f32 %v2564, %v2612
        %v2621 = vmul.f32 %v2565, %v2613
        %v2622 = vmul.f32 %v2566, %v2614
        %v2623 = vlaneseq
        %v2624 = vshrl.u32 %v2623, 7
        %v2625 = vsub.s32 4, %v2624
        %v2626 = vrot.slane %v723, %v2625
        %v2627 = vmul.f32 %v2615, %v2626
        %v2628 = vmul.f32 %v2616, %v2626
        %v2629 = vmul.f32 %v2617, %v2626
        %v2630 = vmul.f32 %v2618, %v2626
        %v2631 = vmul.f32 %v2619, %v2626
        %v2632 = vmul.f32 %v2620, %v2626
        %v2633 = vmul.f32 %v2621, %v2626
        %v2634 = vmul.f32 %v2622, %v2626
        %v2635 = vlaneseq
        %v2636 = vshrl.u32 %v2635, 7
        %v2637 = vsub.s32 5, %v2636
        %v2638 = vrot.slane %v723, %v2637
        %v2639 = vadd.f32 %v2627, %v2638
        %v2640 = vadd.f32 %v2628, %v2638
        %v2641 = vadd.f32 %v2629, %v2638
        %v2642 = vadd.f32 %v2630, %v2638
        %v2643 = vadd.f32 %v2631, %v2638
        %v2644 = vadd.f32 %v2632, %v2638
        %v2645 = vadd.f32 %v2633, %v2638
        %v2646 = vadd.f32 %v2634, %v2638
        %v2647 = vpack.c.bf16 %v2640, %v2639
        %v2648 = vpack.c.bf16 %v2642, %v2641
        %v2649 = vpack.c.bf16 %v2644, %v2643
        %v2650 = vpack.c.bf16 %v2646, %v2645
        %v2651 = vld [vmem:[#allocation16] sm:$0xff]
        %v2652 = vld [vmem:[#allocation16 + $0x8] sm:$0xff]
        %v2653 = vld [vmem:[#allocation16 + $0x10] sm:$0xff]
        %v2654 = vld [vmem:[#allocation16 + $0x18] sm:$0xff]
        %v2655 = vld [vmem:[#allocation16 + $0x20] sm:$0xff]
        %v2656 = vld [vmem:[#allocation16 + $0x28] sm:$0xff]
        %v2657 = vld [vmem:[#allocation16 + $0x30] sm:$0xff]
        %v2658 = vld [vmem:[#allocation16 + $0x38] sm:$0xff]
        %v2659 = vld [vmem:[#allocation16 + $0x40] sm:$0xff]
        %v2660 = vld [vmem:[#allocation16 + $0x48] sm:$0xff]
        %v2661 = vld [vmem:[#allocation16 + $0x50] sm:$0xff]
        %v2662 = vld [vmem:[#allocation16 + $0x58] sm:$0xff]
        %v2663 = vld [vmem:[#allocation16 + $0x60] sm:$0xff]
        %v2664 = vld [vmem:[#allocation16 + $0x68] sm:$0xff]
        %v2665 = vld [vmem:[#allocation16 + $0x70] sm:$0xff]
        %v2666 = vld [vmem:[#allocation16 + $0x78] sm:$0xff]
        %v2667 = vld [vmem:[#allocation16 + $0x80] sm:$0xff]
        %v2668 = vld [vmem:[#allocation16 + $0x88] sm:$0xff]
        %v2669 = vld [vmem:[#allocation16 + $0x90] sm:$0xff]
        %v2670 = vld [vmem:[#allocation16 + $0x98] sm:$0xff]
        %v2671 = vld [vmem:[#allocation16 + $0xa0] sm:$0xff]
        %v2672 = vld [vmem:[#allocation16 + $0xa8] sm:$0xff]
        %v2673 = vld [vmem:[#allocation16 + $0xb0] sm:$0xff]
        %v2674 = vld [vmem:[#allocation16 + $0xb8] sm:$0xff]
        %v2675 = vld [vmem:[#allocation16 + $0xc0] sm:$0xff]
        %v2676 = vld [vmem:[#allocation16 + $0xc8] sm:$0xff]
        %v2677 = vld [vmem:[#allocation16 + $0xd0] sm:$0xff]
        %v2678 = vld [vmem:[#allocation16 + $0xd8] sm:$0xff]
        %v2679 = vld [vmem:[#allocation16 + $0xe0] sm:$0xff]
        %v2680 = vld [vmem:[#allocation16 + $0xe8] sm:$0xff]
        %v2681 = vld [vmem:[#allocation16 + $0xf0] sm:$0xff]
        %v2682 = vld [vmem:[#allocation16 + $0xf8] sm:$0xff]
        %v2683 = vld [vmem:[%s11] sm:$0xf]
        %v2685 = vlaneseq
        %v2686 = vshrl.u32 %v2685, 7
        %v2687 = vsub.s32 0, %v2686
        %v2688 = vrot.slane %v2683, %v2687
        %v2689 = vlaneseq
        %v2690 = vshrl.u32 %v2689, 7
        %v2691 = vsub.s32 1, %v2690
        %v2692 = vrot.slane %v2683, %v2691
        %v2693 = vlaneseq
        %v2694 = vshrl.u32 %v2693, 7
        %v2695 = vsub.s32 2, %v2694
        %v2696 = vrot.slane %v2683, %v2695
        %v2697 = vlaneseq
        %v2698 = vshrl.u32 %v2697, 7
        %v2699 = vsub.s32 3, %v2698
        %v2700 = vrot.slane %v2683, %v2699
        %v2737 = vunpack.c.l.b16 %v2651
        %v2738 = vunpack.c.h.b16 %v2651
        %v2739 = vunpack.c.l.b16 %v2652
        %v2740 = vunpack.c.h.b16 %v2652
        %v2741 = vunpack.c.l.b16 %v2653
        %v2742 = vunpack.c.h.b16 %v2653
        %v2743 = vunpack.c.l.b16 %v2654
        %v2744 = vunpack.c.h.b16 %v2654
        %v2745 = vunpack.c.l.b16 %v2655
        %v2746 = vunpack.c.h.b16 %v2655
        %v2747 = vunpack.c.l.b16 %v2656
        %v2748 = vunpack.c.h.b16 %v2656
        %v2749 = vunpack.c.l.b16 %v2657
        %v2750 = vunpack.c.h.b16 %v2657
        %v2751 = vunpack.c.l.b16 %v2658
        %v2752 = vunpack.c.h.b16 %v2658
        %v2753 = vunpack.c.l.b16 %v2659
        %v2754 = vunpack.c.h.b16 %v2659
        %v2755 = vunpack.c.l.b16 %v2660
        %v2756 = vunpack.c.h.b16 %v2660
        %v2757 = vunpack.c.l.b16 %v2661
        %v2758 = vunpack.c.h.b16 %v2661
        %v2759 = vunpack.c.l.b16 %v2662
        %v2760 = vunpack.c.h.b16 %v2662
        %v2761 = vunpack.c.l.b16 %v2663
        %v2762 = vunpack.c.h.b16 %v2663
        %v2763 = vunpack.c.l.b16 %v2664
        %v2764 = vunpack.c.h.b16 %v2664
        %v2765 = vunpack.c.l.b16 %v2665
        %v2766 = vunpack.c.h.b16 %v2665
        %v2767 = vunpack.c.l.b16 %v2666
        %v2768 = vunpack.c.h.b16 %v2666
        %v2769 = vunpack.c.l.b16 %v2667
        %v2770 = vunpack.c.h.b16 %v2667
        %v2771 = vunpack.c.l.b16 %v2668
        %v2772 = vunpack.c.h.b16 %v2668
        %v2773 = vunpack.c.l.b16 %v2669
        %v2774 = vunpack.c.h.b16 %v2669
        %v2775 = vunpack.c.l.b16 %v2670
        %v2776 = vunpack.c.h.b16 %v2670
        %v2777 = vunpack.c.l.b16 %v2671
        %v2778 = vunpack.c.h.b16 %v2671
        %v2779 = vunpack.c.l.b16 %v2672
        %v2780 = vunpack.c.h.b16 %v2672
        %v2781 = vunpack.c.l.b16 %v2673
        %v2782 = vunpack.c.h.b16 %v2673
        %v2783 = vunpack.c.l.b16 %v2674
        %v2784 = vunpack.c.h.b16 %v2674
        %v2785 = vunpack.c.l.b16 %v2675
        %v2786 = vunpack.c.h.b16 %v2675
        %v2787 = vunpack.c.l.b16 %v2676
        %v2788 = vunpack.c.h.b16 %v2676
        %v2789 = vunpack.c.l.b16 %v2677
        %v2790 = vunpack.c.h.b16 %v2677
        %v2791 = vunpack.c.l.b16 %v2678
        %v2792 = vunpack.c.h.b16 %v2678
        %v2793 = vunpack.c.l.b16 %v2679
        %v2794 = vunpack.c.h.b16 %v2679
        %v2795 = vunpack.c.l.b16 %v2680
        %v2796 = vunpack.c.h.b16 %v2680
        %v2797 = vunpack.c.l.b16 %v2681
        %v2798 = vunpack.c.h.b16 %v2681
        %v2799 = vunpack.c.l.b16 %v2682
        %v2800 = vunpack.c.h.b16 %v2682
        %v2801 = vpack.c.b16 %v2741, %v2737
        %v2802 = vpack.c.b16 %v2742, %v2738
        %v2803 = vpack.c.b16 %v2743, %v2739
        %v2804 = vpack.c.b16 %v2744, %v2740
        %v2805 = vpack.c.b16 %v2749, %v2745
        %v2806 = vpack.c.b16 %v2750, %v2746
        %v2807 = vpack.c.b16 %v2751, %v2747
        %v2808 = vpack.c.b16 %v2752, %v2748
        %v2809 = vpack.c.b16 %v2757, %v2753
        %v2810 = vpack.c.b16 %v2758, %v2754
        %v2811 = vpack.c.b16 %v2759, %v2755
        %v2812 = vpack.c.b16 %v2760, %v2756
        %v2813 = vpack.c.b16 %v2765, %v2761
        %v2814 = vpack.c.b16 %v2766, %v2762
        %v2815 = vpack.c.b16 %v2767, %v2763
        %v2816 = vpack.c.b16 %v2768, %v2764
        %v2817 = vpack.c.b16 %v2773, %v2769
        %v2818 = vpack.c.b16 %v2774, %v2770
        %v2819 = vpack.c.b16 %v2775, %v2771
        %v2820 = vpack.c.b16 %v2776, %v2772
        %v2821 = vpack.c.b16 %v2781, %v2777
        %v2822 = vpack.c.b16 %v2782, %v2778
        %v2823 = vpack.c.b16 %v2783, %v2779
        %v2824 = vpack.c.b16 %v2784, %v2780
        %v2825 = vpack.c.b16 %v2789, %v2785
        %v2826 = vpack.c.b16 %v2790, %v2786
        %v2827 = vpack.c.b16 %v2791, %v2787
        %v2828 = vpack.c.b16 %v2792, %v2788
        %v2829 = vpack.c.b16 %v2797, %v2793
        %v2830 = vpack.c.b16 %v2798, %v2794
        %v2831 = vpack.c.b16 %v2799, %v2795
        %v2832 = vpack.c.b16 %v2800, %v2796
        %2865 = vmatprep.subr.bf16.mxu0 %v2830
        %2866 = vmatpush1.bf16.msra.mxu0 %v2829
        %2867 = vmatprep.subr.bf16.mxu0 %v2826
        %2868 = vmatpush1.bf16.msra.mxu0 %v2825
        %2869 = vmatprep.subr.bf16.mxu0 %v2822
        %2870 = vmatpush1.bf16.msra.mxu0 %v2821
        %2871 = vmatprep.subr.bf16.mxu0 %v2818
        %2872 = vmatpush1.bf16.msra.mxu0 %v2817
        %2873 = vmatprep.subr.bf16.mxu0 %v2814
        %2874 = vmatpush1.bf16.msra.mxu0 %v2813
        %2875 = vmatprep.subr.bf16.mxu0 %v2810
        %2876 = vmatpush1.bf16.msra.mxu0 %v2809
        %2877 = vmatprep.subr.bf16.mxu0 %v2806
        %2878 = vmatpush1.bf16.msra.mxu0 %v2805
        %2879 = vmatprep.subr.bf16.mxu0 %v2802
        %2880 = vmatpush1.bf16.msra.mxu0 %v2801
        %2881 = vmatprep.subr.bf16.mxu0 0
        %2882 = vmatpush2.bf16.msra.mxu0 0
        %2883 = vmatprep.subr.bf16.mxu0 0
        %2884 = vmatpush2.bf16.msra.mxu0 0
        %2885 = vmatprep.subr.bf16.mxu0 0
        %2886 = vmatpush2.bf16.msra.mxu0 0
        %2887 = vmatprep.subr.bf16.mxu0 0
        %2888 = vmatpush2.bf16.msra.mxu0 0
        %2889 = vmatprep.subr.bf16.mxu0 0
        %2890 = vmatpush2.bf16.msra.mxu0 0
        %2891 = vmatprep.subr.bf16.mxu0 0
        %2892 = vmatpush2.bf16.msra.mxu0 0
        %2893 = vmatprep.subr.bf16.mxu0 0
        %2894 = vmatpush2.bf16.msra.mxu0 0
        %2895 = vmatprep.subr.bf16.mxu0 0
        %2896 = vmatpush2.bf16.msra.mxu0 0
        %2897 = vmatprep.mubr.bf16.mxu0 0
        %2898 = vmatmul.mubr.bf16.gmra.mxu0 %v2647
        %v2899 = vpop.f32.mrf.mxu0
        %v2900 = vadd.f32 %v2688, %v2899
        %v2901 = vpop.f32.mrf.mxu0
        %v2902 = vadd.f32 %v2692, %v2901
        %v2903 = vpop.f32.mrf.mxu0
        %v2904 = vadd.f32 %v2688, %v2903
        %v2905 = vpop.f32.mrf.mxu0
        %v2906 = vadd.f32 %v2692, %v2905
        %2907 = vmatprep.mubr.bf16.mxu0 0
        %2908 = vmatmul.mubr.bf16.gmra.mxu0 %v2648
        %v2909 = vpop.f32.mrf.mxu0
        %v2910 = vadd.f32 %v2688, %v2909
        %v2911 = vpop.f32.mrf.mxu0
        %v2912 = vadd.f32 %v2692, %v2911
        %v2913 = vpop.f32.mrf.mxu0
        %v2914 = vadd.f32 %v2688, %v2913
        %v2915 = vpop.f32.mrf.mxu0
        %v2916 = vadd.f32 %v2692, %v2915
        %2917 = vmatprep.mubr.bf16.mxu0 0
        %2918 = vmatmul.mubr.bf16.gmra.mxu0 %v2649
        %v2919 = vpop.f32.mrf.mxu0
        %v2920 = vadd.f32 %v2688, %v2919
        %v2921 = vpop.f32.mrf.mxu0
        %v2922 = vadd.f32 %v2692, %v2921
        %v2923 = vpop.f32.mrf.mxu0
        %v2924 = vadd.f32 %v2688, %v2923
        %v2925 = vpop.f32.mrf.mxu0
        %v2926 = vadd.f32 %v2692, %v2925
        %2927 = vmatprep.mubr.bf16.mxu0 0
        %2928 = vmatmul.mubr.bf16.gmra.mxu0 %v2650
        %v2929 = vpop.f32.mrf.mxu0
        %v2930 = vadd.f32 %v2688, %v2929
        %v2931 = vpop.f32.mrf.mxu0
        %v2932 = vadd.f32 %v2692, %v2931
        %v2933 = vpop.f32.mrf.mxu0
        %v2934 = vadd.f32 %v2688, %v2933
        %v2935 = vpop.f32.mrf.mxu0
        %v2936 = vadd.f32 %v2692, %v2935
        %2937 = vdwg.mxu0
        %2938 = vmatprep.subr.bf16.mxu0 %v2832
        %2939 = vmatpush1.bf16.msra.mxu0 %v2831
        %2940 = vmatprep.subr.bf16.mxu0 %v2828
        %2941 = vmatpush1.bf16.msra.mxu0 %v2827
        %2942 = vmatprep.subr.bf16.mxu0 %v2824
        %2943 = vmatpush1.bf16.msra.mxu0 %v2823
        %2944 = vmatprep.subr.bf16.mxu0 %v2820
        %2945 = vmatpush1.bf16.msra.mxu0 %v2819
        %2946 = vmatprep.subr.bf16.mxu0 %v2816
        %2947 = vmatpush1.bf16.msra.mxu0 %v2815
        %2948 = vmatprep.subr.bf16.mxu0 %v2812
        %2949 = vmatpush1.bf16.msra.mxu0 %v2811
        %2950 = vmatprep.subr.bf16.mxu0 %v2808
        %2951 = vmatpush1.bf16.msra.mxu0 %v2807
        %2952 = vmatprep.subr.bf16.mxu0 %v2804
        %2953 = vmatpush1.bf16.msra.mxu0 %v2803
        %2954 = vmatprep.subr.bf16.mxu0 0
        %2955 = vmatpush2.bf16.msra.mxu0 0
        %2956 = vmatprep.subr.bf16.mxu0 0
        %2957 = vmatpush2.bf16.msra.mxu0 0
        %2958 = vmatprep.subr.bf16.mxu0 0
        %2959 = vmatpush2.bf16.msra.mxu0 0
        %2960 = vmatprep.subr.bf16.mxu0 0
        %2961 = vmatpush2.bf16.msra.mxu0 0
        %2962 = vmatprep.subr.bf16.mxu0 0
        %2963 = vmatpush2.bf16.msra.mxu0 0
        %2964 = vmatprep.subr.bf16.mxu0 0
        %2965 = vmatpush2.bf16.msra.mxu0 0
        %2966 = vmatprep.subr.bf16.mxu0 0
        %2967 = vmatpush2.bf16.msra.mxu0 0
        %2968 = vmatprep.subr.bf16.mxu0 0
        %2969 = vmatpush2.bf16.msra.mxu0 0
        %2970 = vmatprep.mubr.bf16.mxu0 0
        %2971 = vmatmul.mubr.bf16.gmra.mxu0 %v2647
        %v2972 = vpop.f32.mrf.mxu0
        %v2973 = vadd.f32 %v2696, %v2972
        %v2974 = vpop.f32.mrf.mxu0
        %v2975 = vadd.f32 %v2700, %v2974
        %v2976 = vpop.f32.mrf.mxu0
        %v2977 = vadd.f32 %v2696, %v2976
        %v2978 = vpop.f32.mrf.mxu0
        %v2979 = vadd.f32 %v2700, %v2978
        %2980 = vmatprep.mubr.bf16.mxu0 0
        %2981 = vmatmul.mubr.bf16.gmra.mxu0 %v2648
        %v2982 = vpop.f32.mrf.mxu0
        %v2983 = vadd.f32 %v2696, %v2982
        %v2984 = vpop.f32.mrf.mxu0
        %v2985 = vadd.f32 %v2700, %v2984
        %v2986 = vpop.f32.mrf.mxu0
        %v2987 = vadd.f32 %v2696, %v2986
        %v2988 = vpop.f32.mrf.mxu0
        %v2989 = vadd.f32 %v2700, %v2988
        %2990 = vmatprep.mubr.bf16.mxu0 0
        %2991 = vmatmul.mubr.bf16.gmra.mxu0 %v2649
        %v2992 = vpop.f32.mrf.mxu0
        %v2993 = vadd.f32 %v2696, %v2992
        %v2994 = vpop.f32.mrf.mxu0
        %v2995 = vadd.f32 %v2700, %v2994
        %v2996 = vpop.f32.mrf.mxu0
        %v2997 = vadd.f32 %v2696, %v2996
        %v2998 = vpop.f32.mrf.mxu0
        %v2999 = vadd.f32 %v2700, %v2998
        %3000 = vmatprep.mubr.bf16.mxu0 0
        %3001 = vmatmul.mubr.bf16.gmra.mxu0 %v2650
        %v3002 = vpop.f32.mrf.mxu0
        %v3003 = vadd.f32 %v2696, %v3002
        %v3004 = vpop.f32.mrf.mxu0
        %v3005 = vadd.f32 %v2700, %v3004
        %v3006 = vpop.f32.mrf.mxu0
        %v3007 = vadd.f32 %v2696, %v3006
        %v3008 = vpop.f32.mrf.mxu0
        %v3009 = vadd.f32 %v2700, %v3008
        %3010 = vdwg.mxu0
        %v3011 = vmul.f32 %v2900, 0.5
        %v3012 = vmul.f32 %v2902, 0.5
        %v3013 = vmul.f32 %v2973, 0.5
        %v3014 = vmul.f32 %v2975, 0.5
        %v3015 = vmul.f32 %v2904, 0.5
        %v3016 = vmul.f32 %v2906, 0.5
        %v3017 = vmul.f32 %v2977, 0.5
        %v3018 = vmul.f32 %v2979, 0.5
        %v3019 = vmul.f32 %v2910, 0.5
        %v3020 = vmul.f32 %v2912, 0.5
        %v3021 = vmul.f32 %v2983, 0.5
        %v3022 = vmul.f32 %v2985, 0.5
        %v3023 = vmul.f32 %v2914, 0.5
        %v3024 = vmul.f32 %v2916, 0.5
        %v3025 = vmul.f32 %v2987, 0.5
        %v3026 = vmul.f32 %v2989, 0.5
        %v3027 = vmul.f32 %v2920, 0.5
        %v3028 = vmul.f32 %v2922, 0.5
        %v3029 = vmul.f32 %v2993, 0.5
        %v3030 = vmul.f32 %v2995, 0.5
        %v3031 = vmul.f32 %v2924, 0.5
        %v3032 = vmul.f32 %v2926, 0.5
        %v3033 = vmul.f32 %v2997, 0.5
        %v3034 = vmul.f32 %v2999, 0.5
        %v3035 = vmul.f32 %v2930, 0.5
        %v3036 = vmul.f32 %v2932, 0.5
        %v3037 = vmul.f32 %v3003, 0.5
        %v3038 = vmul.f32 %v3005, 0.5
        %v3039 = vmul.f32 %v2934, 0.5
        %v3040 = vmul.f32 %v2936, 0.5
        %v3041 = vmul.f32 %v3007, 0.5
        %v3042 = vmul.f32 %v3009, 0.5
        %v3043 = vmul.f32 %v2900, 0.70710677
        %v3044 = vmul.f32 %v2902, 0.70710677
        %v3045 = vmul.f32 %v2973, 0.70710677
        %v3046 = vmul.f32 %v2975, 0.70710677
        %v3047 = vmul.f32 %v2904, 0.70710677
        %v3048 = vmul.f32 %v2906, 0.70710677
        %v3049 = vmul.f32 %v2977, 0.70710677
        %v3050 = vmul.f32 %v2979, 0.70710677
        %v3051 = vmul.f32 %v2910, 0.70710677
        %v3052 = vmul.f32 %v2912, 0.70710677
        %v3053 = vmul.f32 %v2983, 0.70710677
        %v3054 = vmul.f32 %v2985, 0.70710677
        %v3055 = vmul.f32 %v2914, 0.70710677
        %v3056 = vmul.f32 %v2916, 0.70710677
        %v3057 = vmul.f32 %v2987, 0.70710677
        %v3058 = vmul.f32 %v2989, 0.70710677
        %v3059 = vmul.f32 %v2920, 0.70710677
        %v3060 = vmul.f32 %v2922, 0.70710677
        %v3061 = vmul.f32 %v2993, 0.70710677
        %v3062 = vmul.f32 %v2995, 0.70710677
        %v3063 = vmul.f32 %v2924, 0.70710677
        %v3064 = vmul.f32 %v2926, 0.70710677
        %v3065 = vmul.f32 %v2997, 0.70710677
        %v3066 = vmul.f32 %v2999, 0.70710677
        %v3067 = vmul.f32 %v2930, 0.70710677
        %v3068 = vmul.f32 %v2932, 0.70710677
        %v3069 = vmul.f32 %v3003, 0.70710677
        %v3070 = vmul.f32 %v3005, 0.70710677
        %v3071 = vmul.f32 %v2934, 0.70710677
        %v3072 = vmul.f32 %v2936, 0.70710677
        %v3073 = vmul.f32 %v3007, 0.70710677
        %v3074 = vmul.f32 %v3009, 0.70710677
        %v3075 = verf.f32.pop %v3043
        %v3076 = verf.f32.pop %v3044
        %v3077 = verf.f32.pop %v3045
        %v3078 = verf.f32.pop %v3046
        %v3079 = verf.f32.pop %v3047
        %v3080 = verf.f32.pop %v3048
        %v3081 = verf.f32.pop %v3049
        %v3082 = verf.f32.pop %v3050
        %v3083 = verf.f32.pop %v3051
        %v3084 = verf.f32.pop %v3052
        %v3085 = verf.f32.pop %v3053
        %v3086 = verf.f32.pop %v3054
        %v3087 = verf.f32.pop %v3055
        %v3088 = verf.f32.pop %v3056
        %v3089 = verf.f32.pop %v3057
        %v3090 = verf.f32.pop %v3058
        %v3091 = verf.f32.pop %v3059
        %v3092 = verf.f32.pop %v3060
        %v3093 = verf.f32.pop %v3061
        %v3094 = verf.f32.pop %v3062
        %v3095 = verf.f32.pop %v3063
        %v3096 = verf.f32.pop %v3064
        %v3097 = verf.f32.pop %v3065
        %v3098 = verf.f32.pop %v3066
        %v3099 = verf.f32.pop %v3067
        %v3100 = verf.f32.pop %v3068
        %v3101 = verf.f32.pop %v3069
        %v3102 = verf.f32.pop %v3070
        %v3103 = verf.f32.pop %v3071
        %v3104 = verf.f32.pop %v3072
        %v3105 = verf.f32.pop %v3073
        %v3106 = verf.f32.pop %v3074
        %v3107 = vadd.f32 %v3075, 1.0
        %v3108 = vadd.f32 %v3076, 1.0
        %v3109 = vadd.f32 %v3077, 1.0
        %v3110 = vadd.f32 %v3078, 1.0
        %v3111 = vadd.f32 %v3079, 1.0
        %v3112 = vadd.f32 %v3080, 1.0
        %v3113 = vadd.f32 %v3081, 1.0
        %v3114 = vadd.f32 %v3082, 1.0
        %v3115 = vadd.f32 %v3083, 1.0
        %v3116 = vadd.f32 %v3084, 1.0
        %v3117 = vadd.f32 %v3085, 1.0
        %v3118 = vadd.f32 %v3086, 1.0
        %v3119 = vadd.f32 %v3087, 1.0
        %v3120 = vadd.f32 %v3088, 1.0
        %v3121 = vadd.f32 %v3089, 1.0
        %v3122 = vadd.f32 %v3090, 1.0
        %v3123 = vadd.f32 %v3091, 1.0
        %v3124 = vadd.f32 %v3092, 1.0
        %v3125 = vadd.f32 %v3093, 1.0
        %v3126 = vadd.f32 %v3094, 1.0
        %v3127 = vadd.f32 %v3095, 1.0
        %v3128 = vadd.f32 %v3096, 1.0
        %v3129 = vadd.f32 %v3097, 1.0
        %v3130 = vadd.f32 %v3098, 1.0
        %v3131 = vadd.f32 %v3099, 1.0
        %v3132 = vadd.f32 %v3100, 1.0
        %v3133 = vadd.f32 %v3101, 1.0
        %v3134 = vadd.f32 %v3102, 1.0
        %v3135 = vadd.f32 %v3103, 1.0
        %v3136 = vadd.f32 %v3104, 1.0
        %v3137 = vadd.f32 %v3105, 1.0
        %v3138 = vadd.f32 %v3106, 1.0
        %v3139 = vmul.f32 %v3011, %v3107
        %v3140 = vmul.f32 %v3012, %v3108
        %v3141 = vmul.f32 %v3013, %v3109
        %v3142 = vmul.f32 %v3014, %v3110
        %v3143 = vmul.f32 %v3015, %v3111
        %v3144 = vmul.f32 %v3016, %v3112
        %v3145 = vmul.f32 %v3017, %v3113
        %v3146 = vmul.f32 %v3018, %v3114
        %v3147 = vmul.f32 %v3019, %v3115
        %v3148 = vmul.f32 %v3020, %v3116
        %v3149 = vmul.f32 %v3021, %v3117
        %v3150 = vmul.f32 %v3022, %v3118
        %v3151 = vmul.f32 %v3023, %v3119
        %v3152 = vmul.f32 %v3024, %v3120
        %v3153 = vmul.f32 %v3025, %v3121
        %v3154 = vmul.f32 %v3026, %v3122
        %v3155 = vmul.f32 %v3027, %v3123
        %v3156 = vmul.f32 %v3028, %v3124
        %v3157 = vmul.f32 %v3029, %v3125
        %v3158 = vmul.f32 %v3030, %v3126
        %v3159 = vmul.f32 %v3031, %v3127
        %v3160 = vmul.f32 %v3032, %v3128
        %v3161 = vmul.f32 %v3033, %v3129
        %v3162 = vmul.f32 %v3034, %v3130
        %v3163 = vmul.f32 %v3035, %v3131
        %v3164 = vmul.f32 %v3036, %v3132
        %v3165 = vmul.f32 %v3037, %v3133
        %v3166 = vmul.f32 %v3038, %v3134
        %v3167 = vmul.f32 %v3039, %v3135
        %v3168 = vmul.f32 %v3040, %v3136
        %v3169 = vmul.f32 %v3041, %v3137
        %v3170 = vmul.f32 %v3042, %v3138
        %v3171 = vpack.c.bf16 %v3143, %v3139
        %v3172 = vpack.c.bf16 %v3144, %v3140
        %v3173 = vpack.c.bf16 %v3145, %v3141
        %v3174 = vpack.c.bf16 %v3146, %v3142
        %v3175 = vpack.c.bf16 %v3151, %v3147
        %v3176 = vpack.c.bf16 %v3152, %v3148
        %v3177 = vpack.c.bf16 %v3153, %v3149
        %v3178 = vpack.c.bf16 %v3154, %v3150
        %v3179 = vpack.c.bf16 %v3159, %v3155
        %v3180 = vpack.c.bf16 %v3160, %v3156
        %v3181 = vpack.c.bf16 %v3161, %v3157
        %v3182 = vpack.c.bf16 %v3162, %v3158
        %v3183 = vpack.c.bf16 %v3167, %v3163
        %v3184 = vpack.c.bf16 %v3168, %v3164
        %v3185 = vpack.c.bf16 %v3169, %v3165
        %v3186 = vpack.c.bf16 %v3170, %v3166
        %v3187 = vld [vmem:[#allocation17] sm:$0xf]
        %v3188 = vld [vmem:[#allocation17 + $0x4] sm:$0xf]
        %v3189 = vld [vmem:[#allocation17 + $0x8] sm:$0xf]
        %v3190 = vld [vmem:[#allocation17 + $0xc] sm:$0xf]
        %v3191 = vld [vmem:[#allocation17 + $0x10] sm:$0xf]
        %v3192 = vld [vmem:[#allocation17 + $0x14] sm:$0xf]
        %v3193 = vld [vmem:[#allocation17 + $0x18] sm:$0xf]
        %v3194 = vld [vmem:[#allocation17 + $0x1c] sm:$0xf]
        %v3195 = vld [vmem:[#allocation17 + $0x20] sm:$0xf]
        %v3196 = vld [vmem:[#allocation17 + $0x24] sm:$0xf]
        %v3197 = vld [vmem:[#allocation17 + $0x28] sm:$0xf]
        %v3198 = vld [vmem:[#allocation17 + $0x2c] sm:$0xf]
        %v3199 = vld [vmem:[#allocation17 + $0x30] sm:$0xf]
        %v3200 = vld [vmem:[#allocation17 + $0x34] sm:$0xf]
        %v3201 = vld [vmem:[#allocation17 + $0x38] sm:$0xf]
        %v3202 = vld [vmem:[#allocation17 + $0x3c] sm:$0xf]
        %v3203 = vld [vmem:[#allocation17 + $0x40] sm:$0xf]
        %v3204 = vld [vmem:[#allocation17 + $0x44] sm:$0xf]
        %v3205 = vld [vmem:[#allocation17 + $0x48] sm:$0xf]
        %v3206 = vld [vmem:[#allocation17 + $0x4c] sm:$0xf]
        %v3207 = vld [vmem:[#allocation17 + $0x50] sm:$0xf]
        %v3208 = vld [vmem:[#allocation17 + $0x54] sm:$0xf]
        %v3209 = vld [vmem:[#allocation17 + $0x58] sm:$0xf]
        %v3210 = vld [vmem:[#allocation17 + $0x5c] sm:$0xf]
        %v3211 = vld [vmem:[#allocation17 + $0x60] sm:$0xf]
        %v3212 = vld [vmem:[#allocation17 + $0x64] sm:$0xf]
        %v3213 = vld [vmem:[#allocation17 + $0x68] sm:$0xf]
        %v3214 = vld [vmem:[#allocation17 + $0x6c] sm:$0xf]
        %v3215 = vld [vmem:[#allocation17 + $0x70] sm:$0xf]
        %v3216 = vld [vmem:[#allocation17 + $0x74] sm:$0xf]
        %v3217 = vld [vmem:[#allocation17 + $0x78] sm:$0xf]
        %v3218 = vld [vmem:[#allocation17 + $0x7c] sm:$0xf]
        %v3219 = vld [vmem:[#allocation17 + $0x80] sm:$0xf]
        %v3220 = vld [vmem:[#allocation17 + $0x84] sm:$0xf]
        %v3221 = vld [vmem:[#allocation17 + $0x88] sm:$0xf]
        %v3222 = vld [vmem:[#allocation17 + $0x8c] sm:$0xf]
        %v3223 = vld [vmem:[#allocation17 + $0x90] sm:$0xf]
        %v3224 = vld [vmem:[#allocation17 + $0x94] sm:$0xf]
        %v3225 = vld [vmem:[#allocation17 + $0x98] sm:$0xf]
        %v3226 = vld [vmem:[#allocation17 + $0x9c] sm:$0xf]
        %v3227 = vld [vmem:[#allocation17 + $0xa0] sm:$0xf]
        %v3228 = vld [vmem:[#allocation17 + $0xa4] sm:$0xf]
        %v3229 = vld [vmem:[#allocation17 + $0xa8] sm:$0xf]
        %v3230 = vld [vmem:[#allocation17 + $0xac] sm:$0xf]
        %v3231 = vld [vmem:[#allocation17 + $0xb0] sm:$0xf]
        %v3232 = vld [vmem:[#allocation17 + $0xb4] sm:$0xf]
        %v3233 = vld [vmem:[#allocation17 + $0xb8] sm:$0xf]
        %v3234 = vld [vmem:[#allocation17 + $0xbc] sm:$0xf]
        %v3235 = vld [vmem:[#allocation17 + $0xc0] sm:$0xf]
        %v3236 = vld [vmem:[#allocation17 + $0xc4] sm:$0xf]
        %v3237 = vld [vmem:[#allocation17 + $0xc8] sm:$0xf]
        %v3238 = vld [vmem:[#allocation17 + $0xcc] sm:$0xf]
        %v3239 = vld [vmem:[#allocation17 + $0xd0] sm:$0xf]
        %v3240 = vld [vmem:[#allocation17 + $0xd4] sm:$0xf]
        %v3241 = vld [vmem:[#allocation17 + $0xd8] sm:$0xf]
        %v3242 = vld [vmem:[#allocation17 + $0xdc] sm:$0xf]
        %v3243 = vld [vmem:[#allocation17 + $0xe0] sm:$0xf]
        %v3244 = vld [vmem:[#allocation17 + $0xe4] sm:$0xf]
        %v3245 = vld [vmem:[#allocation17 + $0xe8] sm:$0xf]
        %v3246 = vld [vmem:[#allocation17 + $0xec] sm:$0xf]
        %v3247 = vld [vmem:[#allocation17 + $0xf0] sm:$0xf]
        %v3248 = vld [vmem:[#allocation17 + $0xf4] sm:$0xf]
        %v3249 = vld [vmem:[#allocation17 + $0xf8] sm:$0xf]
        %v3250 = vld [vmem:[#allocation17 + $0xfc] sm:$0xf]
        %v3251 = vlaneseq
        %v3252 = vshrl.u32 %v3251, 7
        %v3253 = vsub.s32 0, %v3252
        %v3254 = vrot.slane %v724, %v3253
        %v3319 = vunpack.c.l.b16 %v3187
        %v3320 = vunpack.c.l.b16 %v3188
        %v3321 = vunpack.c.l.b16 %v3189
        %v3322 = vunpack.c.l.b16 %v3190
        %v3323 = vunpack.c.l.b16 %v3191
        %v3324 = vunpack.c.l.b16 %v3192
        %v3325 = vunpack.c.l.b16 %v3193
        %v3326 = vunpack.c.l.b16 %v3194
        %v3327 = vunpack.c.l.b16 %v3195
        %v3328 = vunpack.c.l.b16 %v3196
        %v3329 = vunpack.c.l.b16 %v3197
        %v3330 = vunpack.c.l.b16 %v3198
        %v3331 = vunpack.c.l.b16 %v3199
        %v3332 = vunpack.c.l.b16 %v3200
        %v3333 = vunpack.c.l.b16 %v3201
        %v3334 = vunpack.c.l.b16 %v3202
        %v3335 = vunpack.c.l.b16 %v3203
        %v3336 = vunpack.c.l.b16 %v3204
        %v3337 = vunpack.c.l.b16 %v3205
        %v3338 = vunpack.c.l.b16 %v3206
        %v3339 = vunpack.c.l.b16 %v3207
        %v3340 = vunpack.c.l.b16 %v3208
        %v3341 = vunpack.c.l.b16 %v3209
        %v3342 = vunpack.c.l.b16 %v3210
        %v3343 = vunpack.c.l.b16 %v3211
        %v3344 = vunpack.c.l.b16 %v3212
        %v3345 = vunpack.c.l.b16 %v3213
        %v3346 = vunpack.c.l.b16 %v3214
        %v3347 = vunpack.c.l.b16 %v3215
        %v3348 = vunpack.c.l.b16 %v3216
        %v3349 = vunpack.c.l.b16 %v3217
        %v3350 = vunpack.c.l.b16 %v3218
        %v3351 = vunpack.c.l.b16 %v3219
        %v3352 = vunpack.c.l.b16 %v3220
        %v3353 = vunpack.c.l.b16 %v3221
        %v3354 = vunpack.c.l.b16 %v3222
        %v3355 = vunpack.c.l.b16 %v3223
        %v3356 = vunpack.c.l.b16 %v3224
        %v3357 = vunpack.c.l.b16 %v3225
        %v3358 = vunpack.c.l.b16 %v3226
        %v3359 = vunpack.c.l.b16 %v3227
        %v3360 = vunpack.c.l.b16 %v3228
        %v3361 = vunpack.c.l.b16 %v3229
        %v3362 = vunpack.c.l.b16 %v3230
        %v3363 = vunpack.c.l.b16 %v3231
        %v3364 = vunpack.c.l.b16 %v3232
        %v3365 = vunpack.c.l.b16 %v3233
        %v3366 = vunpack.c.l.b16 %v3234
        %v3367 = vunpack.c.l.b16 %v3235
        %v3368 = vunpack.c.l.b16 %v3236
        %v3369 = vunpack.c.l.b16 %v3237
        %v3370 = vunpack.c.l.b16 %v3238
        %v3371 = vunpack.c.l.b16 %v3239
        %v3372 = vunpack.c.l.b16 %v3240
        %v3373 = vunpack.c.l.b16 %v3241
        %v3374 = vunpack.c.l.b16 %v3242
        %v3375 = vunpack.c.l.b16 %v3243
        %v3376 = vunpack.c.l.b16 %v3244
        %v3377 = vunpack.c.l.b16 %v3245
        %v3378 = vunpack.c.l.b16 %v3246
        %v3379 = vunpack.c.l.b16 %v3247
        %v3380 = vunpack.c.l.b16 %v3248
        %v3381 = vunpack.c.l.b16 %v3249
        %v3382 = vunpack.c.l.b16 %v3250
        %v3383 = vpack.c.b16 %v3320, %v3319
        %v3384 = vpack.c.b16 %v3322, %v3321
        %v3385 = vpack.c.b16 %v3324, %v3323
        %v3386 = vpack.c.b16 %v3326, %v3325
        %v3387 = vpack.c.b16 %v3328, %v3327
        %v3388 = vpack.c.b16 %v3330, %v3329
        %v3389 = vpack.c.b16 %v3332, %v3331
        %v3390 = vpack.c.b16 %v3334, %v3333
        %v3391 = vpack.c.b16 %v3336, %v3335
        %v3392 = vpack.c.b16 %v3338, %v3337
        %v3393 = vpack.c.b16 %v3340, %v3339
        %v3394 = vpack.c.b16 %v3342, %v3341
        %v3395 = vpack.c.b16 %v3344, %v3343
        %v3396 = vpack.c.b16 %v3346, %v3345
        %v3397 = vpack.c.b16 %v3348, %v3347
        %v3398 = vpack.c.b16 %v3350, %v3349
        %v3399 = vpack.c.b16 %v3352, %v3351
        %v3400 = vpack.c.b16 %v3354, %v3353
        %v3401 = vpack.c.b16 %v3356, %v3355
        %v3402 = vpack.c.b16 %v3358, %v3357
        %v3403 = vpack.c.b16 %v3360, %v3359
        %v3404 = vpack.c.b16 %v3362, %v3361
        %v3405 = vpack.c.b16 %v3364, %v3363
        %v3406 = vpack.c.b16 %v3366, %v3365
        %v3407 = vpack.c.b16 %v3368, %v3367
        %v3408 = vpack.c.b16 %v3370, %v3369
        %v3409 = vpack.c.b16 %v3372, %v3371
        %v3410 = vpack.c.b16 %v3374, %v3373
        %v3411 = vpack.c.b16 %v3376, %v3375
        %v3412 = vpack.c.b16 %v3378, %v3377
        %v3413 = vpack.c.b16 %v3380, %v3379
        %v3414 = vpack.c.b16 %v3382, %v3381
        %3447 = vmatprep.subr.bf16.mxu0 0
        %3448 = vmatpush1.bf16.msra.mxu0 %v3390
        %3449 = vmatprep.subr.bf16.mxu0 0
        %3450 = vmatpush1.bf16.msra.mxu0 %v3389
        %3451 = vmatprep.subr.bf16.mxu0 0
        %3452 = vmatpush1.bf16.msra.mxu0 %v3388
        %3453 = vmatprep.subr.bf16.mxu0 0
        %3454 = vmatpush1.bf16.msra.mxu0 %v3387
        %3455 = vmatprep.subr.bf16.mxu0 0
        %3456 = vmatpush1.bf16.msra.mxu0 %v3386
        %3457 = vmatprep.subr.bf16.mxu0 0
        %3458 = vmatpush1.bf16.msra.mxu0 %v3385
        %3459 = vmatprep.subr.bf16.mxu0 0
        %3460 = vmatpush1.bf16.msra.mxu0 %v3384
        %3461 = vmatprep.subr.bf16.mxu0 0
        %3462 = vmatpush1.bf16.msra.mxu0 %v3383
        %3463 = vmatprep.subr.bf16.mxu0 0
        %3464 = vmatpush2.bf16.msra.mxu0 %v3398
        %3465 = vmatprep.subr.bf16.mxu0 0
        %3466 = vmatpush2.bf16.msra.mxu0 %v3397
        %3467 = vmatprep.subr.bf16.mxu0 0
        %3468 = vmatpush2.bf16.msra.mxu0 %v3396
        %3469 = vmatprep.subr.bf16.mxu0 0
        %3470 = vmatpush2.bf16.msra.mxu0 %v3395
        %3471 = vmatprep.subr.bf16.mxu0 0
        %3472 = vmatpush2.bf16.msra.mxu0 %v3394
        %3473 = vmatprep.subr.bf16.mxu0 0
        %3474 = vmatpush2.bf16.msra.mxu0 %v3393
        %3475 = vmatprep.subr.bf16.mxu0 0
        %3476 = vmatpush2.bf16.msra.mxu0 %v3392
        %3477 = vmatprep.subr.bf16.mxu0 0
        %3478 = vmatpush2.bf16.msra.mxu0 %v3391
        %3479 = vmatprep.mubr.bf16.mxu0 %v3172
        %3480 = vmatmul.mubr.bf16.gmra.mxu0 %v3171
        %v3481 = vpop.f32.mrf.mxu0
        %v3482 = vadd.f32 %v3254, %v3481
        %v3483 = vpop.f32.mrf.mxu0
        %v3484 = vpop.f32.mrf.mxu0
        %v3485 = vadd.f32 %v3254, %v3484
        %v3486 = vpop.f32.mrf.mxu0
        %3487 = vmatprep.mubr.bf16.mxu0 %v3176
        %3488 = vmatmul.mubr.bf16.gmra.mxu0 %v3175
        %v3489 = vpop.f32.mrf.mxu0
        %v3490 = vadd.f32 %v3254, %v3489
        %v3491 = vpop.f32.mrf.mxu0
        %v3492 = vpop.f32.mrf.mxu0
        %v3493 = vadd.f32 %v3254, %v3492
        %v3494 = vpop.f32.mrf.mxu0
        %3495 = vmatprep.mubr.bf16.mxu0 %v3180
        %3496 = vmatmul.mubr.bf16.gmra.mxu0 %v3179
        %v3497 = vpop.f32.mrf.mxu0
        %v3498 = vadd.f32 %v3254, %v3497
        %v3499 = vpop.f32.mrf.mxu0
        %v3500 = vpop.f32.mrf.mxu0
        %v3501 = vadd.f32 %v3254, %v3500
        %v3502 = vpop.f32.mrf.mxu0
        %3503 = vmatprep.mubr.bf16.mxu0 %v3184
        %3504 = vmatmul.mubr.bf16.gmra.mxu0 %v3183
        %v3505 = vpop.f32.mrf.mxu0
        %v3506 = vadd.f32 %v3254, %v3505
        %v3507 = vpop.f32.mrf.mxu0
        %v3508 = vpop.f32.mrf.mxu0
        %v3509 = vadd.f32 %v3254, %v3508
        %v3510 = vpop.f32.mrf.mxu0
        %3511 = vdwg.mxu0
        %3512 = vmatprep.subr.bf16.mxu0 0
        %3513 = vmatpush1.bf16.msra.mxu0 %v3406
        %3514 = vmatprep.subr.bf16.mxu0 0
        %3515 = vmatpush1.bf16.msra.mxu0 %v3405
        %3516 = vmatprep.subr.bf16.mxu0 0
        %3517 = vmatpush1.bf16.msra.mxu0 %v3404
        %3518 = vmatprep.subr.bf16.mxu0 0
        %3519 = vmatpush1.bf16.msra.mxu0 %v3403
        %3520 = vmatprep.subr.bf16.mxu0 0
        %3521 = vmatpush1.bf16.msra.mxu0 %v3402
        %3522 = vmatprep.subr.bf16.mxu0 0
        %3523 = vmatpush1.bf16.msra.mxu0 %v3401
        %3524 = vmatprep.subr.bf16.mxu0 0
        %3525 = vmatpush1.bf16.msra.mxu0 %v3400
        %3526 = vmatprep.subr.bf16.mxu0 0
        %3527 = vmatpush1.bf16.msra.mxu0 %v3399
        %3528 = vmatprep.subr.bf16.mxu0 0
        %3529 = vmatpush2.bf16.msra.mxu0 %v3414
        %3530 = vmatprep.subr.bf16.mxu0 0
        %3531 = vmatpush2.bf16.msra.mxu0 %v3413
        %3532 = vmatprep.subr.bf16.mxu0 0
        %3533 = vmatpush2.bf16.msra.mxu0 %v3412
        %3534 = vmatprep.subr.bf16.mxu0 0
        %3535 = vmatpush2.bf16.msra.mxu0 %v3411
        %3536 = vmatprep.subr.bf16.mxu0 0
        %3537 = vmatpush2.bf16.msra.mxu0 %v3410
        %3538 = vmatprep.subr.bf16.mxu0 0
        %3539 = vmatpush2.bf16.msra.mxu0 %v3409
        %3540 = vmatprep.subr.bf16.mxu0 0
        %3541 = vmatpush2.bf16.msra.mxu0 %v3408
        %3542 = vmatprep.subr.bf16.mxu0 0
        %3543 = vmatpush2.bf16.msra.mxu0 %v3407
        %3544 = vmatprep.mubr.bf16.mxu0 %v3174
        %3545 = vmatmul.mubr.bf16.gmra.mxu0 %v3173
        %v3546 = vpop.f32.mrf.mxu0
        %v3547 = vadd.f32 %v3482, %v3546
        %v3548 = vpop.f32.mrf.mxu0
        %v3549 = vpop.f32.mrf.mxu0
        %v3550 = vadd.f32 %v3485, %v3549
        %v3551 = vpop.f32.mrf.mxu0
        %3552 = vmatprep.mubr.bf16.mxu0 %v3178
        %3553 = vmatmul.mubr.bf16.gmra.mxu0 %v3177
        %v3554 = vpop.f32.mrf.mxu0
        %v3555 = vadd.f32 %v3490, %v3554
        %v3556 = vpop.f32.mrf.mxu0
        %v3557 = vpop.f32.mrf.mxu0
        %v3558 = vadd.f32 %v3493, %v3557
        %v3559 = vpop.f32.mrf.mxu0
        %3560 = vmatprep.mubr.bf16.mxu0 %v3182
        %3561 = vmatmul.mubr.bf16.gmra.mxu0 %v3181
        %v3562 = vpop.f32.mrf.mxu0
        %v3563 = vadd.f32 %v3498, %v3562
        %v3564 = vpop.f32.mrf.mxu0
        %v3565 = vpop.f32.mrf.mxu0
        %v3566 = vadd.f32 %v3501, %v3565
        %v3567 = vpop.f32.mrf.mxu0
        %3568 = vmatprep.mubr.bf16.mxu0 %v3186
        %3569 = vmatmul.mubr.bf16.gmra.mxu0 %v3185
        %v3570 = vpop.f32.mrf.mxu0
        %v3571 = vadd.f32 %v3506, %v3570
        %v3572 = vpop.f32.mrf.mxu0
        %v3573 = vpop.f32.mrf.mxu0
        %v3574 = vadd.f32 %v3509, %v3573
        %v3575 = vpop.f32.mrf.mxu0
        %3576 = vdwg.mxu0
        %v3577 = vadd.f32 %v3547, %v2639
        %v3578 = vadd.f32 %v3550, %v2640
        %v3579 = vadd.f32 %v3555, %v2641
        %v3580 = vadd.f32 %v3558, %v2642
        %v3581 = vadd.f32 %v3563, %v2643
        %v3582 = vadd.f32 %v3566, %v2644
        %v3583 = vadd.f32 %v3571, %v2645
        %v3584 = vadd.f32 %v3574, %v2646
        %3585 = vadd.xlane.f32.xlu0 %v3577
        %v3586 = vpop.xlane.xlu0 %3585
        %3587 = vadd.xlane.f32.xlu0 %v3578
        %v3588 = vpop.xlane.xlu0 %3587
        %3589 = vadd.xlane.f32.xlu0 %v3579
        %v3590 = vpop.xlane.xlu0 %3589
        %3591 = vadd.xlane.f32.xlu0 %v3580
        %v3592 = vpop.xlane.xlu0 %3591
        %3593 = vadd.xlane.f32.xlu0 %v3581
        %v3594 = vpop.xlane.xlu0 %3593
        %3595 = vadd.xlane.f32.xlu0 %v3582
        %v3596 = vpop.xlane.xlu0 %3595
        %3597 = vadd.xlane.f32.xlu0 %v3583
        %v3598 = vpop.xlane.xlu0 %3597
        %3599 = vadd.xlane.f32.xlu0 %v3584
        %v3600 = vpop.xlane.xlu0 %3599
        %v3601 = vmul.f32 %v3586, %v2550
        %v3602 = vmul.f32 %v3588, %v2550
        %v3603 = vmul.f32 %v3590, %v2550
        %v3604 = vmul.f32 %v3592, %v2550
        %v3605 = vmul.f32 %v3594, %v2550
        %v3606 = vmul.f32 %v3596, %v2550
        %v3607 = vmul.f32 %v3598, %v2550
        %v3608 = vmul.f32 %v3600, %v2550
        %v3609 = vsub.f32 %v3577, %v3601
        %v3610 = vsub.f32 %v3578, %v3602
        %v3611 = vsub.f32 %v3579, %v3603
        %v3612 = vsub.f32 %v3580, %v3604
        %v3613 = vsub.f32 %v3581, %v3605
        %v3614 = vsub.f32 %v3582, %v3606
        %v3615 = vsub.f32 %v3583, %v3607
        %v3616 = vsub.f32 %v3584, %v3608
        %v3617 = vmul.f32 %v3609, %v3609
        %v3618 = vmul.f32 %v3610, %v3610
        %v3619 = vmul.f32 %v3611, %v3611
        %v3620 = vmul.f32 %v3612, %v3612
        %v3621 = vmul.f32 %v3613, %v3613
        %v3622 = vmul.f32 %v3614, %v3614
        %v3623 = vmul.f32 %v3615, %v3615
        %v3624 = vmul.f32 %v3616, %v3616
        %3625 = vadd.xlane.f32.xlu0 %v3617
        %v3626 = vpop.xlane.xlu0 %3625
        %3627 = vadd.xlane.f32.xlu0 %v3618
        %v3628 = vpop.xlane.xlu0 %3627
        %3629 = vadd.xlane.f32.xlu0 %v3619
        %v3630 = vpop.xlane.xlu0 %3629
        %3631 = vadd.xlane.f32.xlu0 %v3620
        %v3632 = vpop.xlane.xlu0 %3631
        %3633 = vadd.xlane.f32.xlu0 %v3621
        %v3634 = vpop.xlane.xlu0 %3633
        %3635 = vadd.xlane.f32.xlu0 %v3622
        %v3636 = vpop.xlane.xlu0 %3635
        %3637 = vadd.xlane.f32.xlu0 %v3623
        %v3638 = vpop.xlane.xlu0 %3637
        %3639 = vadd.xlane.f32.xlu0 %v3624
        %v3640 = vpop.xlane.xlu0 %3639
        %v3641 = vmul.f32 %v3626, %v2550
        %v3642 = vmul.f32 %v3628, %v2550
        %v3643 = vmul.f32 %v3630, %v2550
        %v3644 = vmul.f32 %v3632, %v2550
        %v3645 = vmul.f32 %v3634, %v2550
        %v3646 = vmul.f32 %v3636, %v2550
        %v3647 = vmul.f32 %v3638, %v2550
        %v3648 = vmul.f32 %v3640, %v2550
        %v3649 = vadd.f32 %v3641, 1e-05
        %v3650 = vadd.f32 %v3642, 1e-05
        %v3651 = vadd.f32 %v3643, 1e-05
        %v3652 = vadd.f32 %v3644, 1e-05
        %v3653 = vadd.f32 %v3645, 1e-05
        %v3654 = vadd.f32 %v3646, 1e-05
        %v3655 = vadd.f32 %v3647, 1e-05
        %v3656 = vadd.f32 %v3648, 1e-05
        %v3657 = vrsqrt.pop %v3649
        %v3658 = vrsqrt.pop %v3650
        %v3659 = vrsqrt.pop %v3651
        %v3660 = vrsqrt.pop %v3652
        %v3661 = vrsqrt.pop %v3653
        %v3662 = vrsqrt.pop %v3654
        %v3663 = vrsqrt.pop %v3655
        %v3664 = vrsqrt.pop %v3656
        %v3665 = vmul.f32 %v3609, %v3657
        %v3666 = vmul.f32 %v3610, %v3658
        %v3667 = vmul.f32 %v3611, %v3659
        %v3668 = vmul.f32 %v3612, %v3660
        %v3669 = vmul.f32 %v3613, %v3661
        %v3670 = vmul.f32 %v3614, %v3662
        %v3671 = vmul.f32 %v3615, %v3663
        %v3672 = vmul.f32 %v3616, %v3664
        %v3673 = vlaneseq
        %v3674 = vshrl.u32 %v3673, 7
        %v3675 = vsub.s32 6, %v3674
        %v3676 = vrot.slane %v723, %v3675
        %v3677 = vmul.f32 %v3665, %v3676
        %v3678 = vmul.f32 %v3666, %v3676
        %v3679 = vmul.f32 %v3667, %v3676
        %v3680 = vmul.f32 %v3668, %v3676
        %v3681 = vmul.f32 %v3669, %v3676
        %v3682 = vmul.f32 %v3670, %v3676
        %v3683 = vmul.f32 %v3671, %v3676
        %v3684 = vmul.f32 %v3672, %v3676
        %v3685 = vlaneseq
        %v3686 = vshrl.u32 %v3685, 7
        %v3687 = vsub.s32 7, %v3686
        %v3688 = vrot.slane %v723, %v3687
        %v3689 = vadd.f32 %v3677, %v3688
        %v3690 = vadd.f32 %v3678, %v3688
        %v3691 = vadd.f32 %v3679, %v3688
        %v3692 = vadd.f32 %v3680, %v3688
        %v3693 = vadd.f32 %v3681, %v3688
        %v3694 = vadd.f32 %v3682, %v3688
        %v3695 = vadd.f32 %v3683, %v3688
        %v3696 = vadd.f32 %v3684, %v3688
        %3697 = vst [vmem:[%s716] sm:$0xff] %v3689
        %3698 = vst [vmem:[%s716 + $0x8] sm:$0xff] %v3690
        %3699 = vst [vmem:[%s716 + $0x10] sm:$0xff] %v3691
        %3700 = vst [vmem:[%s716 + $0x18] sm:$0xff] %v3692
        %3701 = vst [vmem:[%s716 + $0x20] sm:$0xff] %v3693
        %3702 = vst [vmem:[%s716 + $0x28] sm:$0xff] %v3694
        %3703 = vst [vmem:[%s716 + $0x30] sm:$0xff] %v3695
        %3704 = vst [vmem:[%s716 + $0x38] sm:$0xff] %v3696
        %s3705 = sand.u32 %s363, 1
        %s3706 = scalar_lea.sflag [#allocation4], %s3705
        %s3707 = sand.u32 %s363, 1
        %s3708 = smul.addr %s3707, 64
        %s3709 = scalar_lea.vmem [#allocation22], %s3708
        // Predicated region
        $region125: #{tpu_custom_call.1} parent=75 // pred_check
          %p3710 = pneg %p373
        $region126: #{tpu_custom_call.1} parent=75 // pred_check_branch
          %3712 = sbr.rel (%p3710) target = $region128
        $region127: #{tpu_custom_call.1} parent=75 // pred_region
          %s3713 = smul.u32 8, %s41
          %s3715 = ssub.s32 1024, 1024
          %3716 = vsyncadd %s3706, %s3715
          %s3717 = smul.addr %s3713, 128
          %s3718 = scalar_lea.hbm %s14, %s3717
          %s3719 = sshll.u32 %s3709, 4
          %s3720 = int_to_ptr.vmem [resolvable:$true] %s3719
          %3725 = dma.vmem_to_hbm [thread:$0]  %s3720, 1024, %s3718, %s3706, 128, 128, 8
        $region128: #{tpu_custom_call.1} parent=75 // pred_fallthru
          _
      $region76: #{tpu_custom_call.1} parent=5 // pred_fallthru
        _
      %p3726 = scmp.le.s32.totalorder 2, %s36
      // Predicated region
      $region129: #{tpu_custom_call.1} parent=5 // pred_check
        %p3727 = pneg %p3726
      $region130: #{tpu_custom_call.1} parent=5 // pred_check_branch
        %3729 = sbr.rel (%p3727) target = $region132
      $region131: #{tpu_custom_call.1} parent=5 // pred_region
        %s3730 = ssub.s32 %s36, 2
        // Predicated region
        $region133: #{tpu_custom_call.1} parent=131 // pred_check
          %p3731 = pneg %p379
        $region134: #{tpu_custom_call.1} parent=131 // pred_check_branch
          %3733 = sbr.rel (%p3731) target = $region136
        $region135: #{tpu_custom_call.1} parent=131 // pred_region
          %s3734 = sand.u32 %s364, 1
          %s3735 = scalar_lea.sflag [#allocation4], %s3734
          %s3736 = sand.u32 %s364, 1
          %s3737 = smul.addr %s3736, 64
          %s3738 = scalar_lea.vmem [#allocation22], %s3737
          %3739 = dma.done %s3735, 1024
        $region136: #{tpu_custom_call.1} parent=131 // pred_fallthru
          _
      $region132: #{tpu_custom_call.1} parent=5 // pred_fallthru
        _
    $region6: #{tpu_custom_call.1} parent=1 // loop_footer
      %s40 = sadd.s32 1, %s36
    $region7: #{tpu_custom_call.1} parent=1 // loop_footer_branch
      %35 = sbr.rel target = $region3
    $region8: #{tpu_custom_call.1} parent=1 // loop_exit
      _
    %3740 = vsyncpa [#allocation3], 1
    %s3741 = scalar_lea.sflag [#allocation3], 1
    %3742 = vsyncpa %s3741, 1
    %3743 = vsyncpa [#allocation6], 1
    %s3744 = scalar_lea.sflag [#allocation6], 1
    %3745 = vsyncpa %s3744, 1
    %3746 = vsyncpa [#allocation9], 1
    %s3747 = scalar_lea.sflag [#allocation9], 1
    %3748 = vsyncpa %s3747, 1
    %3749 = vsyncpa [#allocation12], 1
    %3750 = vsyncpa [#allocation15], 1
    %3751 = vsyncpa [#allocation18], 1
    %3752 = vsyncpa [#allocation21], 1
    %3753 = vsyncpa [#allocation4], 1
    %s3754 = scalar_lea.sflag [#allocation4], 1
    %3755 = vsyncpa %s3754, 1

</llo_original>
